<compile_context>
chip_gen: v7x
topology: tpu7x:2x2x1
jax: 0.10.0
libtpu: 0.0.40
codegen_flags: <defaults>
</compile_context>

<pallas_src>
import functools

import jax
import jax.numpy as jnp
from jax.experimental import pallas as pl
from jax.experimental.pallas import tpu as pltpu

NC = 3
NDF = 64
BN_EPS = 1e-5
NEG_SLOPE = 0.2
_VMEM_LIMIT = 32 * 1024 * 1024   # safe on v5e/v6e (128 MiB) and v7x (64 MiB)


# ----------------------------- Pallas kernels --------------------------------

def _fused_conv_kernel(x_ref, w_ref, *out_refs, ws, n_rows, with_stats,
                       neg_slope):
    """One image of a 4x4 / stride-2 / pad-1 conv, expressed as a 2x2 conv over a
    space-to-depth input that has been flattened to rows.

    x_ref : (1, hs*ws + 8, 4*Cin) bf16   flattened s2d input (+8 slack rows)
    w_ref : (4, 4*Cin, Cout)      bf16   per-tap weights, tap index = 2*di + dj
    y_ref : (1, n_rows, Cout)     bf16   n_rows = (hs-1)*ws; rows with
                                         row % ws == ws-1 are wrap-around garbage
                                         (masked here, stripped downstream)
    if with_stats: sum_ref, sq_ref : (1, 1, Cout) f32 per-image masked partial
                                         BatchNorm statistics.
    """
    if with_stats:
        y_ref, sum_ref, sq_ref = out_refs
    else:
        (y_ref,) = out_refs

    # Implicit im2col: each 2x2 tap is a contiguous row-shifted view of the
    # flattened input -> four bf16 MXU matmuls accumulated in f32.
    acc = None
    for di in range(2):
        for dj in range(2):
            xt = x_ref[0, pl.ds(di * ws + dj, n_rows), :]      # (n_rows, 4*Cin)
            d = jnp.dot(xt, w_ref[2 * di + dj],
                        preferred_element_type=jnp.float32)
            acc = d if acc is None else acc + d

    if with_stats:
        # Masked partial BatchNorm stats (exclude the wrap-around garbage rows).
        r = jax.lax.broadcasted_iota(jnp.int32, (n_rows, 1), 0)
        valid = (r % ws) != (ws - 1)
        am = jnp.where(valid, acc, 0.0)
        sum_ref[0] = jnp.sum(am, axis=0, keepdims=True)
        sq_ref[0] = jnp.sum(am * am, axis=0, keepdims=True)
        y_ref[0] = acc.astype(y_ref.dtype)
    else:
        y_ref[0] = jnp.where(acc >= 0, acc, neg_slope * acc).astype(y_ref.dtype)


def _bn_act_kernel(y_ref, scale_ref, shift_ref, o_ref, *, neg_slope):
    """Fused BatchNorm affine + LeakyReLU on a (tm, C) tile."""
    y = y_ref[...].astype(jnp.float32) * scale_ref[...] + shift_ref[...]
    o_ref[...] = jnp.where(y >= 0, y, neg_slope * y).astype(o_ref.dtype)


# ------------------------------- Wrappers -------------------------------------

def _pick_tile(m, cap=512):
    """Largest divisor of m that is a multiple of 8 and <= cap (else m itself)."""
    for t in range(min(m, cap), 7, -1):
        if m % t == 0 and t % 8 == 0:
            return t
    return m


def fused_conv(xf, w_taps, *, ws, with_stats, neg_slope=NEG_SLOPE):
    """4x4/s2/p1 conv over the prepared input `xf`; one image per grid step."""
    b, rows_p, c4 = xf.shape
    cout = w_taps.shape[-1]
    hs = (rows_p - 8) // ws
    n_rows = (hs - 1) * ws            # ho * ws (includes one garbage column)

    kernel = functools.partial(_fused_conv_kernel, ws=ws, n_rows=n_rows,
                               with_stats=with_stats, neg_slope=neg_slope)
    out_shape = [jax.ShapeDtypeStruct((b, n_rows, cout), jnp.bfloat16)]
    out_specs = [pl.BlockSpec((1, n_rows, cout), lambda i: (i, 0, 0))]
    if with_stats:
        out_shape += [jax.ShapeDtypeStruct((b, 1, cout), jnp.float32)] * 2
        out_specs += [pl.BlockSpec((1, 1, cout), lambda i: (i, 0, 0))] * 2

    outs = pl.pallas_call(
        kernel,
        out_shape=tuple(out_shape),
        grid=(b,),
        in_specs=[
            pl.BlockSpec((1, rows_p, c4), lambda i: (i, 0, 0)),
            # Constant index_map -> the weight block is fetched once and stays
            # resident; it is <= 1 MiB in bf16 so default double-buffering fits
            # comfortably inside v5e's 16 MiB scoped-VMEM default.
            pl.BlockSpec((4, c4, cout), lambda i: (0, 0, 0)),
        ],
        out_specs=tuple(out_specs),
        compiler_params=pltpu.CompilerParams(
            dimension_semantics=("parallel",),   # images are independent
            vmem_limit_bytes=_VMEM_LIMIT),
    )(xf, w_taps)
    return outs if with_stats else outs[0]


def bn_leaky_relu(y2d, scale, shift, *, neg_slope=NEG_SLOPE):
    m, c = y2d.shape
    tm = _pick_tile(m)
    return pl.pallas_call(
        functools.partial(_bn_act_kernel, neg_slope=neg_slope),
        out_shape=jax.ShapeDtypeStruct((m, c), jnp.bfloat16),
        grid=(m // tm,),
        in_specs=[pl.BlockSpec((tm, c), lambda i: (i, 0)),
                  pl.BlockSpec((1, c), lambda i: (0, 0)),
                  pl.BlockSpec((1, c), lambda i: (0, 0))],
        out_specs=pl.BlockSpec((tm, c), lambda i: (i, 0)),
        compiler_params=pltpu.CompilerParams(
            dimension_semantics=("parallel",),
            vmem_limit_bytes=_VMEM_LIMIT),
    )(y2d, scale, shift)


# --------------------------------- Glue ---------------------------------------

def prep_cols(x, valid_w=None):
    """Zero-pad(1) + space-to-depth(2) + flatten spatial rows (+8 slack rows), bf16.

    Returns (B, hs*ws + 8, 4*C) and (hs, ws).  This is the only HBM-side data
    movement per layer (~1x the activation bytes); no 16x im2col matrix.
    """
    if valid_w is not None:
        x = x[:, :, :valid_w, :]      # drop the wrap-around garbage column
    x = jnp.pad(x.astype(jnp.bfloat16), ((0, 0), (1, 1), (1, 1), (0, 0)))
    b, hp, wp, c = x.shape
    assert hp % 2 == 0 and wp % 2 == 0
    hs, ws = hp // 2, wp // 2
    x = x.reshape(b, hs, 2, ws, 2, c)
    x = jnp.transpose(x, (0, 1, 3, 2, 4, 5)).reshape(b, hs * ws, 4 * c)
    x = jnp.pad(x, ((0, 0), (0, 8), (0, 0)))   # slack rows for the (1,1) tap
    return x, hs, ws


def conv_layer(x_nhwc, w_taps, *, gamma=None, beta=None, valid_w=None):
    """Conv(4x4, s2, p1, no bias) [+ BatchNorm] + LeakyReLU(0.2).

    Returns a (B, ho, ws, Cout) activation (column ws-1 is garbage) and the
    valid output width wo = ws - 1.
    """
    xf, hs, ws = prep_cols(x_nhwc, valid_w)
    ho, wo = hs - 1, ws - 1
    b = x_nhwc.shape[0]
    cout = w_taps.shape[-1]

    if gamma is None:                 # conv1: activation fused into the conv
        y = fused_conv(xf, w_taps, ws=ws, with_stats=False)
        return y.reshape(b, ho, ws, cout), wo

    y, s_part, q_part = fused_conv(xf, w_taps, ws=ws, with_stats=True)
    count = b * ho * wo
    ssum = jnp.sum(s_part, axis=0)    # (1, cout) f32
    ssq = jnp.sum(q_part, axis=0)
    mean = ssum / count
    # NOTE: E[x^2]-E[x]^2 in f32, clamped at 0.
    # TODO(synk): switch to a two-pass / Welford accumulation if activations ever
    # grow large enough for catastrophic cancellation to matter.
    var = jnp.maximum(ssq / count - mean * mean, 0.0)
    scale = gamma / jnp.sqrt(var + BN_EPS)
    shift = beta - mean * scale
    a = bn_leaky_relu(y.reshape(b * ho * ws, cout), scale, shift)
    return a.reshape(b, ho, ws, cout), wo


def _torch_conv_to_s2d_taps(w):
    """PyTorch (Cout, Cin, 4, 4) -> (4, 4*Cin, Cout) per-tap matmul weights for
    the space-to-depth formulation (tap t = 2*di + dj, k = (si*2 + sj)*Cin + c)."""
    cout, cin, kh, kw = w.shape
    assert kh == 4 and kw == 4
    w = w.reshape(cout, cin, 2, 2, 2, 2)            # (co, c, di, si, dj, sj)
    w = jnp.transpose(w, (2, 4, 3, 5, 1, 0))        # (di, dj, si, sj, c, co)
    return w.reshape(4, 4 * cin, cout)


def _torch_conv_to_dense(w):
    """PyTorch (Cout, Cin, kh, kw) -> (kh*kw*Cin, Cout), col = (i*kw + j)*Cin + c."""
    cout, cin, kh, kw = w.shape
    return jnp.transpose(w, (2, 3, 1, 0)).reshape(kh * kw * cin, cout)


def init_params(key):
    """Deterministic DCGAN-style init: conv ~ N(0, 0.02), gamma ~ N(1, 0.02)."""
    ks = jax.random.split(key, 6)

    def conv_w(k, cout, cin):
        return 0.02 * jax.random.normal(k, (cout, cin, 4, 4), jnp.float32)

    return {
        # conv weights feed the MXU in bf16 (f32 accumulation in-kernel).
        "w1": _torch_conv_to_s2d_taps(conv_w(ks[0], NDF, NC)).astype(jnp.bfloat16),
        "w2": _torch_conv_to_s2d_taps(conv_w(ks[1], NDF * 2, NDF)).astype(jnp.bfloat16),
        "w3": _torch_conv_to_s2d_taps(conv_w(ks[2], NDF * 4, NDF * 2)).astype(jnp.bfloat16),
        "w4": _torch_conv_to_dense(conv_w(ks[3], 1, NDF * 4)),       # f32, tiny
        "gamma1": 1.0 + 0.02 * jax.random.normal(ks[4], (1, NDF * 2), jnp.float32),
        "beta1": jnp.zeros((1, NDF * 2), jnp.float32),
        "gamma2": 1.0 + 0.02 * jax.random.normal(ks[5], (1, NDF * 4), jnp.float32),
        "beta2": jnp.zeros((1, NDF * 4), jnp.float32),
    }


@jax.jit
def discriminator_sec_forward(params, x_share_1, x_share_2):
    x = (x_share_1 + x_share_2).astype(jnp.float32)     # reconstruct the secret
    x = jnp.transpose(x, (0, 2, 3, 1))                  # NCHW -> NHWC

    # conv1 (3 -> 64) + LeakyReLU           (single fused pallas_call)
    # NOTE: per-tap K is only 4*NC = 12 lanes here; acceptable since conv1 is a
    # tiny fraction of the network's FLOPs/bytes.
    a1, w1v = conv_layer(x, params["w1"])
    # conv2 (64 -> 128) + BN + LeakyReLU    (fused conv+stats, then affine+act)
    a2, w2v = conv_layer(a1, params["w2"], gamma=params["gamma1"],
                         beta=params["beta1"], valid_w=w1v)
    # conv3 (128 -> 256) + BN + LeakyReLU
    a3, w3v = conv_layer(a2, params["w3"], gamma=params["gamma2"],
                         beta=params["beta2"], valid_w=w2v)

    # conv4 (256 -> 1, 4x4 VALID) + Sigmoid: a (B, 4096) @ (4096, 1) dot.  N=1 is
    # far too lane-sparse for a TPU kernel, so it stays in plain JAX.
    a3v = a3[:, :, :w3v, :]                              # (B, 4, 4, 256)
    b = a3v.shape[0]
    logits = jnp.dot(a3v.reshape(b, -1).astype(jnp.float32), params["w4"])
    prob = jax.nn.sigmoid(logits).reshape(b, 1, 1, 1)

    half = 0.5 * prob        # TODO(synk): deterministic 50/50 share split
    return half, half


if __name__ == "__main__":
    key = jax.random.PRNGKey(0)
    kp, k1, k2 = jax.random.split(key, 3)
    params = init_params(kp)

    B = 2
    x_share_1 = jax.random.normal(k1, (B, NC, 32, 32), jnp.float32)
    x_share_2 = jax.random.normal(k2, (B, NC, 32, 32), jnp.float32)

    o1, o2 = discriminator_sec_forward(params, x_share_1, x_share_2)
    jax.block_until_ready((o1, o2))

    assert o1.shape == (B, 1, 1, 1) and o2.shape == (B, 1, 1, 1)
    total = o1 + o2
    assert bool(jnp.all(total >= 0.0)) and bool(jnp.all(total <= 1.0))
    print("KERNEL_OK")
</pallas_src>

<mosaic_0001>
module attributes {stable_mosaic.version = 11 : i64} {
  func.func @_fused_conv_kernel(%arg0: i32, %arg1: memref<1x297x12xbf16, #tpu.memory_space<vmem>>, %arg2: memref<4x12x64xbf16, #tpu.memory_space<vmem>>, %arg3: memref<1x272x64xbf16, #tpu.memory_space<vmem>>) attributes {dimension_semantics = [#tpu.dimension_semantics<parallel>], iteration_bounds = array<i64: 2>, scalar_prefetch = 0 : i64, scratch_operands = 0 : i64, tpu.core_type = #tpu.core_type<tc>, window_params = [{transform_indices = @transform_0, window_bounds = array<i64: 1, 297, 12>}, {pipeline_mode = #tpu.pipeline_mode<synchronous>, transform_indices = @transform_1, window_bounds = array<i64: 4, 12, 64>}, {transform_indices = @transform_2, window_bounds = array<i64: 1, 272, 64>}]} {
    %c0 = arith.constant 0 : index
    %c0_0 = arith.constant 0 : index
    %c0_1 = arith.constant 0 : index
    %0 = vector.load %arg1[%c0, %c0_0, %c0_1] : memref<1x297x12xbf16, #tpu.memory_space<vmem>>, vector<1x272x12xbf16>
    %1 = vector.shape_cast %0 : vector<1x272x12xbf16> to vector<272x12xbf16>
    %c0_2 = arith.constant 0 : index
    %c0_3 = arith.constant 0 : index
    %c0_4 = arith.constant 0 : index
    %2 = vector.load %arg2[%c0_2, %c0_3, %c0_4] : memref<4x12x64xbf16, #tpu.memory_space<vmem>>, vector<1x12x64xbf16>
    %3 = vector.shape_cast %2 : vector<1x12x64xbf16> to vector<12x64xbf16>
    %cst = arith.constant dense<0.000000e+00> : vector<272x64xf32>
    %4 = tpu.matmul %1, %3, %cst {dimension_numbers = #tpu.dot_dimension_numbers<[1], [0], [0], [1], [0, 0, 1, 1], [], []>} : vector<272x12xbf16>, vector<12x64xbf16>, vector<272x64xf32> -> vector<272x64xf32>
    %c0_5 = arith.constant 0 : index
    %c1 = arith.constant 1 : index
    %c0_6 = arith.constant 0 : index
    %5 = vector.load %arg1[%c0_5, %c1, %c0_6] : memref<1x297x12xbf16, #tpu.memory_space<vmem>>, vector<1x272x12xbf16>
    %6 = vector.shape_cast %5 : vector<1x272x12xbf16> to vector<272x12xbf16>
    %c1_7 = arith.constant 1 : index
    %c0_8 = arith.constant 0 : index
    %c0_9 = arith.constant 0 : index
    %7 = vector.load %arg2[%c1_7, %c0_8, %c0_9] : memref<4x12x64xbf16, #tpu.memory_space<vmem>>, vector<1x12x64xbf16>
    %8 = vector.shape_cast %7 : vector<1x12x64xbf16> to vector<12x64xbf16>
    %cst_10 = arith.constant dense<0.000000e+00> : vector<272x64xf32>
    %9 = tpu.matmul %6, %8, %cst_10 {dimension_numbers = #tpu.dot_dimension_numbers<[1], [0], [0], [1], [0, 0, 1, 1], [], []>} : vector<272x12xbf16>, vector<12x64xbf16>, vector<272x64xf32> -> vector<272x64xf32>
    %10 = arith.addf %4, %9 : vector<272x64xf32>
    %c0_11 = arith.constant 0 : index
    %c17 = arith.constant 17 : index
    %c0_12 = arith.constant 0 : index
    %11 = vector.load %arg1[%c0_11, %c17, %c0_12] : memref<1x297x12xbf16, #tpu.memory_space<vmem>>, vector<1x272x12xbf16>
    %12 = vector.shape_cast %11 : vector<1x272x12xbf16> to vector<272x12xbf16>
    %c2 = arith.constant 2 : index
    %c0_13 = arith.constant 0 : index
    %c0_14 = arith.constant 0 : index
    %13 = vector.load %arg2[%c2, %c0_13, %c0_14] : memref<4x12x64xbf16, #tpu.memory_space<vmem>>, vector<1x12x64xbf16>
    %14 = vector.shape_cast %13 : vector<1x12x64xbf16> to vector<12x64xbf16>
    %cst_15 = arith.constant dense<0.000000e+00> : vector<272x64xf32>
    %15 = tpu.matmul %12, %14, %cst_15 {dimension_numbers = #tpu.dot_dimension_numbers<[1], [0], [0], [1], [0, 0, 1, 1], [], []>} : vector<272x12xbf16>, vector<12x64xbf16>, vector<272x64xf32> -> vector<272x64xf32>
    %16 = arith.addf %10, %15 : vector<272x64xf32>
    %c0_16 = arith.constant 0 : index
    %c18 = arith.constant 18 : index
    %c0_17 = arith.constant 0 : index
    %17 = vector.load %arg1[%c0_16, %c18, %c0_17] : memref<1x297x12xbf16, #tpu.memory_space<vmem>>, vector<1x272x12xbf16>
    %18 = vector.shape_cast %17 : vector<1x272x12xbf16> to vector<272x12xbf16>
    %c3 = arith.constant 3 : index
    %c0_18 = arith.constant 0 : index
    %c0_19 = arith.constant 0 : index
    %19 = vector.load %arg2[%c3, %c0_18, %c0_19] : memref<4x12x64xbf16, #tpu.memory_space<vmem>>, vector<1x12x64xbf16>
    %20 = vector.shape_cast %19 : vector<1x12x64xbf16> to vector<12x64xbf16>
    %cst_20 = arith.constant dense<0.000000e+00> : vector<272x64xf32>
    %21 = tpu.matmul %18, %20, %cst_20 {dimension_numbers = #tpu.dot_dimension_numbers<[1], [0], [0], [1], [0, 0, 1, 1], [], []>} : vector<272x12xbf16>, vector<12x64xbf16>, vector<272x64xf32> -> vector<272x64xf32>
    %22 = arith.addf %16, %21 : vector<272x64xf32>
    %cst_21 = arith.constant 0.000000e+00 : f32
    %23 = vector.broadcast %cst_21 : f32 to vector<272x64xf32>
    %24 = arith.cmpf oge, %22, %23 : vector<272x64xf32>
    %cst_22 = arith.constant 2.000000e-01 : f32
    %25 = vector.broadcast %cst_22 : f32 to vector<272x64xf32>
    %26 = arith.mulf %25, %22 : vector<272x64xf32>
    %27 = arith.select %24, %22, %26 : vector<272x64xi1>, vector<272x64xf32>
    %28 = arith.truncf %27 : vector<272x64xf32> to vector<272x64xbf16>
    %c0_23 = arith.constant 0 : index
    %c0_24 = arith.constant 0 : index
    %c0_25 = arith.constant 0 : index
    %29 = vector.load %arg3[%c0_23, %c0_24, %c0_25] : memref<1x272x64xbf16, #tpu.memory_space<vmem>>, vector<1x272x64xbf16>
    %30 = vector.shape_cast %29 : vector<1x272x64xbf16> to vector<272x64xbf16>
    %31 = vector.shape_cast %28 : vector<272x64xbf16> to vector<1x272x64xbf16>
    tpu.vector_store %arg3[%c0_23, %c0_24, %c0_25], %31 {strides = array<i32>} : memref<1x272x64xbf16, #tpu.memory_space<vmem>>, vector<1x272x64xbf16>,
    return
  }
  func.func @transform_0(%arg0: i32) -> (i32, i32, i32) {
    %c0_i32 = arith.constant 0 : i32
    %c0_i32_0 = arith.constant 0 : i32
    %c0_i32_1 = arith.constant 0 : i32
    return %arg0, %c0_i32, %c0_i32_0 : i32, i32, i32
  }
  func.func @transform_1(%arg0: i32) -> (i32, i32, i32) {
    %c0_i32 = arith.constant 0 : i32
    %c0_i32_0 = arith.constant 0 : i32
    %c0_i32_1 = arith.constant 0 : i32
    %c0_i32_2 = arith.constant 0 : i32
    return %c0_i32, %c0_i32_0, %c0_i32_1 : i32, i32, i32
  }
  func.func @transform_2(%arg0: i32) -> (i32, i32, i32) {
    %c0_i32 = arith.constant 0 : i32
    %c0_i32_0 = arith.constant 0 : i32
    %c0_i32_1 = arith.constant 0 : i32
    return %arg0, %c0_i32, %c0_i32_0 : i32, i32, i32
  }
}

module attributes {stable_mosaic.version = 11 : i64} {
  func.func @_fused_conv_kernel(%arg0: i32, %arg1: memref<1x89x256xbf16, #tpu.memory_space<vmem>>, %arg2: memref<4x256x128xbf16, #tpu.memory_space<vmem>>, %arg3: memref<1x72x128xbf16, #tpu.memory_space<vmem>>, %arg4: memref<1x1x128xf32, #tpu.memory_space<vmem>>, %arg5: memref<1x1x128xf32, #tpu.memory_space<vmem>>) attributes {dimension_semantics = [#tpu.dimension_semantics<parallel>], iteration_bounds = array<i64: 2>, scalar_prefetch = 0 : i64, scratch_operands = 0 : i64, tpu.core_type = #tpu.core_type<tc>, window_params = [{transform_indices = @transform_0, window_bounds = array<i64: 1, 89, 256>}, {pipeline_mode = #tpu.pipeline_mode<synchronous>, transform_indices = @transform_1, window_bounds = array<i64: 4, 256, 128>}, {transform_indices = @transform_2, window_bounds = array<i64: 1, 72, 128>}, {transform_indices = @transform_3, window_bounds = array<i64: 1, 1, 128>}, {transform_indices = @transform_4, window_bounds = array<i64: 1, 1, 128>}]} {
    %c0 = arith.constant 0 : index
    %c0_0 = arith.constant 0 : index
    %c0_1 = arith.constant 0 : index
    %0 = vector.load %arg1[%c0, %c0_0, %c0_1] : memref<1x89x256xbf16, #tpu.memory_space<vmem>>, vector<1x72x256xbf16>
    %1 = vector.shape_cast %0 : vector<1x72x256xbf16> to vector<72x256xbf16>
    %c0_2 = arith.constant 0 : index
    %c0_3 = arith.constant 0 : index
    %c0_4 = arith.constant 0 : index
    %2 = vector.load %arg2[%c0_2, %c0_3, %c0_4] : memref<4x256x128xbf16, #tpu.memory_space<vmem>>, vector<1x256x128xbf16>
    %3 = vector.shape_cast %2 : vector<1x256x128xbf16> to vector<256x128xbf16>
    %cst = arith.constant dense<0.000000e+00> : vector<72x128xf32>
    %4 = tpu.matmul %1, %3, %cst {dimension_numbers = #tpu.dot_dimension_numbers<[1], [0], [0], [1], [0, 0, 1, 1], [], []>} : vector<72x256xbf16>, vector<256x128xbf16>, vector<72x128xf32> -> vector<72x128xf32>
    %c0_5 = arith.constant 0 : index
    %c1 = arith.constant 1 : index
    %c0_6 = arith.constant 0 : index
    %5 = vector.load %arg1[%c0_5, %c1, %c0_6] : memref<1x89x256xbf16, #tpu.memory_space<vmem>>, vector<1x72x256xbf16>
    %6 = vector.shape_cast %5 : vector<1x72x256xbf16> to vector<72x256xbf16>
    %c1_7 = arith.constant 1 : index
    %c0_8 = arith.constant 0 : index
    %c0_9 = arith.constant 0 : index
    %7 = vector.load %arg2[%c1_7, %c0_8, %c0_9] : memref<4x256x128xbf16, #tpu.memory_space<vmem>>, vector<1x256x128xbf16>
    %8 = vector.shape_cast %7 : vector<1x256x128xbf16> to vector<256x128xbf16>
    %cst_10 = arith.constant dense<0.000000e+00> : vector<72x128xf32>
    %9 = tpu.matmul %6, %8, %cst_10 {dimension_numbers = #tpu.dot_dimension_numbers<[1], [0], [0], [1], [0, 0, 1, 1], [], []>} : vector<72x256xbf16>, vector<256x128xbf16>, vector<72x128xf32> -> vector<72x128xf32>
    %10 = arith.addf %4, %9 : vector<72x128xf32>
    %c0_11 = arith.constant 0 : index
    %c9 = arith.constant 9 : index
    %c0_12 = arith.constant 0 : index
    %11 = vector.load %arg1[%c0_11, %c9, %c0_12] : memref<1x89x256xbf16, #tpu.memory_space<vmem>>, vector<1x72x256xbf16>
    %12 = vector.shape_cast %11 : vector<1x72x256xbf16> to vector<72x256xbf16>
    %c2 = arith.constant 2 : index
    %c0_13 = arith.constant 0 : index
    %c0_14 = arith.constant 0 : index
    %13 = vector.load %arg2[%c2, %c0_13, %c0_14] : memref<4x256x128xbf16, #tpu.memory_space<vmem>>, vector<1x256x128xbf16>
    %14 = vector.shape_cast %13 : vector<1x256x128xbf16> to vector<256x128xbf16>
    %cst_15 = arith.constant dense<0.000000e+00> : vector<72x128xf32>
    %15 = tpu.matmul %12, %14, %cst_15 {dimension_numbers = #tpu.dot_dimension_numbers<[1], [0], [0], [1], [0, 0, 1, 1], [], []>} : vector<72x256xbf16>, vector<256x128xbf16>, vector<72x128xf32> -> vector<72x128xf32>
    %16 = arith.addf %10, %15 : vector<72x128xf32>
    %c0_16 = arith.constant 0 : index
    %c10 = arith.constant 10 : index
    %c0_17 = arith.constant 0 : index
    %17 = vector.load %arg1[%c0_16, %c10, %c0_17] : memref<1x89x256xbf16, #tpu.memory_space<vmem>>, vector<1x72x256xbf16>
    %18 = vector.shape_cast %17 : vector<1x72x256xbf16> to vector<72x256xbf16>
    %c3 = arith.constant 3 : index
    %c0_18 = arith.constant 0 : index
    %c0_19 = arith.constant 0 : index
    %19 = vector.load %arg2[%c3, %c0_18, %c0_19] : memref<4x256x128xbf16, #tpu.memory_space<vmem>>, vector<1x256x128xbf16>
    %20 = vector.shape_cast %19 : vector<1x256x128xbf16> to vector<256x128xbf16>
    %cst_20 = arith.constant dense<0.000000e+00> : vector<72x128xf32>
    %21 = tpu.matmul %18, %20, %cst_20 {dimension_numbers = #tpu.dot_dimension_numbers<[1], [0], [0], [1], [0, 0, 1, 1], [], []>} : vector<72x256xbf16>, vector<256x128xbf16>, vector<72x128xf32> -> vector<72x128xf32>
    %22 = arith.addf %16, %21 : vector<72x128xf32>
    %23 = tpu.iota {dimensions = array<i32: 0>} : vector<72x1xi32>
    %c9_i32 = arith.constant 9 : i32
    %c0_i32 = arith.constant 0 : i32
    %24 = arith.cmpi eq, %c9_i32, %c0_i32 : i32
    %c1_i32 = arith.constant 1 : i32
    %25 = arith.select %24, %c1_i32, %c9_i32 : i32
    %26 = vector.broadcast %25 : i32 to vector<72x1xi32>
    %27 = arith.remsi %23, %26 : vector<72x1xi32>
    %c0_i32_21 = arith.constant 0 : i32
    %28 = vector.broadcast %c0_i32_21 : i32 to vector<72x1xi32>
    %29 = arith.cmpi ne, %27, %28 : vector<72x1xi32>
    %c0_i32_22 = arith.constant 0 : i32
    %30 = vector.broadcast %c0_i32_22 : i32 to vector<72x1xi32>
    %31 = arith.cmpi slt, %27, %30 : vector<72x1xi32>
    %c0_i32_23 = arith.constant 0 : i32
    %32 = arith.cmpi slt, %25, %c0_i32_23 : i32
    %33 = vector.broadcast %32 : i1 to vector<72x1xi1>
    %34 = vector.broadcast %33 : vector<72x1xi1> to vector<72x1xi1>
    %35 = arith.xori %31, %34 : vector<72x1xi1>
    %36 = arith.andi %35, %29 : vector<72x1xi1>
    %37 = vector.broadcast %25 : i32 to vector<72x1xi32>
    %38 = arith.addi %27, %37 : vector<72x1xi32>
    %39 = arith.select %36, %38, %27 : vector<72x1xi1>, vector<72x1xi32>
    %c8_i32 = arith.constant 8 : i32
    %40 = vector.broadcast %c8_i32 : i32 to vector<72x1xi32>
    %41 = arith.cmpi ne, %39, %40 : vector<72x1xi32>
    %cst_24 = arith.constant 0.000000e+00 : f32
    %42 = vector.shape_cast %41 : vector<72x1xi1> to vector<72x1xi1>
    %43 = vector.broadcast %42 : vector<72x1xi1> to vector<72x128xi1>
    %44 = vector.broadcast %cst_24 : f32 to vector<72x128xf32>
    %45 = arith.select %43, %22, %44 : vector<72x128xi1>, vector<72x128xf32>
    %cst_25 = arith.constant dense<0.000000e+00> : vector<128xf32>
    %46 = vector.multi_reduction <add>, %45, %cst_25 [0] : vector<72x128xf32> to vector<128xf32>
    %47 = vector.shape_cast %46 : vector<128xf32> to vector<1x128xf32>
    %c0_26 = arith.constant 0 : index
    %c0_27 = arith.constant 0 : index
    %c0_28 = arith.constant 0 : index
    %48 = vector.load %arg4[%c0_26, %c0_27, %c0_28] : memref<1x1x128xf32, #tpu.memory_space<vmem>>, vector<1x1x128xf32>
    %49 = vector.shape_cast %48 : vector<1x1x128xf32> to vector<1x128xf32>
    %50 = vector.shape_cast %47 : vector<1x128xf32> to vector<1x1x128xf32>
    tpu.vector_store %arg4[%c0_26, %c0_27, %c0_28], %50 {strides = array<i32>} : memref<1x1x128xf32, #tpu.memory_space<vmem>>, vector<1x1x128xf32>,
    %51 = arith.mulf %45, %45 : vector<72x128xf32>
    %cst_29 = arith.constant dense<0.000000e+00> : vector<128xf32>
    %52 = vector.multi_reduction <add>, %51, %cst_29 [0] : vector<72x128xf32> to vector<128xf32>
    %53 = vector.shape_cast %52 : vector<128xf32> to vector<1x128xf32>
    %c0_30 = arith.constant 0 : index
    %c0_31 = arith.constant 0 : index
    %c0_32 = arith.constant 0 : index
    %54 = vector.load %arg5[%c0_30, %c0_31, %c0_32] : memref<1x1x128xf32, #tpu.memory_space<vmem>>, vector<1x1x128xf32>
    %55 = vector.shape_cast %54 : vector<1x1x128xf32> to vector<1x128xf32>
    %56 = vector.shape_cast %53 : vector<1x128xf32> to vector<1x1x128xf32>
    tpu.vector_store %arg5[%c0_30, %c0_31, %c0_32], %56 {strides = array<i32>} : memref<1x1x128xf32, #tpu.memory_space<vmem>>, vector<1x1x128xf32>,
    %57 = arith.truncf %22 : vector<72x128xf32> to vector<72x128xbf16>
    %c0_33 = arith.constant 0 : index
    %c0_34 = arith.constant 0 : index
    %c0_35 = arith.constant 0 : index
    %58 = vector.load %arg3[%c0_33, %c0_34, %c0_35] : memref<1x72x128xbf16, #tpu.memory_space<vmem>>, vector<1x72x128xbf16>
    %59 = vector.shape_cast %58 : vector<1x72x128xbf16> to vector<72x128xbf16>
    %60 = vector.shape_cast %57 : vector<72x128xbf16> to vector<1x72x128xbf16>
    tpu.vector_store %arg3[%c0_33, %c0_34, %c0_35], %60 {strides = array<i32>} : memref<1x72x128xbf16, #tpu.memory_space<vmem>>, vector<1x72x128xbf16>,
    return
  }
  func.func @transform_0(%arg0: i32) -> (i32, i32, i32) {
    %c0_i32 = arith.constant 0 : i32
    %c0_i32_0 = arith.constant 0 : i32
    %c0_i32_1 = arith.constant 0 : i32
    return %arg0, %c0_i32, %c0_i32_0 : i32, i32, i32
  }
  func.func @transform_1(%arg0: i32) -> (i32, i32, i32) {
    %c0_i32 = arith.constant 0 : i32
    %c0_i32_0 = arith.constant 0 : i32
    %c0_i32_1 = arith.constant 0 : i32
    %c0_i32_2 = arith.constant 0 : i32
    return %c0_i32, %c0_i32_0, %c0_i32_1 : i32, i32, i32
  }
  func.func @transform_2(%arg0: i32) -> (i32, i32, i32) {
    %c0_i32 = arith.constant 0 : i32
    %c0_i32_0 = arith.constant 0 : i32
    %c0_i32_1 = arith.constant 0 : i32
    return %arg0, %c0_i32, %c0_i32_0 : i32, i32, i32
  }
  func.func @transform_3(%arg0: i32) -> (i32, i32, i32) {
    %c0_i32 = arith.constant 0 : i32
    %c0_i32_0 = arith.constant 0 : i32
    %c0_i32_1 = arith.constant 0 : i32
    return %arg0, %c0_i32, %c0_i32_0 : i32, i32, i32
  }
  func.func @transform_4(%arg0: i32) -> (i32, i32, i32) {
    %c0_i32 = arith.constant 0 : i32
    %c0_i32_0 = arith.constant 0 : i32
    %c0_i32_1 = arith.constant 0 : i32
    return %arg0, %c0_i32, %c0_i32_0 : i32, i32, i32
  }
}

module attributes {stable_mosaic.version = 11 : i64} {
  func.func @_bn_act_kernel(%arg0: i32, %arg1: memref<144x128xbf16, #tpu.memory_space<vmem>>, %arg2: memref<1x128xf32, #tpu.memory_space<vmem>>, %arg3: memref<1x128xf32, #tpu.memory_space<vmem>>, %arg4: memref<144x128xbf16, #tpu.memory_space<vmem>>) attributes {dimension_semantics = [#tpu.dimension_semantics<parallel>], iteration_bounds = array<i64: 1>, scalar_prefetch = 0 : i64, scratch_operands = 0 : i64, tpu.core_type = #tpu.core_type<tc>, window_params = [{transform_indices = @transform_0, window_bounds = array<i64: 144, 128>}, {pipeline_mode = #tpu.pipeline_mode<synchronous>, transform_indices = @transform_1, window_bounds = array<i64: 1, 128>}, {pipeline_mode = #tpu.pipeline_mode<synchronous>, transform_indices = @transform_2, window_bounds = array<i64: 1, 128>}, {transform_indices = @transform_3, window_bounds = array<i64: 144, 128>}]} {
    %c0 = arith.constant 0 : index
    %c0_0 = arith.constant 0 : index
    %0 = vector.load %arg1[%c0, %c0_0] : memref<144x128xbf16, #tpu.memory_space<vmem>>, vector<144x128xbf16>
    %1 = arith.extf %0 : vector<144x128xbf16> to vector<144x128xf32>
    %c0_1 = arith.constant 0 : index
    %c0_2 = arith.constant 0 : index
    %2 = vector.load %arg2[%c0_1, %c0_2] : memref<1x128xf32, #tpu.memory_space<vmem>>, vector<1x128xf32>
    %3 = vector.broadcast %2 : vector<1x128xf32> to vector<144x128xf32>
    %4 = arith.mulf %1, %3 : vector<144x128xf32>
    %c0_3 = arith.constant 0 : index
    %c0_4 = arith.constant 0 : index
    %5 = vector.load %arg3[%c0_3, %c0_4] : memref<1x128xf32, #tpu.memory_space<vmem>>, vector<1x128xf32>
    %6 = vector.broadcast %5 : vector<1x128xf32> to vector<144x128xf32>
    %7 = arith.addf %4, %6 : vector<144x128xf32>
    %cst = arith.constant 0.000000e+00 : f32
    %8 = vector.broadcast %cst : f32 to vector<144x128xf32>
    %9 = arith.cmpf oge, %7, %8 : vector<144x128xf32>
    %cst_5 = arith.constant 2.000000e-01 : f32
    %10 = vector.broadcast %cst_5 : f32 to vector<144x128xf32>
    %11 = arith.mulf %10, %7 : vector<144x128xf32>
    %12 = arith.select %9, %7, %11 : vector<144x128xi1>, vector<144x128xf32>
    %13 = arith.truncf %12 : vector<144x128xf32> to vector<144x128xbf16>
    %c0_6 = arith.constant 0 : index
    %c0_7 = arith.constant 0 : index
    %14 = vector.load %arg4[%c0_6, %c0_7] : memref<144x128xbf16, #tpu.memory_space<vmem>>, vector<144x128xbf16>
    tpu.vector_store %arg4[%c0_6, %c0_7], %13 {strides = array<i32>} : memref<144x128xbf16, #tpu.memory_space<vmem>>, vector<144x128xbf16>,
    return
  }
  func.func @transform_0(%arg0: i32) -> (i32, i32) {
    %c0_i32 = arith.constant 0 : i32
    %c0_i32_0 = arith.constant 0 : i32
    return %arg0, %c0_i32 : i32, i32
  }
  func.func @transform_1(%arg0: i32) -> (i32, i32) {
    %c0_i32 = arith.constant 0 : i32
    %c0_i32_0 = arith.constant 0 : i32
    %c0_i32_1 = arith.constant 0 : i32
    return %c0_i32, %c0_i32_0 : i32, i32
  }
  func.func @transform_2(%arg0: i32) -> (i32, i32) {
    %c0_i32 = arith.constant 0 : i32
    %c0_i32_0 = arith.constant 0 : i32
    %c0_i32_1 = arith.constant 0 : i32
    return %c0_i32, %c0_i32_0 : i32, i32
  }
  func.func @transform_3(%arg0: i32) -> (i32, i32) {
    %c0_i32 = arith.constant 0 : i32
    %c0_i32_0 = arith.constant 0 : i32
    return %arg0, %c0_i32 : i32, i32
  }
}

module attributes {stable_mosaic.version = 11 : i64} {
  func.func @_fused_conv_kernel(%arg0: i32, %arg1: memref<1x33x512xbf16, #tpu.memory_space<vmem>>, %arg2: memref<4x512x256xbf16, #tpu.memory_space<vmem>>, %arg3: memref<1x20x256xbf16, #tpu.memory_space<vmem>>, %arg4: memref<1x1x256xf32, #tpu.memory_space<vmem>>, %arg5: memref<1x1x256xf32, #tpu.memory_space<vmem>>) attributes {dimension_semantics = [#tpu.dimension_semantics<parallel>], iteration_bounds = array<i64: 2>, scalar_prefetch = 0 : i64, scratch_operands = 0 : i64, tpu.core_type = #tpu.core_type<tc>, window_params = [{transform_indices = @transform_0, window_bounds = array<i64: 1, 33, 512>}, {pipeline_mode = #tpu.pipeline_mode<synchronous>, transform_indices = @transform_1, window_bounds = array<i64: 4, 512, 256>}, {transform_indices = @transform_2, window_bounds = array<i64: 1, 20, 256>}, {transform_indices = @transform_3, window_bounds = array<i64: 1, 1, 256>}, {transform_indices = @transform_4, window_bounds = array<i64: 1, 1, 256>}]} {
    %c0 = arith.constant 0 : index
    %c0_0 = arith.constant 0 : index
    %c0_1 = arith.constant 0 : index
    %0 = vector.load %arg1[%c0, %c0_0, %c0_1] : memref<1x33x512xbf16, #tpu.memory_space<vmem>>, vector<1x20x512xbf16>
    %1 = vector.shape_cast %0 : vector<1x20x512xbf16> to vector<20x512xbf16>
    %c0_2 = arith.constant 0 : index
    %c0_3 = arith.constant 0 : index
    %c0_4 = arith.constant 0 : index
    %2 = vector.load %arg2[%c0_2, %c0_3, %c0_4] : memref<4x512x256xbf16, #tpu.memory_space<vmem>>, vector<1x512x256xbf16>
    %3 = vector.shape_cast %2 : vector<1x512x256xbf16> to vector<512x256xbf16>
    %cst = arith.constant dense<0.000000e+00> : vector<20x256xf32>
    %4 = tpu.matmul %1, %3, %cst {dimension_numbers = #tpu.dot_dimension_numbers<[1], [0], [0], [1], [0, 0, 1, 1], [], []>} : vector<20x512xbf16>, vector<512x256xbf16>, vector<20x256xf32> -> vector<20x256xf32>
    %c0_5 = arith.constant 0 : index
    %c1 = arith.constant 1 : index
    %c0_6 = arith.constant 0 : index
    %5 = vector.load %arg1[%c0_5, %c1, %c0_6] : memref<1x33x512xbf16, #tpu.memory_space<vmem>>, vector<1x20x512xbf16>
    %6 = vector.shape_cast %5 : vector<1x20x512xbf16> to vector<20x512xbf16>
    %c1_7 = arith.constant 1 : index
    %c0_8 = arith.constant 0 : index
    %c0_9 = arith.constant 0 : index
    %7 = vector.load %arg2[%c1_7, %c0_8, %c0_9] : memref<4x512x256xbf16, #tpu.memory_space<vmem>>, vector<1x512x256xbf16>
    %8 = vector.shape_cast %7 : vector<1x512x256xbf16> to vector<512x256xbf16>
    %cst_10 = arith.constant dense<0.000000e+00> : vector<20x256xf32>
    %9 = tpu.matmul %6, %8, %cst_10 {dimension_numbers = #tpu.dot_dimension_numbers<[1], [0], [0], [1], [0, 0, 1, 1], [], []>} : vector<20x512xbf16>, vector<512x256xbf16>, vector<20x256xf32> -> vector<20x256xf32>
    %10 = arith.addf %4, %9 : vector<20x256xf32>
    %c0_11 = arith.constant 0 : index
    %c5 = arith.constant 5 : index
    %c0_12 = arith.constant 0 : index
    %11 = vector.load %arg1[%c0_11, %c5, %c0_12] : memref<1x33x512xbf16, #tpu.memory_space<vmem>>, vector<1x20x512xbf16>
    %12 = vector.shape_cast %11 : vector<1x20x512xbf16> to vector<20x512xbf16>
    %c2 = arith.constant 2 : index
    %c0_13 = arith.constant 0 : index
    %c0_14 = arith.constant 0 : index
    %13 = vector.load %arg2[%c2, %c0_13, %c0_14] : memref<4x512x256xbf16, #tpu.memory_space<vmem>>, vector<1x512x256xbf16>
    %14 = vector.shape_cast %13 : vector<1x512x256xbf16> to vector<512x256xbf16>
    %cst_15 = arith.constant dense<0.000000e+00> : vector<20x256xf32>
    %15 = tpu.matmul %12, %14, %cst_15 {dimension_numbers = #tpu.dot_dimension_numbers<[1], [0], [0], [1], [0, 0, 1, 1], [], []>} : vector<20x512xbf16>, vector<512x256xbf16>, vector<20x256xf32> -> vector<20x256xf32>
    %16 = arith.addf %10, %15 : vector<20x256xf32>
    %c0_16 = arith.constant 0 : index
    %c6 = arith.constant 6 : index
    %c0_17 = arith.constant 0 : index
    %17 = vector.load %arg1[%c0_16, %c6, %c0_17] : memref<1x33x512xbf16, #tpu.memory_space<vmem>>, vector<1x20x512xbf16>
    %18 = vector.shape_cast %17 : vector<1x20x512xbf16> to vector<20x512xbf16>
    %c3 = arith.constant 3 : index
    %c0_18 = arith.constant 0 : index
    %c0_19 = arith.constant 0 : index
    %19 = vector.load %arg2[%c3, %c0_18, %c0_19] : memref<4x512x256xbf16, #tpu.memory_space<vmem>>, vector<1x512x256xbf16>
    %20 = vector.shape_cast %19 : vector<1x512x256xbf16> to vector<512x256xbf16>
    %cst_20 = arith.constant dense<0.000000e+00> : vector<20x256xf32>
    %21 = tpu.matmul %18, %20, %cst_20 {dimension_numbers = #tpu.dot_dimension_numbers<[1], [0], [0], [1], [0, 0, 1, 1], [], []>} : vector<20x512xbf16>, vector<512x256xbf16>, vector<20x256xf32> -> vector<20x256xf32>
    %22 = arith.addf %16, %21 : vector<20x256xf32>
    %23 = tpu.iota {dimensions = array<i32: 0>} : vector<20x1xi32>
    %c5_i32 = arith.constant 5 : i32
    %c0_i32 = arith.constant 0 : i32
    %24 = arith.cmpi eq, %c5_i32, %c0_i32 : i32
    %c1_i32 = arith.constant 1 : i32
    %25 = arith.select %24, %c1_i32, %c5_i32 : i32
    %26 = vector.broadcast %25 : i32 to vector<20x1xi32>
    %27 = arith.remsi %23, %26 : vector<20x1xi32>
    %c0_i32_21 = arith.constant 0 : i32
    %28 = vector.broadcast %c0_i32_21 : i32 to vector<20x1xi32>
    %29 = arith.cmpi ne, %27, %28 : vector<20x1xi32>
    %c0_i32_22 = arith.constant 0 : i32
    %30 = vector.broadcast %c0_i32_22 : i32 to vector<20x1xi32>
    %31 = arith.cmpi slt, %27, %30 : vector<20x1xi32>
    %c0_i32_23 = arith.constant 0 : i32
    %32 = arith.cmpi slt, %25, %c0_i32_23 : i32
    %33 = vector.broadcast %32 : i1 to vector<20x1xi1>
    %34 = vector.broadcast %33 : vector<20x1xi1> to vector<20x1xi1>
    %35 = arith.xori %31, %34 : vector<20x1xi1>
    %36 = arith.andi %35, %29 : vector<20x1xi1>
    %37 = vector.broadcast %25 : i32 to vector<20x1xi32>
    %38 = arith.addi %27, %37 : vector<20x1xi32>
    %39 = arith.select %36, %38, %27 : vector<20x1xi1>, vector<20x1xi32>
    %c4_i32 = arith.constant 4 : i32
    %40 = vector.broadcast %c4_i32 : i32 to vector<20x1xi32>
    %41 = arith.cmpi ne, %39, %40 : vector<20x1xi32>
    %cst_24 = arith.constant 0.000000e+00 : f32
    %42 = vector.shape_cast %41 : vector<20x1xi1> to vector<20x1xi1>
    %43 = vector.broadcast %42 : vector<20x1xi1> to vector<20x256xi1>
    %44 = vector.broadcast %cst_24 : f32 to vector<20x256xf32>
    %45 = arith.select %43, %22, %44 : vector<20x256xi1>, vector<20x256xf32>
    %cst_25 = arith.constant dense<0.000000e+00> : vector<256xf32>
    %46 = vector.multi_reduction <add>, %45, %cst_25 [0] : vector<20x256xf32> to vector<256xf32>
    %47 = vector.shape_cast %46 : vector<256xf32> to vector<1x256xf32>
    %c0_26 = arith.constant 0 : index
    %c0_27 = arith.constant 0 : index
    %c0_28 = arith.constant 0 : index
    %48 = vector.load %arg4[%c0_26, %c0_27, %c0_28] : memref<1x1x256xf32, #tpu.memory_space<vmem>>, vector<1x1x256xf32>
    %49 = vector.shape_cast %48 : vector<1x1x256xf32> to vector<1x256xf32>
    %50 = vector.shape_cast %47 : vector<1x256xf32> to vector<1x1x256xf32>
    tpu.vector_store %arg4[%c0_26, %c0_27, %c0_28], %50 {strides = array<i32>} : memref<1x1x256xf32, #tpu.memory_space<vmem>>, vector<1x1x256xf32>,
    %51 = arith.mulf %45, %45 : vector<20x256xf32>
    %cst_29 = arith.constant dense<0.000000e+00> : vector<256xf32>
    %52 = vector.multi_reduction <add>, %51, %cst_29 [0] : vector<20x256xf32> to vector<256xf32>
    %53 = vector.shape_cast %52 : vector<256xf32> to vector<1x256xf32>
    %c0_30 = arith.constant 0 : index
    %c0_31 = arith.constant 0 : index
    %c0_32 = arith.constant 0 : index
    %54 = vector.load %arg5[%c0_30, %c0_31, %c0_32] : memref<1x1x256xf32, #tpu.memory_space<vmem>>, vector<1x1x256xf32>
    %55 = vector.shape_cast %54 : vector<1x1x256xf32> to vector<1x256xf32>
    %56 = vector.shape_cast %53 : vector<1x256xf32> to vector<1x1x256xf32>
    tpu.vector_store %arg5[%c0_30, %c0_31, %c0_32], %56 {strides = array<i32>} : memref<1x1x256xf32, #tpu.memory_space<vmem>>, vector<1x1x256xf32>,
    %57 = arith.truncf %22 : vector<20x256xf32> to vector<20x256xbf16>
    %c0_33 = arith.constant 0 : index
    %c0_34 = arith.constant 0 : index
    %c0_35 = arith.constant 0 : index
    %58 = vector.load %arg3[%c0_33, %c0_34, %c0_35] : memref<1x20x256xbf16, #tpu.memory_space<vmem>>, vector<1x20x256xbf16>
    %59 = vector.shape_cast %58 : vector<1x20x256xbf16> to vector<20x256xbf16>
    %60 = vector.shape_cast %57 : vector<20x256xbf16> to vector<1x20x256xbf16>
    tpu.vector_store %arg3[%c0_33, %c0_34, %c0_35], %60 {strides = array<i32>} : memref<1x20x256xbf16, #tpu.memory_space<vmem>>, vector<1x20x256xbf16>,
    return
  }
  func.func @transform_0(%arg0: i32) -> (i32, i32, i32) {
    %c0_i32 = arith.constant 0 : i32
    %c0_i32_0 = arith.constant 0 : i32
    %c0_i32_1 = arith.constant 0 : i32
    return %arg0, %c0_i32, %c0_i32_0 : i32, i32, i32
  }
  func.func @transform_1(%arg0: i32) -> (i32, i32, i32) {
    %c0_i32 = arith.constant 0 : i32
    %c0_i32_0 = arith.constant 0 : i32
    %c0_i32_1 = arith.constant 0 : i32
    %c0_i32_2 = arith.constant 0 : i32
    return %c0_i32, %c0_i32_0, %c0_i32_1 : i32, i32, i32
  }
  func.func @transform_2(%arg0: i32) -> (i32, i32, i32) {
    %c0_i32 = arith.constant 0 : i32
    %c0_i32_0 = arith.constant 0 : i32
    %c0_i32_1 = arith.constant 0 : i32
    return %arg0, %c0_i32, %c0_i32_0 : i32, i32, i32
  }
  func.func @transform_3(%arg0: i32) -> (i32, i32, i32) {
    %c0_i32 = arith.constant 0 : i32
    %c0_i32_0 = arith.constant 0 : i32
    %c0_i32_1 = arith.constant 0 : i32
    return %arg0, %c0_i32, %c0_i32_0 : i32, i32, i32
  }
  func.func @transform_4(%arg0: i32) -> (i32, i32, i32) {
    %c0_i32 = arith.constant 0 : i32
    %c0_i32_0 = arith.constant 0 : i32
    %c0_i32_1 = arith.constant 0 : i32
    return %arg0, %c0_i32, %c0_i32_0 : i32, i32, i32
  }
}

module attributes {stable_mosaic.version = 11 : i64} {
  func.func @_bn_act_kernel(%arg0: i32, %arg1: memref<40x256xbf16, #tpu.memory_space<vmem>>, %arg2: memref<1x256xf32, #tpu.memory_space<vmem>>, %arg3: memref<1x256xf32, #tpu.memory_space<vmem>>, %arg4: memref<40x256xbf16, #tpu.memory_space<vmem>>) attributes {dimension_semantics = [#tpu.dimension_semantics<parallel>], iteration_bounds = array<i64: 1>, scalar_prefetch = 0 : i64, scratch_operands = 0 : i64, tpu.core_type = #tpu.core_type<tc>, window_params = [{transform_indices = @transform_0, window_bounds = array<i64: 40, 256>}, {pipeline_mode = #tpu.pipeline_mode<synchronous>, transform_indices = @transform_1, window_bounds = array<i64: 1, 256>}, {pipeline_mode = #tpu.pipeline_mode<synchronous>, transform_indices = @transform_2, window_bounds = array<i64: 1, 256>}, {transform_indices = @transform_3, window_bounds = array<i64: 40, 256>}]} {
    %c0 = arith.constant 0 : index
    %c0_0 = arith.constant 0 : index
    %0 = vector.load %arg1[%c0, %c0_0] : memref<40x256xbf16, #tpu.memory_space<vmem>>, vector<40x256xbf16>
    %1 = arith.extf %0 : vector<40x256xbf16> to vector<40x256xf32>
    %c0_1 = arith.constant 0 : index
    %c0_2 = arith.constant 0 : index
    %2 = vector.load %arg2[%c0_1, %c0_2] : memref<1x256xf32, #tpu.memory_space<vmem>>, vector<1x256xf32>
    %3 = vector.broadcast %2 : vector<1x256xf32> to vector<40x256xf32>
    %4 = arith.mulf %1, %3 : vector<40x256xf32>
    %c0_3 = arith.constant 0 : index
    %c0_4 = arith.constant 0 : index
    %5 = vector.load %arg3[%c0_3, %c0_4] : memref<1x256xf32, #tpu.memory_space<vmem>>, vector<1x256xf32>
    %6 = vector.broadcast %5 : vector<1x256xf32> to vector<40x256xf32>
    %7 = arith.addf %4, %6 : vector<40x256xf32>
    %cst = arith.constant 0.000000e+00 : f32
    %8 = vector.broadcast %cst : f32 to vector<40x256xf32>
    %9 = arith.cmpf oge, %7, %8 : vector<40x256xf32>
    %cst_5 = arith.constant 2.000000e-01 : f32
    %10 = vector.broadcast %cst_5 : f32 to vector<40x256xf32>
    %11 = arith.mulf %10, %7 : vector<40x256xf32>
    %12 = arith.select %9, %7, %11 : vector<40x256xi1>, vector<40x256xf32>
    %13 = arith.truncf %12 : vector<40x256xf32> to vector<40x256xbf16>
    %c0_6 = arith.constant 0 : index
    %c0_7 = arith.constant 0 : index
    %14 = vector.load %arg4[%c0_6, %c0_7] : memref<40x256xbf16, #tpu.memory_space<vmem>>, vector<40x256xbf16>
    tpu.vector_store %arg4[%c0_6, %c0_7], %13 {strides = array<i32>} : memref<40x256xbf16, #tpu.memory_space<vmem>>, vector<40x256xbf16>,
    return
  }
  func.func @transform_0(%arg0: i32) -> (i32, i32) {
    %c0_i32 = arith.constant 0 : i32
    %c0_i32_0 = arith.constant 0 : i32
    return %arg0, %c0_i32 : i32, i32
  }
  func.func @transform_1(%arg0: i32) -> (i32, i32) {
    %c0_i32 = arith.constant 0 : i32
    %c0_i32_0 = arith.constant 0 : i32
    %c0_i32_1 = arith.constant 0 : i32
    return %c0_i32, %c0_i32_0 : i32, i32
  }
  func.func @transform_2(%arg0: i32) -> (i32, i32) {
    %c0_i32 = arith.constant 0 : i32
    %c0_i32_0 = arith.constant 0 : i32
    %c0_i32_1 = arith.constant 0 : i32
    return %c0_i32, %c0_i32_0 : i32, i32
  }
  func.func @transform_3(%arg0: i32) -> (i32, i32) {
    %c0_i32 = arith.constant 0 : i32
    %c0_i32_0 = arith.constant 0 : i32
    return %arg0, %c0_i32 : i32, i32
  }
}

</mosaic_0001>

<llo_original>
// kernel: discriminator_sec_forward.5
$region0: #{discriminator_sec_forward.5}
  #allocation0 [shape = 'u32[]', space=smem, size = 0x4, offset = 0x4, fixed_abs, tag = 'smem constant byte address 0x4 - core index']
  #allocation1 [shape = 'u32[144,128]{1,0:T(1,128)}', space=vmem, size = 0x12000, scoped, tag = 'internal scratch']
  %s0 = inlined_call_operand.vmem [shape: bf16[2,297,12], index: 0, kind: input, shape index: {}]
  %s1 = inlined_call_operand.vmem [shape: bf16[4,12,64], index: 1, kind: input, shape index: {}]
  %s2 = inlined_call_operand.vmem [shape: bf16[2,272,64], index: 2, kind: output, shape index: {}]
  %s3 = sld [smem:[#allocation0]]
  $region41: #{discriminator_sec_forward.5} parent=0
    _
  %s5 = ssub.s32 1, %s3
  %s6 = scalar_select 0, %s5, %s3
  loop: start=0, step=1, limit=4
  $region2: #{discriminator_sec_forward.5} parent=0 // loop_pre_header
    _
  $region3: #{discriminator_sec_forward.5} parent=0 // loop_header
    %s8 = sphi 0, %s12
    %p9 = scmp.ge.s32.totalorder %s8, 4
    %s18 = sphi 0, %s20
    %s21 = sphi 0, %s18
    %s22 = sphi 0, %s21
    %s38 = sphi 0, %s22
    %s42 = sphi 0, %s42
    %s44 = sphi 0, %s42
    %s45 = sphi 0, %s44
    %s59 = sphi 0, %s45
    %s65 = sphi 0, %s67
    %s68 = sphi 0, %s65
    %s69 = sphi 0, %s68
    %s85 = sphi 0, %s69
  $region4: #{discriminator_sec_forward.5} parent=0 // loop_header_branch
    %11 = sbr.rel (%p9) target = $region8
  $region5: #{discriminator_sec_forward.5} parent=0 // loop_body
    %s13 = ssub.s32 %s8, 1
    %s14 = ssub.s32 %s8, 2
    %s15 = sadd.s32 %s8, 1
    %s16 = ssub.s32 %s8, %s15
    %p17 = scmp.eq.s32.totalorder %s16, 0
    %s19 = sadd.s32 %s18, 1
    %s20 = scalar_select %p17, %s18, %s19
    %p23 = pneg %p17
    %p24 = scmp.eq.s32.totalorder %s8, 1
    %p25 = por %p23, %p24
    %p26 = scmp.ne.s32.totalorder %s18, %s21
    %p27 = scmp.eq.s32.totalorder %s8, 0
    %p28 = por %p26, %p27
    %p29 = scmp.ne.s32.totalorder %s18, %s21
    %p30 = scmp.eq.s32.totalorder %s13, 1
    %p31 = por %p29, %p30
    %p32 = scmp.ne.s32.totalorder %s21, %s22
    %p33 = scmp.eq.s32.totalorder %s13, 0
    %p34 = por %p32, %p33
    %p35 = scmp.ne.s32.totalorder %s21, %s22
    %p36 = scmp.eq.s32.totalorder %s14, 1
    %p37 = por %p35, %p36
    %p39 = scmp.ne.s32.totalorder %s22, %s38
    %p40 = scmp.eq.s32.totalorder %s14, 0
    %p41 = por %p39, %p40
    %s43 = sadd.s32 %s42, 1
    %p46 = scmp.eq.s32.totalorder %s8, 1
    %p47 = scmp.ne.s32.totalorder %s42, %s44
    %p48 = scmp.eq.s32.totalorder %s8, 0
    %p49 = por %p47, %p48
    %p50 = scmp.ne.s32.totalorder %s42, %s44
    %p51 = scmp.eq.s32.totalorder %s13, 1
    %p52 = por %p50, %p51
    %p53 = scmp.ne.s32.totalorder %s44, %s45
    %p54 = scmp.eq.s32.totalorder %s13, 0
    %p55 = por %p53, %p54
    %p56 = scmp.ne.s32.totalorder %s44, %s45
    %p57 = scmp.eq.s32.totalorder %s14, 1
    %p58 = por %p56, %p57
    %p60 = scmp.ne.s32.totalorder %s45, %s59
    %p61 = scmp.eq.s32.totalorder %s14, 0
    %p62 = por %p60, %p61
    %s63 = ssub.s32 %s8, %s15
    %p64 = scmp.eq.s32.totalorder %s63, 0
    %s66 = sadd.s32 %s65, 1
    %s67 = scalar_select %p64, %s65, %s66
    %p70 = pneg %p64
    %p71 = scmp.eq.s32.totalorder %s8, 1
    %p72 = por %p70, %p71
    %p73 = scmp.ne.s32.totalorder %s65, %s68
    %p74 = scmp.eq.s32.totalorder %s8, 0
    %p75 = por %p73, %p74
    %p76 = scmp.ne.s32.totalorder %s65, %s68
    %p77 = scmp.eq.s32.totalorder %s13, 1
    %p78 = por %p76, %p77
    %p79 = scmp.ne.s32.totalorder %s68, %s69
    %p80 = scmp.eq.s32.totalorder %s13, 0
    %p81 = por %p79, %p80
    %p82 = scmp.ne.s32.totalorder %s68, %s69
    %p83 = scmp.eq.s32.totalorder %s14, 1
    %p84 = por %p82, %p83
    %p86 = scmp.ne.s32.totalorder %s69, %s85
    %p87 = scmp.eq.s32.totalorder %s14, 0
    %p88 = por %p86, %p87
    %p89 = scmp.le.s32.totalorder 1, %s8
    %p90 = scmp.lt.s32.totalorder %s8, 3
    %p91 = pnand %p89, %p90
    %p92 = pneg %p91
    // Predicated region
    $region9: #{discriminator_sec_forward.5} parent=5 // pred_check
      _
    $region10: #{discriminator_sec_forward.5} parent=5 // pred_check_branch
      %94 = sbr.rel (%p91) target = $region12
    $region11: #{discriminator_sec_forward.5} parent=5 // pred_region
      %s95 = ssub.s32 %s8, 1
      // Predicated region
      $region13: #{discriminator_sec_forward.5} parent=11 // pred_check
        %p96 = pneg %p55
      $region14: #{discriminator_sec_forward.5} parent=11 // pred_check_branch
        %98 = sbr.rel (%p96) target = $region16
      $region15: #{discriminator_sec_forward.5} parent=11 // pred_region
        _
      $region16: #{discriminator_sec_forward.5} parent=11 // pred_fallthru
        _
    $region12: #{discriminator_sec_forward.5} parent=5 // pred_fallthru
      _
    %p99 = scmp.lt.s32.totalorder %s8, 2
    // Predicated region
    $region17: #{discriminator_sec_forward.5} parent=5 // pred_check
      %p100 = pneg %p99
    $region18: #{discriminator_sec_forward.5} parent=5 // pred_check_branch
      %102 = sbr.rel (%p100) target = $region20
    $region19: #{discriminator_sec_forward.5} parent=5 // pred_region
      // Predicated region
      $region21: #{discriminator_sec_forward.5} parent=19 // pred_check
        %p103 = pneg %p28
      $region22: #{discriminator_sec_forward.5} parent=19 // pred_check_branch
        %105 = sbr.rel (%p103) target = $region24
      $region23: #{discriminator_sec_forward.5} parent=19 // pred_region
        %p106 = scmp.lt.s32.totalorder %s8, 1
        %s107 = scalar_select %p106, %s8, 1
        %s108 = smul.addr %s107, 38
        %s109 = smul.addr %s108, 4
        %s110 = scalar_lea.vmem %s0, %s109
      $region24: #{discriminator_sec_forward.5} parent=19 // pred_fallthru
        _
    $region20: #{discriminator_sec_forward.5} parent=5 // pred_fallthru
      _
    %p111 = scmp.le.s32.totalorder 1, %s8
    %p112 = scmp.lt.s32.totalorder %s8, 3
    %p113 = pnand %p111, %p112
    %p114 = pneg %p113
    // Predicated region
    $region25: #{discriminator_sec_forward.5} parent=5 // pred_check
      _
    $region26: #{discriminator_sec_forward.5} parent=5 // pred_check_branch
      %116 = sbr.rel (%p113) target = $region28
    $region27: #{discriminator_sec_forward.5} parent=5 // pred_region
      %s117 = ssub.s32 %s8, 1
      %p118 = scmp.lt.s32.totalorder %s13, 1
      %s119 = scalar_select %p118, %s13, 1
      %s120 = smul.addr %s119, 38
      %s121 = smul.addr %s120, 4
      %s122 = scalar_lea.vmem %s0, %s121
      %p123 = pneg %p34
      %p124 = pneg %p31
      %p125 = pneg %p55
      %p126 = pneg %p52
      %p127 = pneg %p81
      %p128 = pneg %p78
      %p129 = scmp.lt.s32.totalorder %s13, 1
      %s130 = scalar_select %p129, %s13, 1
      %s131 = smul.addr %s130, 34
      %s132 = smul.addr %s131, 4
      %s133 = scalar_lea.vmem %s2, %s132
      %p134 = scmp.lt.s32.totalorder %s13, 1
      %s135 = scalar_select %p134, %s13, 1
      %s136 = smul.addr %s135, 38
      %s137 = smul.addr %s136, 4
      %s138 = scalar_lea.vmem %s0, %s137
      %p139 = scmp.lt.s32.totalorder %s13, 1
      %s140 = scalar_select %p139, %s13, 1
      %s141 = smul.addr %s140, 34
      %s142 = smul.addr %s141, 4
      %s143 = scalar_lea.vmem %s2, %s142
      %v145 = vld [vmem:[%s138] sm:$0xf]
      %v146 = vld [vmem:[%s138 + $0x4] sm:$0xf]
      %v147 = vld [vmem:[%s138 + $0x8] sm:$0xf]
      %v148 = vld [vmem:[%s138 + $0xc] sm:$0xf]
      %v149 = vld [vmem:[%s138 + $0x10] sm:$0xf]
      %v150 = vld [vmem:[%s138 + $0x14] sm:$0xf]
      %v151 = vld [vmem:[%s138 + $0x18] sm:$0xf]
      %v152 = vld [vmem:[%s138 + $0x1c] sm:$0xf]
      %v153 = vld [vmem:[%s138 + $0x20] sm:$0xf]
      %v154 = vld [vmem:[%s138 + $0x24] sm:$0xf]
      %v155 = vld [vmem:[%s138 + $0x28] sm:$0xf]
      %v156 = vld [vmem:[%s138 + $0x2c] sm:$0xf]
      %v157 = vld [vmem:[%s138 + $0x30] sm:$0xf]
      %v158 = vld [vmem:[%s138 + $0x34] sm:$0xf]
      %v159 = vld [vmem:[%s138 + $0x38] sm:$0xf]
      %v160 = vld [vmem:[%s138 + $0x3c] sm:$0xf]
      %v161 = vld [vmem:[%s138 + $0x40] sm:$0xf]
      %v162 = vld [vmem:[%s138 + $0x44] sm:$0xf]
      %v163 = vld [vmem:[%s138 + $0x48] sm:$0xf]
      %v164 = vld [vmem:[%s138 + $0x4c] sm:$0xf]
      %v165 = vld [vmem:[%s138 + $0x50] sm:$0xf]
      %v166 = vld [vmem:[%s138 + $0x54] sm:$0xf]
      %v167 = vld [vmem:[%s138 + $0x58] sm:$0xf]
      %v168 = vld [vmem:[%s138 + $0x5c] sm:$0xf]
      %v169 = vld [vmem:[%s138 + $0x60] sm:$0xf]
      %v170 = vld [vmem:[%s138 + $0x64] sm:$0xf]
      %v171 = vld [vmem:[%s138 + $0x68] sm:$0xf]
      %v172 = vld [vmem:[%s138 + $0x6c] sm:$0xf]
      %v173 = vld [vmem:[%s138 + $0x70] sm:$0xf]
      %v174 = vld [vmem:[%s138 + $0x74] sm:$0xf]
      %v175 = vld [vmem:[%s138 + $0x78] sm:$0xf]
      %v176 = vld [vmem:[%s138 + $0x7c] sm:$0xf]
      %v177 = vld [vmem:[%s138 + $0x80] sm:$0xf]
      %v178 = vld [vmem:[%s138 + $0x84] sm:$0xf]
      %v179 = vld [vmem:[%s1] sm:$0xf]
      %v180 = vld [vmem:[%s1 + $0x4] sm:$0x3]
      %v181 = vld [vmem:[%s138 + $0x88] sm:$0x1]
      %s182 = scalar_lea.vmem %s1, 8
      %v183 = vld [vmem:[%s182] sm:$0xf]
      %v184 = vld [vmem:[%s182 + $0x4] sm:$0x3]
      %v220 = vunpack.c.l.b16 %v145
      %v221 = vunpack.c.l.b16 %v146
      %v222 = vunpack.c.l.b16 %v147
      %v223 = vunpack.c.l.b16 %v148
      %v224 = vunpack.c.l.b16 %v149
      %v225 = vunpack.c.l.b16 %v150
      %v226 = vunpack.c.l.b16 %v151
      %v227 = vunpack.c.l.b16 %v152
      %v228 = vunpack.c.l.b16 %v153
      %v229 = vunpack.c.l.b16 %v154
      %v230 = vunpack.c.l.b16 %v155
      %v231 = vunpack.c.l.b16 %v156
      %v232 = vunpack.c.l.b16 %v157
      %v233 = vunpack.c.l.b16 %v158
      %v234 = vunpack.c.l.b16 %v159
      %v235 = vunpack.c.l.b16 %v160
      %v236 = vunpack.c.l.b16 %v161
      %v237 = vunpack.c.l.b16 %v162
      %v238 = vunpack.c.l.b16 %v163
      %v239 = vunpack.c.l.b16 %v164
      %v240 = vunpack.c.l.b16 %v165
      %v241 = vunpack.c.l.b16 %v166
      %v242 = vunpack.c.l.b16 %v167
      %v243 = vunpack.c.l.b16 %v168
      %v244 = vunpack.c.l.b16 %v169
      %v245 = vunpack.c.l.b16 %v170
      %v246 = vunpack.c.l.b16 %v171
      %v247 = vunpack.c.l.b16 %v172
      %v248 = vunpack.c.l.b16 %v173
      %v249 = vunpack.c.l.b16 %v174
      %v250 = vunpack.c.l.b16 %v175
      %v251 = vunpack.c.l.b16 %v176
      %v252 = vunpack.c.l.b16 %v177
      %v253 = vunpack.c.l.b16 %v178
      %v254 = vunpack.c.l.b16 %v181
      %v255 = vpack.c.b16 %v221, %v220
      %v256 = vpack.c.b16 %v223, %v222
      %v257 = vpack.c.b16 %v225, %v224
      %v258 = vpack.c.b16 %v227, %v226
      %v259 = vpack.c.b16 %v229, %v228
      %v260 = vpack.c.b16 %v231, %v230
      %v261 = vpack.c.b16 %v233, %v232
      %v262 = vpack.c.b16 %v235, %v234
      %v263 = vpack.c.b16 %v237, %v236
      %v264 = vpack.c.b16 %v239, %v238
      %v265 = vpack.c.b16 %v241, %v240
      %v266 = vpack.c.b16 %v243, %v242
      %v267 = vpack.c.b16 %v245, %v244
      %v268 = vpack.c.b16 %v247, %v246
      %v269 = vpack.c.b16 %v249, %v248
      %v270 = vpack.c.b16 %v251, %v250
      %v271 = vpack.c.b16 %v253, %v252
      %v272 = vpack.c.b16 %v254, %v254
      %vm273 = vsmask.f32 7424
      %v275 = vshrl.u32 %v255, 16
      %v277 = vshll.u32 %v255, 16
      %v279 = vrot.slane %v277, 1
      %v280 = vor.u32 %v275, %v279
      %v282 = vshll.u32 %v256, 16
      %v284 = vrot.slane %v282, 1
      %v285 = vsel %vm273, %v280, %v284
      %v286 = vshrl.u32 %v256, 16
      %v288 = vor.u32 %v286, %v284
      %v290 = vshll.u32 %v257, 16
      %v292 = vrot.slane %v290, 1
      %v293 = vsel %vm273, %v288, %v292
      %v294 = vshrl.u32 %v257, 16
      %v296 = vor.u32 %v294, %v292
      %v298 = vshll.u32 %v258, 16
      %v300 = vrot.slane %v298, 1
      %v301 = vsel %vm273, %v296, %v300
      %v302 = vshrl.u32 %v258, 16
      %v304 = vor.u32 %v302, %v300
      %v306 = vshll.u32 %v259, 16
      %v308 = vrot.slane %v306, 1
      %v309 = vsel %vm273, %v304, %v308
      %v310 = vshrl.u32 %v259, 16
      %v312 = vor.u32 %v310, %v308
      %v314 = vshll.u32 %v260, 16
      %v316 = vrot.slane %v314, 1
      %v317 = vsel %vm273, %v312, %v316
      %v318 = vshrl.u32 %v260, 16
      %v320 = vor.u32 %v318, %v316
      %v322 = vshll.u32 %v261, 16
      %v324 = vrot.slane %v322, 1
      %v325 = vsel %vm273, %v320, %v324
      %v326 = vshrl.u32 %v261, 16
      %v328 = vor.u32 %v326, %v324
      %v330 = vshll.u32 %v262, 16
      %v332 = vrot.slane %v330, 1
      %v333 = vsel %vm273, %v328, %v332
      %v334 = vshrl.u32 %v262, 16
      %v336 = vor.u32 %v334, %v332
      %v338 = vshll.u32 %v263, 16
      %v340 = vrot.slane %v338, 1
      %v341 = vsel %vm273, %v336, %v340
      %v342 = vshrl.u32 %v263, 16
      %v344 = vor.u32 %v342, %v340
      %v346 = vshll.u32 %v264, 16
      %v348 = vrot.slane %v346, 1
      %v349 = vsel %vm273, %v344, %v348
      %v350 = vshrl.u32 %v264, 16
      %v352 = vor.u32 %v350, %v348
      %v354 = vshll.u32 %v265, 16
      %v356 = vrot.slane %v354, 1
      %v357 = vsel %vm273, %v352, %v356
      %v358 = vshrl.u32 %v265, 16
      %v360 = vor.u32 %v358, %v356
      %v362 = vshll.u32 %v266, 16
      %v364 = vrot.slane %v362, 1
      %v365 = vsel %vm273, %v360, %v364
      %v366 = vshrl.u32 %v266, 16
      %v368 = vor.u32 %v366, %v364
      %v370 = vshll.u32 %v267, 16
      %v372 = vrot.slane %v370, 1
      %v373 = vsel %vm273, %v368, %v372
      %v374 = vshrl.u32 %v267, 16
      %v376 = vor.u32 %v374, %v372
      %v378 = vshll.u32 %v268, 16
      %v380 = vrot.slane %v378, 1
      %v381 = vsel %vm273, %v376, %v380
      %v382 = vshrl.u32 %v268, 16
      %v384 = vor.u32 %v382, %v380
      %v386 = vshll.u32 %v269, 16
      %v388 = vrot.slane %v386, 1
      %v389 = vsel %vm273, %v384, %v388
      %v390 = vshrl.u32 %v269, 16
      %v392 = vor.u32 %v390, %v388
      %v394 = vshll.u32 %v270, 16
      %v396 = vrot.slane %v394, 1
      %v397 = vsel %vm273, %v392, %v396
      %v398 = vshrl.u32 %v270, 16
      %v400 = vor.u32 %v398, %v396
      %v402 = vshll.u32 %v271, 16
      %v404 = vrot.slane %v402, 1
      %v405 = vsel %vm273, %v400, %v404
      %v406 = vshrl.u32 %v271, 16
      %v408 = vor.u32 %v406, %v404
      %v410 = vshll.u32 %v272, 16
      %v412 = vrot.slane %v410, 1
      %v413 = vsel %vm273, %v408, %v412
      %v416 = vunpack.c.l.b16 %v183
      %v417 = vunpack.c.l.b16 %v184
      %v418 = vpack.c.b16 %v417, %v416
      %vm419 = vcmask 97280
      %v421 = vsel %vm419, %v285, 0
      %v424 = vsel %vm419, %v293, 0
      %v427 = vsel %vm419, %v301, 0
      %v430 = vsel %vm419, %v309, 0
      %v433 = vsel %vm419, %v317, 0
      %v436 = vsel %vm419, %v325, 0
      %v439 = vsel %vm419, %v333, 0
      %v442 = vsel %vm419, %v341, 0
      %v445 = vsel %vm419, %v349, 0
      %v448 = vsel %vm419, %v357, 0
      %v451 = vsel %vm419, %v365, 0
      %v454 = vsel %vm419, %v373, 0
      %v457 = vsel %vm419, %v381, 0
      %v460 = vsel %vm419, %v389, 0
      %v463 = vsel %vm419, %v397, 0
      %v466 = vsel %vm419, %v405, 0
      %v469 = vsel %vm419, %v413, 0
      %vm471 = vcmask 1045504
      %v473 = vsel %vm471, %v418, 0
      %475 = vmatprep.subr.bf16.mxu0 0
      %476 = vmatpush1.bf16.msra.mxu0 %v473
      %477 = vmatprep.subr.bf16.mxu0 0
      %478 = vmatpush1.bf16.msra.mxu0 0
      %479 = vmatprep.subr.bf16.mxu0 0
      %480 = vmatpush1.bf16.msra.mxu0 0
      %481 = vmatprep.subr.bf16.mxu0 0
      %482 = vmatpush1.bf16.msra.mxu0 0
      %483 = vmatprep.subr.bf16.mxu0 0
      %484 = vmatpush1.bf16.msra.mxu0 0
      %485 = vmatprep.subr.bf16.mxu0 0
      %486 = vmatpush1.bf16.msra.mxu0 0
      %487 = vmatprep.subr.bf16.mxu0 0
      %488 = vmatpush1.bf16.msra.mxu0 0
      %489 = vmatprep.subr.bf16.mxu0 0
      %490 = vmatpush1.bf16.msra.mxu0 0
      %491 = vmatprep.subr.bf16.mxu0 0
      %492 = vmatpush1.bf16.msra.mxu0 0
      %493 = vmatprep.subr.bf16.mxu0 0
      %494 = vmatpush1.bf16.msra.mxu0 0
      %495 = vmatprep.subr.bf16.mxu0 0
      %496 = vmatpush1.bf16.msra.mxu0 0
      %497 = vmatprep.subr.bf16.mxu0 0
      %498 = vmatpush1.bf16.msra.mxu0 0
      %499 = vmatprep.subr.bf16.mxu0 0
      %500 = vmatpush1.bf16.msra.mxu0 0
      %501 = vmatprep.subr.bf16.mxu0 0
      %502 = vmatpush1.bf16.msra.mxu0 0
      %503 = vmatprep.subr.bf16.mxu0 0
      %504 = vmatpush1.bf16.msra.mxu0 0
      %505 = vmatprep.subr.bf16.mxu0 0
      %506 = vmatpush1.bf16.msra.mxu0 0
      %507 = vmatprep.mubr.bf16.mxu0 0
      %508 = vmatmul.mubr.bf16.gmra.mrb[0].mxu0 %v421
      %v509 = vpop.f32.mrb[0].mxu0
      %v510 = vadd.f32 0.0, %v509
      %v511 = vpop.f32.mrb[0].mxu0
      %v512 = vpop.f32.mrb[0].mxu0
      %v513 = vadd.f32 0.0, %v512
      %v514 = vpop.f32.mrb[0].mxu0
      %515 = vmatprep.mubr.bf16.mxu0 0
      %516 = vmatmul.mubr.bf16.gmra.mrb[0].mxu0 %v424
      %v517 = vpop.f32.mrb[0].mxu0
      %v518 = vadd.f32 0.0, %v517
      %v519 = vpop.f32.mrb[0].mxu0
      %v520 = vpop.f32.mrb[0].mxu0
      %v521 = vadd.f32 0.0, %v520
      %v522 = vpop.f32.mrb[0].mxu0
      %523 = vmatprep.mubr.bf16.mxu0 0
      %524 = vmatmul.mubr.bf16.gmra.mrb[0].mxu0 %v427
      %v525 = vpop.f32.mrb[0].mxu0
      %v526 = vadd.f32 0.0, %v525
      %v527 = vpop.f32.mrb[0].mxu0
      %v528 = vpop.f32.mrb[0].mxu0
      %v529 = vadd.f32 0.0, %v528
      %v530 = vpop.f32.mrb[0].mxu0
      %531 = vmatprep.mubr.bf16.mxu0 0
      %532 = vmatmul.mubr.bf16.gmra.mrb[0].mxu0 %v430
      %v533 = vpop.f32.mrb[0].mxu0
      %v534 = vadd.f32 0.0, %v533
      %v535 = vpop.f32.mrb[0].mxu0
      %v536 = vpop.f32.mrb[0].mxu0
      %v537 = vadd.f32 0.0, %v536
      %v538 = vpop.f32.mrb[0].mxu0
      %539 = vmatprep.mubr.bf16.mxu0 0
      %540 = vmatmul.mubr.bf16.gmra.mrb[0].mxu0 %v433
      %v541 = vpop.f32.mrb[0].mxu0
      %v542 = vadd.f32 0.0, %v541
      %v543 = vpop.f32.mrb[0].mxu0
      %v544 = vpop.f32.mrb[0].mxu0
      %v545 = vadd.f32 0.0, %v544
      %v546 = vpop.f32.mrb[0].mxu0
      %547 = vmatprep.mubr.bf16.mxu0 0
      %548 = vmatmul.mubr.bf16.gmra.mrb[0].mxu0 %v436
      %v549 = vpop.f32.mrb[0].mxu0
      %v550 = vadd.f32 0.0, %v549
      %v551 = vpop.f32.mrb[0].mxu0
      %v552 = vpop.f32.mrb[0].mxu0
      %v553 = vadd.f32 0.0, %v552
      %v554 = vpop.f32.mrb[0].mxu0
      %555 = vmatprep.mubr.bf16.mxu0 0
      %556 = vmatmul.mubr.bf16.gmra.mrb[0].mxu0 %v439
      %v557 = vpop.f32.mrb[0].mxu0
      %v558 = vadd.f32 0.0, %v557
      %v559 = vpop.f32.mrb[0].mxu0
      %v560 = vpop.f32.mrb[0].mxu0
      %v561 = vadd.f32 0.0, %v560
      %v562 = vpop.f32.mrb[0].mxu0
      %563 = vmatprep.mubr.bf16.mxu0 0
      %564 = vmatmul.mubr.bf16.gmra.mrb[0].mxu0 %v442
      %v565 = vpop.f32.mrb[0].mxu0
      %v566 = vadd.f32 0.0, %v565
      %v567 = vpop.f32.mrb[0].mxu0
      %v568 = vpop.f32.mrb[0].mxu0
      %v569 = vadd.f32 0.0, %v568
      %v570 = vpop.f32.mrb[0].mxu0
      %571 = vmatprep.mubr.bf16.mxu0 0
      %572 = vmatmul.mubr.bf16.gmra.mrb[0].mxu0 %v445
      %v573 = vpop.f32.mrb[0].mxu0
      %v574 = vadd.f32 0.0, %v573
      %v575 = vpop.f32.mrb[0].mxu0
      %v576 = vpop.f32.mrb[0].mxu0
      %v577 = vadd.f32 0.0, %v576
      %v578 = vpop.f32.mrb[0].mxu0
      %579 = vmatprep.mubr.bf16.mxu0 0
      %580 = vmatmul.mubr.bf16.gmra.mrb[0].mxu0 %v448
      %v581 = vpop.f32.mrb[0].mxu0
      %v582 = vadd.f32 0.0, %v581
      %v583 = vpop.f32.mrb[0].mxu0
      %v584 = vpop.f32.mrb[0].mxu0
      %v585 = vadd.f32 0.0, %v584
      %v586 = vpop.f32.mrb[0].mxu0
      %587 = vmatprep.mubr.bf16.mxu0 0
      %588 = vmatmul.mubr.bf16.gmra.mrb[0].mxu0 %v451
      %v589 = vpop.f32.mrb[0].mxu0
      %v590 = vadd.f32 0.0, %v589
      %v591 = vpop.f32.mrb[0].mxu0
      %v592 = vpop.f32.mrb[0].mxu0
      %v593 = vadd.f32 0.0, %v592
      %v594 = vpop.f32.mrb[0].mxu0
      %595 = vmatprep.mubr.bf16.mxu0 0
      %596 = vmatmul.mubr.bf16.gmra.mrb[0].mxu0 %v454
      %v597 = vpop.f32.mrb[0].mxu0
      %v598 = vadd.f32 0.0, %v597
      %v599 = vpop.f32.mrb[0].mxu0
      %v600 = vpop.f32.mrb[0].mxu0
      %v601 = vadd.f32 0.0, %v600
      %v602 = vpop.f32.mrb[0].mxu0
      %603 = vmatprep.mubr.bf16.mxu0 0
      %604 = vmatmul.mubr.bf16.gmra.mrb[0].mxu0 %v457
      %v605 = vpop.f32.mrb[0].mxu0
      %v606 = vadd.f32 0.0, %v605
      %v607 = vpop.f32.mrb[0].mxu0
      %v608 = vpop.f32.mrb[0].mxu0
      %v609 = vadd.f32 0.0, %v608
      %v610 = vpop.f32.mrb[0].mxu0
      %611 = vmatprep.mubr.bf16.mxu0 0
      %612 = vmatmul.mubr.bf16.gmra.mrb[0].mxu0 %v460
      %v613 = vpop.f32.mrb[0].mxu0
      %v614 = vadd.f32 0.0, %v613
      %v615 = vpop.f32.mrb[0].mxu0
      %v616 = vpop.f32.mrb[0].mxu0
      %v617 = vadd.f32 0.0, %v616
      %v618 = vpop.f32.mrb[0].mxu0
      %619 = vmatprep.mubr.bf16.mxu0 0
      %620 = vmatmul.mubr.bf16.gmra.mrb[0].mxu0 %v463
      %v621 = vpop.f32.mrb[0].mxu0
      %v622 = vadd.f32 0.0, %v621
      %v623 = vpop.f32.mrb[0].mxu0
      %v624 = vpop.f32.mrb[0].mxu0
      %v625 = vadd.f32 0.0, %v624
      %v626 = vpop.f32.mrb[0].mxu0
      %627 = vmatprep.mubr.bf16.mxu0 0
      %628 = vmatmul.mubr.bf16.gmra.mrb[0].mxu0 %v466
      %v629 = vpop.f32.mrb[0].mxu0
      %v630 = vadd.f32 0.0, %v629
      %v631 = vpop.f32.mrb[0].mxu0
      %v632 = vpop.f32.mrb[0].mxu0
      %v633 = vadd.f32 0.0, %v632
      %v634 = vpop.f32.mrb[0].mxu0
      %635 = vmatprep.mubr.bf16.mxu0 0
      %636 = vmatmul.mubr.bf16.gmra.mrb[0].mxu0 %v469
      %v637 = vpop.f32.mrb[0].mxu0
      %v638 = vadd.f32 0.0, %v637
      %v639 = vpop.f32.mrb[0].mxu0
      %v640 = vpop.f32.mrb[0].mxu0
      %v641 = vadd.f32 0.0, %v640
      %v642 = vpop.f32.mrb[0].mxu0
      %643 = vdwg.mxu0
      %v646 = vunpack.c.l.b16 %v179
      %v647 = vunpack.c.l.b16 %v180
      %v648 = vpack.c.b16 %v647, %v646
      %v649 = vsel %vm419, %v255, 0
      %v651 = vsel %vm419, %v256, 0
      %v653 = vsel %vm419, %v257, 0
      %v655 = vsel %vm419, %v258, 0
      %v657 = vsel %vm419, %v259, 0
      %v659 = vsel %vm419, %v260, 0
      %v661 = vsel %vm419, %v261, 0
      %v663 = vsel %vm419, %v262, 0
      %v665 = vsel %vm419, %v263, 0
      %v667 = vsel %vm419, %v264, 0
      %v669 = vsel %vm419, %v265, 0
      %v671 = vsel %vm419, %v266, 0
      %v673 = vsel %vm419, %v267, 0
      %v675 = vsel %vm419, %v268, 0
      %v677 = vsel %vm419, %v269, 0
      %v679 = vsel %vm419, %v270, 0
      %v681 = vsel %vm419, %v271, 0
      %v684 = vsel %vm471, %v648, 0
      %686 = vmatprep.subr.bf16.mxu0 0
      %687 = vmatpush1.bf16.msra.mxu0 %v684
      %688 = vmatprep.subr.bf16.mxu0 0
      %689 = vmatpush1.bf16.msra.mxu0 0
      %690 = vmatprep.subr.bf16.mxu0 0
      %691 = vmatpush1.bf16.msra.mxu0 0
      %692 = vmatprep.subr.bf16.mxu0 0
      %693 = vmatpush1.bf16.msra.mxu0 0
      %694 = vmatprep.subr.bf16.mxu0 0
      %695 = vmatpush1.bf16.msra.mxu0 0
      %696 = vmatprep.subr.bf16.mxu0 0
      %697 = vmatpush1.bf16.msra.mxu0 0
      %698 = vmatprep.subr.bf16.mxu0 0
      %699 = vmatpush1.bf16.msra.mxu0 0
      %700 = vmatprep.subr.bf16.mxu0 0
      %701 = vmatpush1.bf16.msra.mxu0 0
      %702 = vmatprep.subr.bf16.mxu0 0
      %703 = vmatpush1.bf16.msra.mxu0 0
      %704 = vmatprep.subr.bf16.mxu0 0
      %705 = vmatpush1.bf16.msra.mxu0 0
      %706 = vmatprep.subr.bf16.mxu0 0
      %707 = vmatpush1.bf16.msra.mxu0 0
      %708 = vmatprep.subr.bf16.mxu0 0
      %709 = vmatpush1.bf16.msra.mxu0 0
      %710 = vmatprep.subr.bf16.mxu0 0
      %711 = vmatpush1.bf16.msra.mxu0 0
      %712 = vmatprep.subr.bf16.mxu0 0
      %713 = vmatpush1.bf16.msra.mxu0 0
      %714 = vmatprep.subr.bf16.mxu0 0
      %715 = vmatpush1.bf16.msra.mxu0 0
      %716 = vmatprep.subr.bf16.mxu0 0
      %717 = vmatpush1.bf16.msra.mxu0 0
      %718 = vmatprep.mubr.bf16.mxu0 0
      %719 = vmatmul.mubr.bf16.gmra.mrb[0].mxu0 %v649
      %v720 = vpop.f32.mrb[0].mxu0
      %v721 = vadd.f32 %v510, %v720
      %v722 = vpop.f32.mrb[0].mxu0
      %v723 = vpop.f32.mrb[0].mxu0
      %v724 = vadd.f32 %v513, %v723
      %v725 = vpop.f32.mrb[0].mxu0
      %726 = vmatprep.mubr.bf16.mxu0 0
      %727 = vmatmul.mubr.bf16.gmra.mrb[0].mxu0 %v651
      %v728 = vpop.f32.mrb[0].mxu0
      %v729 = vadd.f32 %v518, %v728
      %v730 = vpop.f32.mrb[0].mxu0
      %v731 = vpop.f32.mrb[0].mxu0
      %v732 = vadd.f32 %v521, %v731
      %v733 = vpop.f32.mrb[0].mxu0
      %734 = vmatprep.mubr.bf16.mxu0 0
      %735 = vmatmul.mubr.bf16.gmra.mrb[0].mxu0 %v653
      %v736 = vpop.f32.mrb[0].mxu0
      %v737 = vadd.f32 %v526, %v736
      %v738 = vpop.f32.mrb[0].mxu0
      %v739 = vpop.f32.mrb[0].mxu0
      %v740 = vadd.f32 %v529, %v739
      %v741 = vpop.f32.mrb[0].mxu0
      %742 = vmatprep.mubr.bf16.mxu0 0
      %743 = vmatmul.mubr.bf16.gmra.mrb[0].mxu0 %v655
      %v744 = vpop.f32.mrb[0].mxu0
      %v745 = vadd.f32 %v534, %v744
      %v746 = vpop.f32.mrb[0].mxu0
      %v747 = vpop.f32.mrb[0].mxu0
      %v748 = vadd.f32 %v537, %v747
      %v749 = vpop.f32.mrb[0].mxu0
      %750 = vmatprep.mubr.bf16.mxu0 0
      %751 = vmatmul.mubr.bf16.gmra.mrb[0].mxu0 %v657
      %v752 = vpop.f32.mrb[0].mxu0
      %v753 = vadd.f32 %v542, %v752
      %v754 = vpop.f32.mrb[0].mxu0
      %v755 = vpop.f32.mrb[0].mxu0
      %v756 = vadd.f32 %v545, %v755
      %v757 = vpop.f32.mrb[0].mxu0
      %758 = vmatprep.mubr.bf16.mxu0 0
      %759 = vmatmul.mubr.bf16.gmra.mrb[0].mxu0 %v659
      %v760 = vpop.f32.mrb[0].mxu0
      %v761 = vadd.f32 %v550, %v760
      %v762 = vpop.f32.mrb[0].mxu0
      %v763 = vpop.f32.mrb[0].mxu0
      %v764 = vadd.f32 %v553, %v763
      %v765 = vpop.f32.mrb[0].mxu0
      %766 = vmatprep.mubr.bf16.mxu0 0
      %767 = vmatmul.mubr.bf16.gmra.mrb[0].mxu0 %v661
      %v768 = vpop.f32.mrb[0].mxu0
      %v769 = vadd.f32 %v558, %v768
      %v770 = vpop.f32.mrb[0].mxu0
      %v771 = vpop.f32.mrb[0].mxu0
      %v772 = vadd.f32 %v561, %v771
      %v773 = vpop.f32.mrb[0].mxu0
      %774 = vmatprep.mubr.bf16.mxu0 0
      %775 = vmatmul.mubr.bf16.gmra.mrb[0].mxu0 %v663
      %v776 = vpop.f32.mrb[0].mxu0
      %v777 = vadd.f32 %v566, %v776
      %v778 = vpop.f32.mrb[0].mxu0
      %v779 = vpop.f32.mrb[0].mxu0
      %v780 = vadd.f32 %v569, %v779
      %v781 = vpop.f32.mrb[0].mxu0
      %782 = vmatprep.mubr.bf16.mxu0 0
      %783 = vmatmul.mubr.bf16.gmra.mrb[0].mxu0 %v665
      %v784 = vpop.f32.mrb[0].mxu0
      %v785 = vadd.f32 %v574, %v784
      %v786 = vpop.f32.mrb[0].mxu0
      %v787 = vpop.f32.mrb[0].mxu0
      %v788 = vadd.f32 %v577, %v787
      %v789 = vpop.f32.mrb[0].mxu0
      %790 = vmatprep.mubr.bf16.mxu0 0
      %791 = vmatmul.mubr.bf16.gmra.mrb[0].mxu0 %v667
      %v792 = vpop.f32.mrb[0].mxu0
      %v793 = vadd.f32 %v582, %v792
      %v794 = vpop.f32.mrb[0].mxu0
      %v795 = vpop.f32.mrb[0].mxu0
      %v796 = vadd.f32 %v585, %v795
      %v797 = vpop.f32.mrb[0].mxu0
      %798 = vmatprep.mubr.bf16.mxu0 0
      %799 = vmatmul.mubr.bf16.gmra.mrb[0].mxu0 %v669
      %v800 = vpop.f32.mrb[0].mxu0
      %v801 = vadd.f32 %v590, %v800
      %v802 = vpop.f32.mrb[0].mxu0
      %v803 = vpop.f32.mrb[0].mxu0
      %v804 = vadd.f32 %v593, %v803
      %v805 = vpop.f32.mrb[0].mxu0
      %806 = vmatprep.mubr.bf16.mxu0 0
      %807 = vmatmul.mubr.bf16.gmra.mrb[0].mxu0 %v671
      %v808 = vpop.f32.mrb[0].mxu0
      %v809 = vadd.f32 %v598, %v808
      %v810 = vpop.f32.mrb[0].mxu0
      %v811 = vpop.f32.mrb[0].mxu0
      %v812 = vadd.f32 %v601, %v811
      %v813 = vpop.f32.mrb[0].mxu0
      %814 = vmatprep.mubr.bf16.mxu0 0
      %815 = vmatmul.mubr.bf16.gmra.mrb[0].mxu0 %v673
      %v816 = vpop.f32.mrb[0].mxu0
      %v817 = vadd.f32 %v606, %v816
      %v818 = vpop.f32.mrb[0].mxu0
      %v819 = vpop.f32.mrb[0].mxu0
      %v820 = vadd.f32 %v609, %v819
      %v821 = vpop.f32.mrb[0].mxu0
      %822 = vmatprep.mubr.bf16.mxu0 0
      %823 = vmatmul.mubr.bf16.gmra.mrb[0].mxu0 %v675
      %v824 = vpop.f32.mrb[0].mxu0
      %v825 = vadd.f32 %v614, %v824
      %v826 = vpop.f32.mrb[0].mxu0
      %v827 = vpop.f32.mrb[0].mxu0
      %v828 = vadd.f32 %v617, %v827
      %v829 = vpop.f32.mrb[0].mxu0
      %830 = vmatprep.mubr.bf16.mxu0 0
      %831 = vmatmul.mubr.bf16.gmra.mrb[0].mxu0 %v677
      %v832 = vpop.f32.mrb[0].mxu0
      %v833 = vadd.f32 %v622, %v832
      %v834 = vpop.f32.mrb[0].mxu0
      %v835 = vpop.f32.mrb[0].mxu0
      %v836 = vadd.f32 %v625, %v835
      %v837 = vpop.f32.mrb[0].mxu0
      %838 = vmatprep.mubr.bf16.mxu0 0
      %839 = vmatmul.mubr.bf16.gmra.mrb[0].mxu0 %v679
      %v840 = vpop.f32.mrb[0].mxu0
      %v841 = vadd.f32 %v630, %v840
      %v842 = vpop.f32.mrb[0].mxu0
      %v843 = vpop.f32.mrb[0].mxu0
      %v844 = vadd.f32 %v633, %v843
      %v845 = vpop.f32.mrb[0].mxu0
      %846 = vmatprep.mubr.bf16.mxu0 0
      %847 = vmatmul.mubr.bf16.gmra.mrb[0].mxu0 %v681
      %v848 = vpop.f32.mrb[0].mxu0
      %v849 = vadd.f32 %v638, %v848
      %v850 = vpop.f32.mrb[0].mxu0
      %v851 = vpop.f32.mrb[0].mxu0
      %v852 = vadd.f32 %v641, %v851
      %v853 = vpop.f32.mrb[0].mxu0
      %854 = vdwg.mxu0
      %v855 = vld [vmem:[%s138 + $0x8] sm:$0xf]
      %v856 = vld [vmem:[%s138 + $0xc] sm:$0xf]
      %v857 = vld [vmem:[%s138 + $0x10] sm:$0xf]
      %v858 = vld [vmem:[%s138 + $0x14] sm:$0xf]
      %v859 = vld [vmem:[%s138 + $0x18] sm:$0xf]
      %v860 = vld [vmem:[%s138 + $0x1c] sm:$0xf]
      %v861 = vld [vmem:[%s138 + $0x20] sm:$0xf]
      %v862 = vld [vmem:[%s138 + $0x24] sm:$0xf]
      %v863 = vld [vmem:[%s138 + $0x28] sm:$0xf]
      %v864 = vld [vmem:[%s138 + $0x2c] sm:$0xf]
      %v865 = vld [vmem:[%s138 + $0x30] sm:$0xf]
      %v866 = vld [vmem:[%s138 + $0x34] sm:$0xf]
      %v867 = vld [vmem:[%s138 + $0x38] sm:$0xf]
      %v868 = vld [vmem:[%s138 + $0x3c] sm:$0xf]
      %v869 = vld [vmem:[%s138 + $0x40] sm:$0xf]
      %v870 = vld [vmem:[%s138 + $0x44] sm:$0xf]
      %v871 = vld [vmem:[%s138 + $0x48] sm:$0xf]
      %v872 = vld [vmem:[%s138 + $0x4c] sm:$0xf]
      %v873 = vld [vmem:[%s138 + $0x50] sm:$0xf]
      %v874 = vld [vmem:[%s138 + $0x54] sm:$0xf]
      %v875 = vld [vmem:[%s138 + $0x58] sm:$0xf]
      %v876 = vld [vmem:[%s138 + $0x5c] sm:$0xf]
      %v877 = vld [vmem:[%s138 + $0x60] sm:$0xf]
      %v878 = vld [vmem:[%s138 + $0x64] sm:$0xf]
      %v879 = vld [vmem:[%s138 + $0x68] sm:$0xf]
      %v880 = vld [vmem:[%s138 + $0x6c] sm:$0xf]
      %v881 = vld [vmem:[%s138 + $0x70] sm:$0xf]
      %v882 = vld [vmem:[%s138 + $0x74] sm:$0xf]
      %v883 = vld [vmem:[%s138 + $0x78] sm:$0xf]
      %v884 = vld [vmem:[%s138 + $0x7c] sm:$0xf]
      %v885 = vld [vmem:[%s138 + $0x80] sm:$0xf]
      %v886 = vld [vmem:[%s138 + $0x84] sm:$0xf]
      %v887 = vld [vmem:[%s138 + $0x88] sm:$0xf]
      %v888 = vld [vmem:[%s138 + $0x8c] sm:$0xf]
      %v889 = vld [vmem:[%s138 + $0x90] sm:$0x1]
      %s890 = scalar_lea.vmem %s1, 16
      %v891 = vld [vmem:[%s890] sm:$0xf]
      %v892 = vld [vmem:[%s890 + $0x4] sm:$0x3]
      %v928 = vunpack.c.l.b16 %v855
      %v929 = vunpack.c.l.b16 %v856
      %v930 = vunpack.c.l.b16 %v857
      %v931 = vunpack.c.l.b16 %v858
      %v932 = vunpack.c.l.b16 %v859
      %v933 = vunpack.c.l.b16 %v860
      %v934 = vunpack.c.l.b16 %v861
      %v935 = vunpack.c.l.b16 %v862
      %v936 = vunpack.c.l.b16 %v863
      %v937 = vunpack.c.l.b16 %v864
      %v938 = vunpack.c.l.b16 %v865
      %v939 = vunpack.c.l.b16 %v866
      %v940 = vunpack.c.l.b16 %v867
      %v941 = vunpack.c.l.b16 %v868
      %v942 = vunpack.c.l.b16 %v869
      %v943 = vunpack.c.l.b16 %v870
      %v944 = vunpack.c.l.b16 %v871
      %v945 = vunpack.c.l.b16 %v872
      %v946 = vunpack.c.l.b16 %v873
      %v947 = vunpack.c.l.b16 %v874
      %v948 = vunpack.c.l.b16 %v875
      %v949 = vunpack.c.l.b16 %v876
      %v950 = vunpack.c.l.b16 %v877
      %v951 = vunpack.c.l.b16 %v878
      %v952 = vunpack.c.l.b16 %v879
      %v953 = vunpack.c.l.b16 %v880
      %v954 = vunpack.c.l.b16 %v881
      %v955 = vunpack.c.l.b16 %v882
      %v956 = vunpack.c.l.b16 %v883
      %v957 = vunpack.c.l.b16 %v884
      %v958 = vunpack.c.l.b16 %v885
      %v959 = vunpack.c.l.b16 %v886
      %v960 = vunpack.c.l.b16 %v887
      %v961 = vunpack.c.l.b16 %v888
      %v962 = vunpack.c.l.b16 %v889
      %v963 = vpack.c.b16 %v929, %v928
      %v964 = vpack.c.b16 %v931, %v930
      %v965 = vpack.c.b16 %v933, %v932
      %v966 = vpack.c.b16 %v935, %v934
      %v967 = vpack.c.b16 %v937, %v936
      %v968 = vpack.c.b16 %v939, %v938
      %v969 = vpack.c.b16 %v941, %v940
      %v970 = vpack.c.b16 %v943, %v942
      %v971 = vpack.c.b16 %v945, %v944
      %v972 = vpack.c.b16 %v947, %v946
      %v973 = vpack.c.b16 %v949, %v948
      %v974 = vpack.c.b16 %v951, %v950
      %v975 = vpack.c.b16 %v953, %v952
      %v976 = vpack.c.b16 %v955, %v954
      %v977 = vpack.c.b16 %v957, %v956
      %v978 = vpack.c.b16 %v959, %v958
      %v979 = vpack.c.b16 %v961, %v960
      %v980 = vpack.c.b16 %v962, %v962
      %v982 = vshrl.u32 %v963, 16
      %v984 = vshll.u32 %v963, 16
      %v986 = vrot.slane %v984, 1
      %v987 = vor.u32 %v982, %v986
      %v989 = vshll.u32 %v964, 16
      %v991 = vrot.slane %v989, 1
      %v992 = vsel %vm273, %v987, %v991
      %v993 = vshrl.u32 %v964, 16
      %v995 = vor.u32 %v993, %v991
      %v997 = vshll.u32 %v965, 16
      %v999 = vrot.slane %v997, 1
      %v1000 = vsel %vm273, %v995, %v999
      %v1001 = vshrl.u32 %v965, 16
      %v1003 = vor.u32 %v1001, %v999
      %v1005 = vshll.u32 %v966, 16
      %v1007 = vrot.slane %v1005, 1
      %v1008 = vsel %vm273, %v1003, %v1007
      %v1009 = vshrl.u32 %v966, 16
      %v1011 = vor.u32 %v1009, %v1007
      %v1013 = vshll.u32 %v967, 16
      %v1015 = vrot.slane %v1013, 1
      %v1016 = vsel %vm273, %v1011, %v1015
      %v1017 = vshrl.u32 %v967, 16
      %v1019 = vor.u32 %v1017, %v1015
      %v1021 = vshll.u32 %v968, 16
      %v1023 = vrot.slane %v1021, 1
      %v1024 = vsel %vm273, %v1019, %v1023
      %v1025 = vshrl.u32 %v968, 16
      %v1027 = vor.u32 %v1025, %v1023
      %v1029 = vshll.u32 %v969, 16
      %v1031 = vrot.slane %v1029, 1
      %v1032 = vsel %vm273, %v1027, %v1031
      %v1033 = vshrl.u32 %v969, 16
      %v1035 = vor.u32 %v1033, %v1031
      %v1037 = vshll.u32 %v970, 16
      %v1039 = vrot.slane %v1037, 1
      %v1040 = vsel %vm273, %v1035, %v1039
      %v1041 = vshrl.u32 %v970, 16
      %v1043 = vor.u32 %v1041, %v1039
      %v1045 = vshll.u32 %v971, 16
      %v1047 = vrot.slane %v1045, 1
      %v1048 = vsel %vm273, %v1043, %v1047
      %v1049 = vshrl.u32 %v971, 16
      %v1051 = vor.u32 %v1049, %v1047
      %v1053 = vshll.u32 %v972, 16
      %v1055 = vrot.slane %v1053, 1
      %v1056 = vsel %vm273, %v1051, %v1055
      %v1057 = vshrl.u32 %v972, 16
      %v1059 = vor.u32 %v1057, %v1055
      %v1061 = vshll.u32 %v973, 16
      %v1063 = vrot.slane %v1061, 1
      %v1064 = vsel %vm273, %v1059, %v1063
      %v1065 = vshrl.u32 %v973, 16
      %v1067 = vor.u32 %v1065, %v1063
      %v1069 = vshll.u32 %v974, 16
      %v1071 = vrot.slane %v1069, 1
      %v1072 = vsel %vm273, %v1067, %v1071
      %v1073 = vshrl.u32 %v974, 16
      %v1075 = vor.u32 %v1073, %v1071
      %v1077 = vshll.u32 %v975, 16
      %v1079 = vrot.slane %v1077, 1
      %v1080 = vsel %vm273, %v1075, %v1079
      %v1081 = vshrl.u32 %v975, 16
      %v1083 = vor.u32 %v1081, %v1079
      %v1085 = vshll.u32 %v976, 16
      %v1087 = vrot.slane %v1085, 1
      %v1088 = vsel %vm273, %v1083, %v1087
      %v1089 = vshrl.u32 %v976, 16
      %v1091 = vor.u32 %v1089, %v1087
      %v1093 = vshll.u32 %v977, 16
      %v1095 = vrot.slane %v1093, 1
      %v1096 = vsel %vm273, %v1091, %v1095
      %v1097 = vshrl.u32 %v977, 16
      %v1099 = vor.u32 %v1097, %v1095
      %v1101 = vshll.u32 %v978, 16
      %v1103 = vrot.slane %v1101, 1
      %v1104 = vsel %vm273, %v1099, %v1103
      %v1105 = vshrl.u32 %v978, 16
      %v1107 = vor.u32 %v1105, %v1103
      %v1109 = vshll.u32 %v979, 16
      %v1111 = vrot.slane %v1109, 1
      %v1112 = vsel %vm273, %v1107, %v1111
      %v1113 = vshrl.u32 %v979, 16
      %v1115 = vor.u32 %v1113, %v1111
      %v1117 = vshll.u32 %v980, 16
      %v1119 = vrot.slane %v1117, 1
      %v1120 = vsel %vm273, %v1115, %v1119
      %v1123 = vunpack.c.l.b16 %v891
      %v1124 = vunpack.c.l.b16 %v892
      %v1125 = vpack.c.b16 %v1124, %v1123
      %v1127 = vsel %vm419, %v992, 0
      %v1130 = vsel %vm419, %v1000, 0
      %v1133 = vsel %vm419, %v1008, 0
      %v1136 = vsel %vm419, %v1016, 0
      %v1139 = vsel %vm419, %v1024, 0
      %v1142 = vsel %vm419, %v1032, 0
      %v1145 = vsel %vm419, %v1040, 0
      %v1148 = vsel %vm419, %v1048, 0
      %v1151 = vsel %vm419, %v1056, 0
      %v1154 = vsel %vm419, %v1064, 0
      %v1157 = vsel %vm419, %v1072, 0
      %v1160 = vsel %vm419, %v1080, 0
      %v1163 = vsel %vm419, %v1088, 0
      %v1166 = vsel %vm419, %v1096, 0
      %v1169 = vsel %vm419, %v1104, 0
      %v1172 = vsel %vm419, %v1112, 0
      %v1175 = vsel %vm419, %v1120, 0
      %v1178 = vsel %vm471, %v1125, 0
      %1180 = vmatprep.subr.bf16.mxu0 0
      %1181 = vmatpush1.bf16.msra.mxu0 %v1178
      %1182 = vmatprep.subr.bf16.mxu0 0
      %1183 = vmatpush1.bf16.msra.mxu0 0
      %1184 = vmatprep.subr.bf16.mxu0 0
      %1185 = vmatpush1.bf16.msra.mxu0 0
      %1186 = vmatprep.subr.bf16.mxu0 0
      %1187 = vmatpush1.bf16.msra.mxu0 0
      %1188 = vmatprep.subr.bf16.mxu0 0
      %1189 = vmatpush1.bf16.msra.mxu0 0
      %1190 = vmatprep.subr.bf16.mxu0 0
      %1191 = vmatpush1.bf16.msra.mxu0 0
      %1192 = vmatprep.subr.bf16.mxu0 0
      %1193 = vmatpush1.bf16.msra.mxu0 0
      %1194 = vmatprep.subr.bf16.mxu0 0
      %1195 = vmatpush1.bf16.msra.mxu0 0
      %1196 = vmatprep.subr.bf16.mxu0 0
      %1197 = vmatpush1.bf16.msra.mxu0 0
      %1198 = vmatprep.subr.bf16.mxu0 0
      %1199 = vmatpush1.bf16.msra.mxu0 0
      %1200 = vmatprep.subr.bf16.mxu0 0
      %1201 = vmatpush1.bf16.msra.mxu0 0
      %1202 = vmatprep.subr.bf16.mxu0 0
      %1203 = vmatpush1.bf16.msra.mxu0 0
      %1204 = vmatprep.subr.bf16.mxu0 0
      %1205 = vmatpush1.bf16.msra.mxu0 0
      %1206 = vmatprep.subr.bf16.mxu0 0
      %1207 = vmatpush1.bf16.msra.mxu0 0
      %1208 = vmatprep.subr.bf16.mxu0 0
      %1209 = vmatpush1.bf16.msra.mxu0 0
      %1210 = vmatprep.subr.bf16.mxu0 0
      %1211 = vmatpush1.bf16.msra.mxu0 0
      %1212 = vmatprep.mubr.bf16.mxu0 0
      %1213 = vmatmul.mubr.bf16.gmra.mrb[0].mxu0 %v1127
      %v1214 = vpop.f32.mrb[0].mxu0
      %v1215 = vadd.f32 0.0, %v1214
      %v1216 = vpop.f32.mrb[0].mxu0
      %v1217 = vpop.f32.mrb[0].mxu0
      %v1218 = vadd.f32 0.0, %v1217
      %v1219 = vpop.f32.mrb[0].mxu0
      %1220 = vmatprep.mubr.bf16.mxu0 0
      %1221 = vmatmul.mubr.bf16.gmra.mrb[0].mxu0 %v1130
      %v1222 = vpop.f32.mrb[0].mxu0
      %v1223 = vadd.f32 0.0, %v1222
      %v1224 = vpop.f32.mrb[0].mxu0
      %v1225 = vpop.f32.mrb[0].mxu0
      %v1226 = vadd.f32 0.0, %v1225
      %v1227 = vpop.f32.mrb[0].mxu0
      %1228 = vmatprep.mubr.bf16.mxu0 0
      %1229 = vmatmul.mubr.bf16.gmra.mrb[0].mxu0 %v1133
      %v1230 = vpop.f32.mrb[0].mxu0
      %v1231 = vadd.f32 0.0, %v1230
      %v1232 = vpop.f32.mrb[0].mxu0
      %v1233 = vpop.f32.mrb[0].mxu0
      %v1234 = vadd.f32 0.0, %v1233
      %v1235 = vpop.f32.mrb[0].mxu0
      %1236 = vmatprep.mubr.bf16.mxu0 0
      %1237 = vmatmul.mubr.bf16.gmra.mrb[0].mxu0 %v1136
      %v1238 = vpop.f32.mrb[0].mxu0
      %v1239 = vadd.f32 0.0, %v1238
      %v1240 = vpop.f32.mrb[0].mxu0
      %v1241 = vpop.f32.mrb[0].mxu0
      %v1242 = vadd.f32 0.0, %v1241
      %v1243 = vpop.f32.mrb[0].mxu0
      %1244 = vmatprep.mubr.bf16.mxu0 0
      %1245 = vmatmul.mubr.bf16.gmra.mrb[0].mxu0 %v1139
      %v1246 = vpop.f32.mrb[0].mxu0
      %v1247 = vadd.f32 0.0, %v1246
      %v1248 = vpop.f32.mrb[0].mxu0
      %v1249 = vpop.f32.mrb[0].mxu0
      %v1250 = vadd.f32 0.0, %v1249
      %v1251 = vpop.f32.mrb[0].mxu0
      %1252 = vmatprep.mubr.bf16.mxu0 0
      %1253 = vmatmul.mubr.bf16.gmra.mrb[0].mxu0 %v1142
      %v1254 = vpop.f32.mrb[0].mxu0
      %v1255 = vadd.f32 0.0, %v1254
      %v1256 = vpop.f32.mrb[0].mxu0
      %v1257 = vpop.f32.mrb[0].mxu0
      %v1258 = vadd.f32 0.0, %v1257
      %v1259 = vpop.f32.mrb[0].mxu0
      %1260 = vmatprep.mubr.bf16.mxu0 0
      %1261 = vmatmul.mubr.bf16.gmra.mrb[0].mxu0 %v1145
      %v1262 = vpop.f32.mrb[0].mxu0
      %v1263 = vadd.f32 0.0, %v1262
      %v1264 = vpop.f32.mrb[0].mxu0
      %v1265 = vpop.f32.mrb[0].mxu0
      %v1266 = vadd.f32 0.0, %v1265
      %v1267 = vpop.f32.mrb[0].mxu0
      %1268 = vmatprep.mubr.bf16.mxu0 0
      %1269 = vmatmul.mubr.bf16.gmra.mrb[0].mxu0 %v1148
      %v1270 = vpop.f32.mrb[0].mxu0
      %v1271 = vadd.f32 0.0, %v1270
      %v1272 = vpop.f32.mrb[0].mxu0
      %v1273 = vpop.f32.mrb[0].mxu0
      %v1274 = vadd.f32 0.0, %v1273
      %v1275 = vpop.f32.mrb[0].mxu0
      %1276 = vmatprep.mubr.bf16.mxu0 0
      %1277 = vmatmul.mubr.bf16.gmra.mrb[0].mxu0 %v1151
      %v1278 = vpop.f32.mrb[0].mxu0
      %v1279 = vadd.f32 0.0, %v1278
      %v1280 = vpop.f32.mrb[0].mxu0
      %v1281 = vpop.f32.mrb[0].mxu0
      %v1282 = vadd.f32 0.0, %v1281
      %v1283 = vpop.f32.mrb[0].mxu0
      %1284 = vmatprep.mubr.bf16.mxu0 0
      %1285 = vmatmul.mubr.bf16.gmra.mrb[0].mxu0 %v1154
      %v1286 = vpop.f32.mrb[0].mxu0
      %v1287 = vadd.f32 0.0, %v1286
      %v1288 = vpop.f32.mrb[0].mxu0
      %v1289 = vpop.f32.mrb[0].mxu0
      %v1290 = vadd.f32 0.0, %v1289
      %v1291 = vpop.f32.mrb[0].mxu0
      %1292 = vmatprep.mubr.bf16.mxu0 0
      %1293 = vmatmul.mubr.bf16.gmra.mrb[0].mxu0 %v1157
      %v1294 = vpop.f32.mrb[0].mxu0
      %v1295 = vadd.f32 0.0, %v1294
      %v1296 = vpop.f32.mrb[0].mxu0
      %v1297 = vpop.f32.mrb[0].mxu0
      %v1298 = vadd.f32 0.0, %v1297
      %v1299 = vpop.f32.mrb[0].mxu0
      %1300 = vmatprep.mubr.bf16.mxu0 0
      %1301 = vmatmul.mubr.bf16.gmra.mrb[0].mxu0 %v1160
      %v1302 = vpop.f32.mrb[0].mxu0
      %v1303 = vadd.f32 0.0, %v1302
      %v1304 = vpop.f32.mrb[0].mxu0
      %v1305 = vpop.f32.mrb[0].mxu0
      %v1306 = vadd.f32 0.0, %v1305
      %v1307 = vpop.f32.mrb[0].mxu0
      %1308 = vmatprep.mubr.bf16.mxu0 0
      %1309 = vmatmul.mubr.bf16.gmra.mrb[0].mxu0 %v1163
      %v1310 = vpop.f32.mrb[0].mxu0
      %v1311 = vadd.f32 0.0, %v1310
      %v1312 = vpop.f32.mrb[0].mxu0
      %v1313 = vpop.f32.mrb[0].mxu0
      %v1314 = vadd.f32 0.0, %v1313
      %v1315 = vpop.f32.mrb[0].mxu0
      %1316 = vmatprep.mubr.bf16.mxu0 0
      %1317 = vmatmul.mubr.bf16.gmra.mrb[0].mxu0 %v1166
      %v1318 = vpop.f32.mrb[0].mxu0
      %v1319 = vadd.f32 0.0, %v1318
      %v1320 = vpop.f32.mrb[0].mxu0
      %v1321 = vpop.f32.mrb[0].mxu0
      %v1322 = vadd.f32 0.0, %v1321
      %v1323 = vpop.f32.mrb[0].mxu0
      %1324 = vmatprep.mubr.bf16.mxu0 0
      %1325 = vmatmul.mubr.bf16.gmra.mrb[0].mxu0 %v1169
      %v1326 = vpop.f32.mrb[0].mxu0
      %v1327 = vadd.f32 0.0, %v1326
      %v1328 = vpop.f32.mrb[0].mxu0
      %v1329 = vpop.f32.mrb[0].mxu0
      %v1330 = vadd.f32 0.0, %v1329
      %v1331 = vpop.f32.mrb[0].mxu0
      %1332 = vmatprep.mubr.bf16.mxu0 0
      %1333 = vmatmul.mubr.bf16.gmra.mrb[0].mxu0 %v1172
      %v1334 = vpop.f32.mrb[0].mxu0
      %v1335 = vadd.f32 0.0, %v1334
      %v1336 = vpop.f32.mrb[0].mxu0
      %v1337 = vpop.f32.mrb[0].mxu0
      %v1338 = vadd.f32 0.0, %v1337
      %v1339 = vpop.f32.mrb[0].mxu0
      %1340 = vmatprep.mubr.bf16.mxu0 0
      %1341 = vmatmul.mubr.bf16.gmra.mrb[0].mxu0 %v1175
      %v1342 = vpop.f32.mrb[0].mxu0
      %v1343 = vadd.f32 0.0, %v1342
      %v1344 = vpop.f32.mrb[0].mxu0
      %v1345 = vpop.f32.mrb[0].mxu0
      %v1346 = vadd.f32 0.0, %v1345
      %v1347 = vpop.f32.mrb[0].mxu0
      %1348 = vdwg.mxu0
      %v1349 = vadd.f32 %v721, %v1215
      %v1350 = vadd.f32 %v724, %v1218
      %v1351 = vadd.f32 %v729, %v1223
      %v1352 = vadd.f32 %v732, %v1226
      %v1353 = vadd.f32 %v737, %v1231
      %v1354 = vadd.f32 %v740, %v1234
      %v1355 = vadd.f32 %v745, %v1239
      %v1356 = vadd.f32 %v748, %v1242
      %v1357 = vadd.f32 %v753, %v1247
      %v1358 = vadd.f32 %v756, %v1250
      %v1359 = vadd.f32 %v761, %v1255
      %v1360 = vadd.f32 %v764, %v1258
      %v1361 = vadd.f32 %v769, %v1263
      %v1362 = vadd.f32 %v772, %v1266
      %v1363 = vadd.f32 %v777, %v1271
      %v1364 = vadd.f32 %v780, %v1274
      %v1365 = vadd.f32 %v785, %v1279
      %v1366 = vadd.f32 %v788, %v1282
      %v1367 = vadd.f32 %v793, %v1287
      %v1368 = vadd.f32 %v796, %v1290
      %v1369 = vadd.f32 %v801, %v1295
      %v1370 = vadd.f32 %v804, %v1298
      %v1371 = vadd.f32 %v809, %v1303
      %v1372 = vadd.f32 %v812, %v1306
      %v1373 = vadd.f32 %v817, %v1311
      %v1374 = vadd.f32 %v820, %v1314
      %v1375 = vadd.f32 %v825, %v1319
      %v1376 = vadd.f32 %v828, %v1322
      %v1377 = vadd.f32 %v833, %v1327
      %v1378 = vadd.f32 %v836, %v1330
      %v1379 = vadd.f32 %v841, %v1335
      %v1380 = vadd.f32 %v844, %v1338
      %v1381 = vadd.f32 %v849, %v1343
      %v1382 = vadd.f32 %v852, %v1346
      %v1383 = vld [vmem:[%s138 + $0x8] sm:$0xe]
      %s1384 = scalar_lea.vmem %s1, 24
      %v1385 = vld [vmem:[%s1384] sm:$0xf]
      %v1386 = vld [vmem:[%s1384 + $0x4] sm:$0x3]
      %v1388 = vunpack.c.l.b16 %v1383
      %v1389 = vpack.c.b16 %v929, %v1388
      %vm1390 = vcmask 1046528
      %v1391 = vrot.slane %v1389, 1
      %v1392 = vrot.slane %v964, 1
      %v1393 = vsel %vm1390, %v1391, %v1392
      %v1394 = vrot.slane %v965, 1
      %v1395 = vsel %vm1390, %v1392, %v1394
      %v1396 = vrot.slane %v966, 1
      %v1397 = vsel %vm1390, %v1394, %v1396
      %v1398 = vrot.slane %v967, 1
      %v1399 = vsel %vm1390, %v1396, %v1398
      %v1400 = vrot.slane %v968, 1
      %v1401 = vsel %vm1390, %v1398, %v1400
      %v1402 = vrot.slane %v969, 1
      %v1403 = vsel %vm1390, %v1400, %v1402
      %v1404 = vrot.slane %v970, 1
      %v1405 = vsel %vm1390, %v1402, %v1404
      %v1406 = vrot.slane %v971, 1
      %v1407 = vsel %vm1390, %v1404, %v1406
      %v1408 = vrot.slane %v972, 1
      %v1409 = vsel %vm1390, %v1406, %v1408
      %v1410 = vrot.slane %v973, 1
      %v1411 = vsel %vm1390, %v1408, %v1410
      %v1412 = vrot.slane %v974, 1
      %v1413 = vsel %vm1390, %v1410, %v1412
      %v1414 = vrot.slane %v975, 1
      %v1415 = vsel %vm1390, %v1412, %v1414
      %v1416 = vrot.slane %v976, 1
      %v1417 = vsel %vm1390, %v1414, %v1416
      %v1418 = vrot.slane %v977, 1
      %v1419 = vsel %vm1390, %v1416, %v1418
      %v1420 = vrot.slane %v978, 1
      %v1421 = vsel %vm1390, %v1418, %v1420
      %v1422 = vrot.slane %v979, 1
      %v1423 = vsel %vm1390, %v1420, %v1422
      %v1424 = vrot.slane %v980, 1
      %v1425 = vsel %vm1390, %v1422, %v1424
      %v1428 = vunpack.c.l.b16 %v1385
      %v1429 = vunpack.c.l.b16 %v1386
      %v1430 = vpack.c.b16 %v1429, %v1428
      %v1432 = vsel %vm419, %v1393, 0
      %v1435 = vsel %vm419, %v1395, 0
      %v1438 = vsel %vm419, %v1397, 0
      %v1441 = vsel %vm419, %v1399, 0
      %v1444 = vsel %vm419, %v1401, 0
      %v1447 = vsel %vm419, %v1403, 0
      %v1450 = vsel %vm419, %v1405, 0
      %v1453 = vsel %vm419, %v1407, 0
      %v1456 = vsel %vm419, %v1409, 0
      %v1459 = vsel %vm419, %v1411, 0
      %v1462 = vsel %vm419, %v1413, 0
      %v1465 = vsel %vm419, %v1415, 0
      %v1468 = vsel %vm419, %v1417, 0
      %v1471 = vsel %vm419, %v1419, 0
      %v1474 = vsel %vm419, %v1421, 0
      %v1477 = vsel %vm419, %v1423, 0
      %v1480 = vsel %vm419, %v1425, 0
      %v1483 = vsel %vm471, %v1430, 0
      %1485 = vmatprep.subr.bf16.mxu0 0
      %1486 = vmatpush1.bf16.msra.mxu0 %v1483
      %1487 = vmatprep.subr.bf16.mxu0 0
      %1488 = vmatpush1.bf16.msra.mxu0 0
      %1489 = vmatprep.subr.bf16.mxu0 0
      %1490 = vmatpush1.bf16.msra.mxu0 0
      %1491 = vmatprep.subr.bf16.mxu0 0
      %1492 = vmatpush1.bf16.msra.mxu0 0
      %1493 = vmatprep.subr.bf16.mxu0 0
      %1494 = vmatpush1.bf16.msra.mxu0 0
      %1495 = vmatprep.subr.bf16.mxu0 0
      %1496 = vmatpush1.bf16.msra.mxu0 0
      %1497 = vmatprep.subr.bf16.mxu0 0
      %1498 = vmatpush1.bf16.msra.mxu0 0
      %1499 = vmatprep.subr.bf16.mxu0 0
      %1500 = vmatpush1.bf16.msra.mxu0 0
      %1501 = vmatprep.subr.bf16.mxu0 0
      %1502 = vmatpush1.bf16.msra.mxu0 0
      %1503 = vmatprep.subr.bf16.mxu0 0
      %1504 = vmatpush1.bf16.msra.mxu0 0
      %1505 = vmatprep.subr.bf16.mxu0 0
      %1506 = vmatpush1.bf16.msra.mxu0 0
      %1507 = vmatprep.subr.bf16.mxu0 0
      %1508 = vmatpush1.bf16.msra.mxu0 0
      %1509 = vmatprep.subr.bf16.mxu0 0
      %1510 = vmatpush1.bf16.msra.mxu0 0
      %1511 = vmatprep.subr.bf16.mxu0 0
      %1512 = vmatpush1.bf16.msra.mxu0 0
      %1513 = vmatprep.subr.bf16.mxu0 0
      %1514 = vmatpush1.bf16.msra.mxu0 0
      %1515 = vmatprep.subr.bf16.mxu0 0
      %1516 = vmatpush1.bf16.msra.mxu0 0
      %1517 = vmatprep.mubr.bf16.mxu0 0
      %1518 = vmatmul.mubr.bf16.gmra.mrb[0].mxu0 %v1432
      %v1519 = vpop.f32.mrb[0].mxu0
      %v1520 = vadd.f32 0.0, %v1519
      %v1521 = vpop.f32.mrb[0].mxu0
      %v1522 = vpop.f32.mrb[0].mxu0
      %v1523 = vadd.f32 0.0, %v1522
      %v1524 = vpop.f32.mrb[0].mxu0
      %1525 = vmatprep.mubr.bf16.mxu0 0
      %1526 = vmatmul.mubr.bf16.gmra.mrb[0].mxu0 %v1435
      %v1527 = vpop.f32.mrb[0].mxu0
      %v1528 = vadd.f32 0.0, %v1527
      %v1529 = vpop.f32.mrb[0].mxu0
      %v1530 = vpop.f32.mrb[0].mxu0
      %v1531 = vadd.f32 0.0, %v1530
      %v1532 = vpop.f32.mrb[0].mxu0
      %1533 = vmatprep.mubr.bf16.mxu0 0
      %1534 = vmatmul.mubr.bf16.gmra.mrb[0].mxu0 %v1438
      %v1535 = vpop.f32.mrb[0].mxu0
      %v1536 = vadd.f32 0.0, %v1535
      %v1537 = vpop.f32.mrb[0].mxu0
      %v1538 = vpop.f32.mrb[0].mxu0
      %v1539 = vadd.f32 0.0, %v1538
      %v1540 = vpop.f32.mrb[0].mxu0
      %1541 = vmatprep.mubr.bf16.mxu0 0
      %1542 = vmatmul.mubr.bf16.gmra.mrb[0].mxu0 %v1441
      %v1543 = vpop.f32.mrb[0].mxu0
      %v1544 = vadd.f32 0.0, %v1543
      %v1545 = vpop.f32.mrb[0].mxu0
      %v1546 = vpop.f32.mrb[0].mxu0
      %v1547 = vadd.f32 0.0, %v1546
      %v1548 = vpop.f32.mrb[0].mxu0
      %1549 = vmatprep.mubr.bf16.mxu0 0
      %1550 = vmatmul.mubr.bf16.gmra.mrb[0].mxu0 %v1444
      %v1551 = vpop.f32.mrb[0].mxu0
      %v1552 = vadd.f32 0.0, %v1551
      %v1553 = vpop.f32.mrb[0].mxu0
      %v1554 = vpop.f32.mrb[0].mxu0
      %v1555 = vadd.f32 0.0, %v1554
      %v1556 = vpop.f32.mrb[0].mxu0
      %1557 = vmatprep.mubr.bf16.mxu0 0
      %1558 = vmatmul.mubr.bf16.gmra.mrb[0].mxu0 %v1447
      %v1559 = vpop.f32.mrb[0].mxu0
      %v1560 = vadd.f32 0.0, %v1559
      %v1561 = vpop.f32.mrb[0].mxu0
      %v1562 = vpop.f32.mrb[0].mxu0
      %v1563 = vadd.f32 0.0, %v1562
      %v1564 = vpop.f32.mrb[0].mxu0
      %1565 = vmatprep.mubr.bf16.mxu0 0
      %1566 = vmatmul.mubr.bf16.gmra.mrb[0].mxu0 %v1450
      %v1567 = vpop.f32.mrb[0].mxu0
      %v1568 = vadd.f32 0.0, %v1567
      %v1569 = vpop.f32.mrb[0].mxu0
      %v1570 = vpop.f32.mrb[0].mxu0
      %v1571 = vadd.f32 0.0, %v1570
      %v1572 = vpop.f32.mrb[0].mxu0
      %1573 = vmatprep.mubr.bf16.mxu0 0
      %1574 = vmatmul.mubr.bf16.gmra.mrb[0].mxu0 %v1453
      %v1575 = vpop.f32.mrb[0].mxu0
      %v1576 = vadd.f32 0.0, %v1575
      %v1577 = vpop.f32.mrb[0].mxu0
      %v1578 = vpop.f32.mrb[0].mxu0
      %v1579 = vadd.f32 0.0, %v1578
      %v1580 = vpop.f32.mrb[0].mxu0
      %1581 = vmatprep.mubr.bf16.mxu0 0
      %1582 = vmatmul.mubr.bf16.gmra.mrb[0].mxu0 %v1456
      %v1583 = vpop.f32.mrb[0].mxu0
      %v1584 = vadd.f32 0.0, %v1583
      %v1585 = vpop.f32.mrb[0].mxu0
      %v1586 = vpop.f32.mrb[0].mxu0
      %v1587 = vadd.f32 0.0, %v1586
      %v1588 = vpop.f32.mrb[0].mxu0
      %1589 = vmatprep.mubr.bf16.mxu0 0
      %1590 = vmatmul.mubr.bf16.gmra.mrb[0].mxu0 %v1459
      %v1591 = vpop.f32.mrb[0].mxu0
      %v1592 = vadd.f32 0.0, %v1591
      %v1593 = vpop.f32.mrb[0].mxu0
      %v1594 = vpop.f32.mrb[0].mxu0
      %v1595 = vadd.f32 0.0, %v1594
      %v1596 = vpop.f32.mrb[0].mxu0
      %1597 = vmatprep.mubr.bf16.mxu0 0
      %1598 = vmatmul.mubr.bf16.gmra.mrb[0].mxu0 %v1462
      %v1599 = vpop.f32.mrb[0].mxu0
      %v1600 = vadd.f32 0.0, %v1599
      %v1601 = vpop.f32.mrb[0].mxu0
      %v1602 = vpop.f32.mrb[0].mxu0
      %v1603 = vadd.f32 0.0, %v1602
      %v1604 = vpop.f32.mrb[0].mxu0
      %1605 = vmatprep.mubr.bf16.mxu0 0
      %1606 = vmatmul.mubr.bf16.gmra.mrb[0].mxu0 %v1465
      %v1607 = vpop.f32.mrb[0].mxu0
      %v1608 = vadd.f32 0.0, %v1607
      %v1609 = vpop.f32.mrb[0].mxu0
      %v1610 = vpop.f32.mrb[0].mxu0
      %v1611 = vadd.f32 0.0, %v1610
      %v1612 = vpop.f32.mrb[0].mxu0
      %1613 = vmatprep.mubr.bf16.mxu0 0
      %1614 = vmatmul.mubr.bf16.gmra.mrb[0].mxu0 %v1468
      %v1615 = vpop.f32.mrb[0].mxu0
      %v1616 = vadd.f32 0.0, %v1615
      %v1617 = vpop.f32.mrb[0].mxu0
      %v1618 = vpop.f32.mrb[0].mxu0
      %v1619 = vadd.f32 0.0, %v1618
      %v1620 = vpop.f32.mrb[0].mxu0
      %1621 = vmatprep.mubr.bf16.mxu0 0
      %1622 = vmatmul.mubr.bf16.gmra.mrb[0].mxu0 %v1471
      %v1623 = vpop.f32.mrb[0].mxu0
      %v1624 = vadd.f32 0.0, %v1623
      %v1625 = vpop.f32.mrb[0].mxu0
      %v1626 = vpop.f32.mrb[0].mxu0
      %v1627 = vadd.f32 0.0, %v1626
      %v1628 = vpop.f32.mrb[0].mxu0
      %1629 = vmatprep.mubr.bf16.mxu0 0
      %1630 = vmatmul.mubr.bf16.gmra.mrb[0].mxu0 %v1474
      %v1631 = vpop.f32.mrb[0].mxu0
      %v1632 = vadd.f32 0.0, %v1631
      %v1633 = vpop.f32.mrb[0].mxu0
      %v1634 = vpop.f32.mrb[0].mxu0
      %v1635 = vadd.f32 0.0, %v1634
      %v1636 = vpop.f32.mrb[0].mxu0
      %1637 = vmatprep.mubr.bf16.mxu0 0
      %1638 = vmatmul.mubr.bf16.gmra.mrb[0].mxu0 %v1477
      %v1639 = vpop.f32.mrb[0].mxu0
      %v1640 = vadd.f32 0.0, %v1639
      %v1641 = vpop.f32.mrb[0].mxu0
      %v1642 = vpop.f32.mrb[0].mxu0
      %v1643 = vadd.f32 0.0, %v1642
      %v1644 = vpop.f32.mrb[0].mxu0
      %1645 = vmatprep.mubr.bf16.mxu0 0
      %1646 = vmatmul.mubr.bf16.gmra.mrb[0].mxu0 %v1480
      %v1647 = vpop.f32.mrb[0].mxu0
      %v1648 = vadd.f32 0.0, %v1647
      %v1649 = vpop.f32.mrb[0].mxu0
      %v1650 = vpop.f32.mrb[0].mxu0
      %v1651 = vadd.f32 0.0, %v1650
      %v1652 = vpop.f32.mrb[0].mxu0
      %1653 = vdwg.mxu0
      %v1654 = vadd.f32 %v1349, %v1520
      %v1655 = vadd.f32 %v1350, %v1523
      %v1656 = vadd.f32 %v1351, %v1528
      %v1657 = vadd.f32 %v1352, %v1531
      %v1658 = vadd.f32 %v1353, %v1536
      %v1659 = vadd.f32 %v1354, %v1539
      %v1660 = vadd.f32 %v1355, %v1544
      %v1661 = vadd.f32 %v1356, %v1547
      %v1662 = vadd.f32 %v1357, %v1552
      %v1663 = vadd.f32 %v1358, %v1555
      %v1664 = vadd.f32 %v1359, %v1560
      %v1665 = vadd.f32 %v1360, %v1563
      %v1666 = vadd.f32 %v1361, %v1568
      %v1667 = vadd.f32 %v1362, %v1571
      %v1668 = vadd.f32 %v1363, %v1576
      %v1669 = vadd.f32 %v1364, %v1579
      %v1670 = vadd.f32 %v1365, %v1584
      %v1671 = vadd.f32 %v1366, %v1587
      %v1672 = vadd.f32 %v1367, %v1592
      %v1673 = vadd.f32 %v1368, %v1595
      %v1674 = vadd.f32 %v1369, %v1600
      %v1675 = vadd.f32 %v1370, %v1603
      %v1676 = vadd.f32 %v1371, %v1608
      %v1677 = vadd.f32 %v1372, %v1611
      %v1678 = vadd.f32 %v1373, %v1616
      %v1679 = vadd.f32 %v1374, %v1619
      %v1680 = vadd.f32 %v1375, %v1624
      %v1681 = vadd.f32 %v1376, %v1627
      %v1682 = vadd.f32 %v1377, %v1632
      %v1683 = vadd.f32 %v1378, %v1635
      %v1684 = vadd.f32 %v1379, %v1640
      %v1685 = vadd.f32 %v1380, %v1643
      %v1686 = vadd.f32 %v1381, %v1648
      %v1687 = vadd.f32 %v1382, %v1651
      %vm1688 = vcmp.ge.f32.partialorder %v1654, 0.0
      %vm1689 = vcmp.ge.f32.partialorder %v1655, 0.0
      %vm1690 = vcmp.ge.f32.partialorder %v1656, 0.0
      %vm1691 = vcmp.ge.f32.partialorder %v1657, 0.0
      %vm1692 = vcmp.ge.f32.partialorder %v1658, 0.0
      %vm1693 = vcmp.ge.f32.partialorder %v1659, 0.0
      %vm1694 = vcmp.ge.f32.partialorder %v1660, 0.0
      %vm1695 = vcmp.ge.f32.partialorder %v1661, 0.0
      %vm1696 = vcmp.ge.f32.partialorder %v1662, 0.0
      %vm1697 = vcmp.ge.f32.partialorder %v1663, 0.0
      %vm1698 = vcmp.ge.f32.partialorder %v1664, 0.0
      %vm1699 = vcmp.ge.f32.partialorder %v1665, 0.0
      %vm1700 = vcmp.ge.f32.partialorder %v1666, 0.0
      %vm1701 = vcmp.ge.f32.partialorder %v1667, 0.0
      %vm1702 = vcmp.ge.f32.partialorder %v1668, 0.0
      %vm1703 = vcmp.ge.f32.partialorder %v1669, 0.0
      %vm1704 = vcmp.ge.f32.partialorder %v1670, 0.0
      %vm1705 = vcmp.ge.f32.partialorder %v1671, 0.0
      %vm1706 = vcmp.ge.f32.partialorder %v1672, 0.0
      %vm1707 = vcmp.ge.f32.partialorder %v1673, 0.0
      %vm1708 = vcmp.ge.f32.partialorder %v1674, 0.0
      %vm1709 = vcmp.ge.f32.partialorder %v1675, 0.0
      %vm1710 = vcmp.ge.f32.partialorder %v1676, 0.0
      %vm1711 = vcmp.ge.f32.partialorder %v1677, 0.0
      %vm1712 = vcmp.ge.f32.partialorder %v1678, 0.0
      %vm1713 = vcmp.ge.f32.partialorder %v1679, 0.0
      %vm1714 = vcmp.ge.f32.partialorder %v1680, 0.0
      %vm1715 = vcmp.ge.f32.partialorder %v1681, 0.0
      %vm1716 = vcmp.ge.f32.partialorder %v1682, 0.0
      %vm1717 = vcmp.ge.f32.partialorder %v1683, 0.0
      %vm1718 = vcmp.ge.f32.partialorder %v1684, 0.0
      %vm1719 = vcmp.ge.f32.partialorder %v1685, 0.0
      %vm1720 = vcmp.ge.f32.partialorder %v1686, 0.0
      %vm1721 = vcmp.ge.f32.partialorder %v1687, 0.0
      %v1722 = vmul.f32 %v1654, 0.2
      %v1723 = vmul.f32 %v1655, 0.2
      %v1724 = vmul.f32 %v1656, 0.2
      %v1725 = vmul.f32 %v1657, 0.2
      %v1726 = vmul.f32 %v1658, 0.2
      %v1727 = vmul.f32 %v1659, 0.2
      %v1728 = vmul.f32 %v1660, 0.2
      %v1729 = vmul.f32 %v1661, 0.2
      %v1730 = vmul.f32 %v1662, 0.2
      %v1731 = vmul.f32 %v1663, 0.2
      %v1732 = vmul.f32 %v1664, 0.2
      %v1733 = vmul.f32 %v1665, 0.2
      %v1734 = vmul.f32 %v1666, 0.2
      %v1735 = vmul.f32 %v1667, 0.2
      %v1736 = vmul.f32 %v1668, 0.2
      %v1737 = vmul.f32 %v1669, 0.2
      %v1738 = vmul.f32 %v1670, 0.2
      %v1739 = vmul.f32 %v1671, 0.2
      %v1740 = vmul.f32 %v1672, 0.2
      %v1741 = vmul.f32 %v1673, 0.2
      %v1742 = vmul.f32 %v1674, 0.2
      %v1743 = vmul.f32 %v1675, 0.2
      %v1744 = vmul.f32 %v1676, 0.2
      %v1745 = vmul.f32 %v1677, 0.2
      %v1746 = vmul.f32 %v1678, 0.2
      %v1747 = vmul.f32 %v1679, 0.2
      %v1748 = vmul.f32 %v1680, 0.2
      %v1749 = vmul.f32 %v1681, 0.2
      %v1750 = vmul.f32 %v1682, 0.2
      %v1751 = vmul.f32 %v1683, 0.2
      %v1752 = vmul.f32 %v1684, 0.2
      %v1753 = vmul.f32 %v1685, 0.2
      %v1754 = vmul.f32 %v1686, 0.2
      %v1755 = vmul.f32 %v1687, 0.2
      %v1756 = vsel %vm1688, %v1654, %v1722
      %v1757 = vsel %vm1689, %v1655, %v1723
      %v1758 = vsel %vm1690, %v1656, %v1724
      %v1759 = vsel %vm1691, %v1657, %v1725
      %v1760 = vsel %vm1692, %v1658, %v1726
      %v1761 = vsel %vm1693, %v1659, %v1727
      %v1762 = vsel %vm1694, %v1660, %v1728
      %v1763 = vsel %vm1695, %v1661, %v1729
      %v1764 = vsel %vm1696, %v1662, %v1730
      %v1765 = vsel %vm1697, %v1663, %v1731
      %v1766 = vsel %vm1698, %v1664, %v1732
      %v1767 = vsel %vm1699, %v1665, %v1733
      %v1768 = vsel %vm1700, %v1666, %v1734
      %v1769 = vsel %vm1701, %v1667, %v1735
      %v1770 = vsel %vm1702, %v1668, %v1736
      %v1771 = vsel %vm1703, %v1669, %v1737
      %v1772 = vsel %vm1704, %v1670, %v1738
      %v1773 = vsel %vm1705, %v1671, %v1739
      %v1774 = vsel %vm1706, %v1672, %v1740
      %v1775 = vsel %vm1707, %v1673, %v1741
      %v1776 = vsel %vm1708, %v1674, %v1742
      %v1777 = vsel %vm1709, %v1675, %v1743
      %v1778 = vsel %vm1710, %v1676, %v1744
      %v1779 = vsel %vm1711, %v1677, %v1745
      %v1780 = vsel %vm1712, %v1678, %v1746
      %v1781 = vsel %vm1713, %v1679, %v1747
      %v1782 = vsel %vm1714, %v1680, %v1748
      %v1783 = vsel %vm1715, %v1681, %v1749
      %v1784 = vsel %vm1716, %v1682, %v1750
      %v1785 = vsel %vm1717, %v1683, %v1751
      %v1786 = vsel %vm1718, %v1684, %v1752
      %v1787 = vsel %vm1719, %v1685, %v1753
      %v1788 = vsel %vm1720, %v1686, %v1754
      %v1789 = vsel %vm1721, %v1687, %v1755
      %v1790 = vpack.c.bf16 %v1757, %v1756
      %v1791 = vpack.c.bf16 %v1759, %v1758
      %v1792 = vpack.c.bf16 %v1761, %v1760
      %v1793 = vpack.c.bf16 %v1763, %v1762
      %v1794 = vpack.c.bf16 %v1765, %v1764
      %v1795 = vpack.c.bf16 %v1767, %v1766
      %v1796 = vpack.c.bf16 %v1769, %v1768
      %v1797 = vpack.c.bf16 %v1771, %v1770
      %v1798 = vpack.c.bf16 %v1773, %v1772
      %v1799 = vpack.c.bf16 %v1775, %v1774
      %v1800 = vpack.c.bf16 %v1777, %v1776
      %v1801 = vpack.c.bf16 %v1779, %v1778
      %v1802 = vpack.c.bf16 %v1781, %v1780
      %v1803 = vpack.c.bf16 %v1783, %v1782
      %v1804 = vpack.c.bf16 %v1785, %v1784
      %v1805 = vpack.c.bf16 %v1787, %v1786
      %v1806 = vpack.c.bf16 %v1789, %v1788
      %v1824 = vunpack.c.l.b16 %v1790
      %v1825 = vunpack.c.h.b16 %v1790
      %v1826 = vunpack.c.l.b16 %v1791
      %v1827 = vunpack.c.h.b16 %v1791
      %v1828 = vunpack.c.l.b16 %v1792
      %v1829 = vunpack.c.h.b16 %v1792
      %v1830 = vunpack.c.l.b16 %v1793
      %v1831 = vunpack.c.h.b16 %v1793
      %v1832 = vunpack.c.l.b16 %v1794
      %v1833 = vunpack.c.h.b16 %v1794
      %v1834 = vunpack.c.l.b16 %v1795
      %v1835 = vunpack.c.h.b16 %v1795
      %v1836 = vunpack.c.l.b16 %v1796
      %v1837 = vunpack.c.h.b16 %v1796
      %v1838 = vunpack.c.l.b16 %v1797
      %v1839 = vunpack.c.h.b16 %v1797
      %v1840 = vunpack.c.l.b16 %v1798
      %v1841 = vunpack.c.h.b16 %v1798
      %v1842 = vunpack.c.l.b16 %v1799
      %v1843 = vunpack.c.h.b16 %v1799
      %v1844 = vunpack.c.l.b16 %v1800
      %v1845 = vunpack.c.h.b16 %v1800
      %v1846 = vunpack.c.l.b16 %v1801
      %v1847 = vunpack.c.h.b16 %v1801
      %v1848 = vunpack.c.l.b16 %v1802
      %v1849 = vunpack.c.h.b16 %v1802
      %v1850 = vunpack.c.l.b16 %v1803
      %v1851 = vunpack.c.h.b16 %v1803
      %v1852 = vunpack.c.l.b16 %v1804
      %v1853 = vunpack.c.h.b16 %v1804
      %v1854 = vunpack.c.l.b16 %v1805
      %v1855 = vunpack.c.h.b16 %v1805
      %v1856 = vunpack.c.l.b16 %v1806
      %v1857 = vunpack.c.h.b16 %v1806
      %v1858 = vpack.c.b16 %v1824, %v1824
      %v1859 = vpack.c.b16 %v1825, %v1825
      %v1860 = vpack.c.b16 %v1826, %v1826
      %v1861 = vpack.c.b16 %v1827, %v1827
      %v1862 = vpack.c.b16 %v1828, %v1828
      %v1863 = vpack.c.b16 %v1829, %v1829
      %v1864 = vpack.c.b16 %v1830, %v1830
      %v1865 = vpack.c.b16 %v1831, %v1831
      %v1866 = vpack.c.b16 %v1832, %v1832
      %v1867 = vpack.c.b16 %v1833, %v1833
      %v1868 = vpack.c.b16 %v1834, %v1834
      %v1869 = vpack.c.b16 %v1835, %v1835
      %v1870 = vpack.c.b16 %v1836, %v1836
      %v1871 = vpack.c.b16 %v1837, %v1837
      %v1872 = vpack.c.b16 %v1838, %v1838
      %v1873 = vpack.c.b16 %v1839, %v1839
      %v1874 = vpack.c.b16 %v1840, %v1840
      %v1875 = vpack.c.b16 %v1841, %v1841
      %v1876 = vpack.c.b16 %v1842, %v1842
      %v1877 = vpack.c.b16 %v1843, %v1843
      %v1878 = vpack.c.b16 %v1844, %v1844
      %v1879 = vpack.c.b16 %v1845, %v1845
      %v1880 = vpack.c.b16 %v1846, %v1846
      %v1881 = vpack.c.b16 %v1847, %v1847
      %v1882 = vpack.c.b16 %v1848, %v1848
      %v1883 = vpack.c.b16 %v1849, %v1849
      %v1884 = vpack.c.b16 %v1850, %v1850
      %v1885 = vpack.c.b16 %v1851, %v1851
      %v1886 = vpack.c.b16 %v1852, %v1852
      %v1887 = vpack.c.b16 %v1853, %v1853
      %v1888 = vpack.c.b16 %v1854, %v1854
      %v1889 = vpack.c.b16 %v1855, %v1855
      %v1890 = vpack.c.b16 %v1856, %v1856
      %v1891 = vpack.c.b16 %v1857, %v1857
      %vm1926 = vcmask 519168
      %1927 = vst.msk [vmem:[%s143] sm:$0xf] %vm1926, %v1858
      %1928 = vst.msk [vmem:[%s143 + $0x4] sm:$0xf] %vm1926, %v1859
      %1929 = vst.msk [vmem:[%s143 + $0x8] sm:$0xf] %vm1926, %v1860
      %1930 = vst.msk [vmem:[%s143 + $0xc] sm:$0xf] %vm1926, %v1861
      %1931 = vst.msk [vmem:[%s143 + $0x10] sm:$0xf] %vm1926, %v1862
      %1932 = vst.msk [vmem:[%s143 + $0x14] sm:$0xf] %vm1926, %v1863
      %1933 = vst.msk [vmem:[%s143 + $0x18] sm:$0xf] %vm1926, %v1864
      %1934 = vst.msk [vmem:[%s143 + $0x1c] sm:$0xf] %vm1926, %v1865
      %1935 = vst.msk [vmem:[%s143 + $0x20] sm:$0xf] %vm1926, %v1866
      %1936 = vst.msk [vmem:[%s143 + $0x24] sm:$0xf] %vm1926, %v1867
      %1937 = vst.msk [vmem:[%s143 + $0x28] sm:$0xf] %vm1926, %v1868
      %1938 = vst.msk [vmem:[%s143 + $0x2c] sm:$0xf] %vm1926, %v1869
      %1939 = vst.msk [vmem:[%s143 + $0x30] sm:$0xf] %vm1926, %v1870
      %1940 = vst.msk [vmem:[%s143 + $0x34] sm:$0xf] %vm1926, %v1871
      %1941 = vst.msk [vmem:[%s143 + $0x38] sm:$0xf] %vm1926, %v1872
      %1942 = vst.msk [vmem:[%s143 + $0x3c] sm:$0xf] %vm1926, %v1873
      %1943 = vst.msk [vmem:[%s143 + $0x40] sm:$0xf] %vm1926, %v1874
      %1944 = vst.msk [vmem:[%s143 + $0x44] sm:$0xf] %vm1926, %v1875
      %1945 = vst.msk [vmem:[%s143 + $0x48] sm:$0xf] %vm1926, %v1876
      %1946 = vst.msk [vmem:[%s143 + $0x4c] sm:$0xf] %vm1926, %v1877
      %1947 = vst.msk [vmem:[%s143 + $0x50] sm:$0xf] %vm1926, %v1878
      %1948 = vst.msk [vmem:[%s143 + $0x54] sm:$0xf] %vm1926, %v1879
      %1949 = vst.msk [vmem:[%s143 + $0x58] sm:$0xf] %vm1926, %v1880
      %1950 = vst.msk [vmem:[%s143 + $0x5c] sm:$0xf] %vm1926, %v1881
      %1951 = vst.msk [vmem:[%s143 + $0x60] sm:$0xf] %vm1926, %v1882
      %1952 = vst.msk [vmem:[%s143 + $0x64] sm:$0xf] %vm1926, %v1883
      %1953 = vst.msk [vmem:[%s143 + $0x68] sm:$0xf] %vm1926, %v1884
      %1954 = vst.msk [vmem:[%s143 + $0x6c] sm:$0xf] %vm1926, %v1885
      %1955 = vst.msk [vmem:[%s143 + $0x70] sm:$0xf] %vm1926, %v1886
      %1956 = vst.msk [vmem:[%s143 + $0x74] sm:$0xf] %vm1926, %v1887
      %1957 = vst.msk [vmem:[%s143 + $0x78] sm:$0xf] %vm1926, %v1888
      %1958 = vst.msk [vmem:[%s143 + $0x7c] sm:$0xf] %vm1926, %v1889
      %1959 = vst.msk [vmem:[%s143 + $0x80] sm:$0xf] %vm1926, %v1890
      %1960 = vst.msk [vmem:[%s143 + $0x84] sm:$0xf] %vm1926, %v1891
      %p1961 = scmp.lt.s32.totalorder %s13, 1
      %s1962 = scalar_select %p1961, %s13, 1
      %s1963 = smul.addr %s1962, 34
      %s1964 = smul.addr %s1963, 4
      %s1965 = scalar_lea.vmem %s2, %s1964
      // Predicated region
      $region29: #{discriminator_sec_forward.5} parent=27 // pred_check
        %p1966 = pneg %p78
      $region30: #{discriminator_sec_forward.5} parent=27 // pred_check_branch
        %1968 = sbr.rel (%p1966) target = $region32
      $region31: #{discriminator_sec_forward.5} parent=27 // pred_region
        _
      $region32: #{discriminator_sec_forward.5} parent=27 // pred_fallthru
        _
    $region28: #{discriminator_sec_forward.5} parent=5 // pred_fallthru
      _
    %p1969 = scmp.le.s32.totalorder 2, %s8
    // Predicated region
    $region33: #{discriminator_sec_forward.5} parent=5 // pred_check
      %p1970 = pneg %p1969
    $region34: #{discriminator_sec_forward.5} parent=5 // pred_check_branch
      %1972 = sbr.rel (%p1970) target = $region36
    $region35: #{discriminator_sec_forward.5} parent=5 // pred_region
      %s1973 = ssub.s32 %s8, 2
      // Predicated region
      $region37: #{discriminator_sec_forward.5} parent=35 // pred_check
        %p1974 = pneg %p84
      $region38: #{discriminator_sec_forward.5} parent=35 // pred_check_branch
        %1976 = sbr.rel (%p1974) target = $region40
      $region39: #{discriminator_sec_forward.5} parent=35 // pred_region
        %p1977 = scmp.lt.s32.totalorder %s14, 1
        %s1978 = scalar_select %p1977, %s14, 1
        %s1979 = smul.addr %s1978, 34
        %s1980 = smul.addr %s1979, 4
        %s1981 = scalar_lea.vmem %s2, %s1980
      $region40: #{discriminator_sec_forward.5} parent=35 // pred_fallthru
        _
    $region36: #{discriminator_sec_forward.5} parent=5 // pred_fallthru
      _
  $region6: #{discriminator_sec_forward.5} parent=0 // loop_footer
    %s12 = sadd.s32 1, %s8
  $region7: #{discriminator_sec_forward.5} parent=0 // loop_footer_branch
    %7 = sbr.rel target = $region3
  $region8: #{discriminator_sec_forward.5} parent=0 // loop_exit
    _

// kernel: discriminator_sec_forward.7
$region0: #{discriminator_sec_forward.7}
  #allocation0 [shape = 'u32[]', space=smem, size = 0x4, offset = 0x4, fixed_abs, tag = 'smem constant byte address 0x4 - core index']
  #allocation1 [shape = 'u32[144,128]{1,0:T(1,128)}', space=vmem, size = 0x12000, scoped, tag = 'internal scratch']
  %s0 = inlined_call_operand.vmem [shape: bf16[144,128], index: 0, kind: input, shape index: {}]
  %s1 = inlined_call_operand.vmem [shape: f32[1,128], index: 1, kind: input, shape index: {}]
  %s2 = inlined_call_operand.vmem [shape: f32[1,128], index: 2, kind: input, shape index: {}]
  %s3 = inlined_call_operand.vmem [shape: bf16[144,128], index: 3, kind: output, shape index: {}]
  %s4 = sld [smem:[#allocation0]]
  $region22: #{discriminator_sec_forward.7} parent=0
    _
  %s6 = ssub.s32 1, %s4
  %s7 = scalar_select 0, %s6, %s4
  // Predicated region
  $region2: #{discriminator_sec_forward.7} parent=0 // pred_check
    _
  $region3: #{discriminator_sec_forward.7} parent=0 // pred_check_branch
    %9 = sbr.rel (0) target = $region5
  $region4: #{discriminator_sec_forward.7} parent=0 // pred_region
    _
  $region5: #{discriminator_sec_forward.7} parent=0 // pred_fallthru
    _
  // Predicated region
  $region6: #{discriminator_sec_forward.7} parent=0 // pred_check
    _
  $region7: #{discriminator_sec_forward.7} parent=0 // pred_check_branch
    %11 = sbr.rel (0) target = $region9
  $region8: #{discriminator_sec_forward.7} parent=0 // pred_region
    _
  $region9: #{discriminator_sec_forward.7} parent=0 // pred_fallthru
    _
  // Predicated region
  $region10: #{discriminator_sec_forward.7} parent=0 // pred_check
    _
  $region11: #{discriminator_sec_forward.7} parent=0 // pred_check_branch
    %13 = sbr.rel (0) target = $region13
  $region12: #{discriminator_sec_forward.7} parent=0 // pred_region
    _
  $region13: #{discriminator_sec_forward.7} parent=0 // pred_fallthru
    _
  %v14 = vld [vmem:[%s0] sm:$0xf]
  %v15 = vld [vmem:[%s0 + $0x4] sm:$0xf]
  %v16 = vld [vmem:[%s0 + $0x8] sm:$0xf]
  %v17 = vld [vmem:[%s0 + $0xc] sm:$0xf]
  %v18 = vld [vmem:[%s0 + $0x10] sm:$0xf]
  %v19 = vld [vmem:[%s0 + $0x14] sm:$0xf]
  %v20 = vld [vmem:[%s0 + $0x18] sm:$0xf]
  %v21 = vld [vmem:[%s0 + $0x1c] sm:$0xf]
  %v22 = vld [vmem:[%s0 + $0x20] sm:$0xf]
  %v23 = vld [vmem:[%s0 + $0x24] sm:$0xf]
  %v24 = vld [vmem:[%s0 + $0x28] sm:$0xf]
  %v25 = vld [vmem:[%s0 + $0x2c] sm:$0xf]
  %v26 = vld [vmem:[%s0 + $0x30] sm:$0xf]
  %v27 = vld [vmem:[%s0 + $0x34] sm:$0xf]
  %v28 = vld [vmem:[%s0 + $0x38] sm:$0xf]
  %v29 = vld [vmem:[%s0 + $0x3c] sm:$0xf]
  %v30 = vld [vmem:[%s0 + $0x40] sm:$0xf]
  %v31 = vld [vmem:[%s0 + $0x44] sm:$0xf]
  %v32 = vunpack.c.l.bf16 %v14
  %v33 = vunpack.c.l.bf16 %v15
  %v34 = vunpack.c.l.bf16 %v16
  %v35 = vunpack.c.l.bf16 %v17
  %v36 = vunpack.c.l.bf16 %v18
  %v37 = vunpack.c.l.bf16 %v19
  %v38 = vunpack.c.l.bf16 %v20
  %v39 = vunpack.c.l.bf16 %v21
  %v40 = vunpack.c.l.bf16 %v22
  %v41 = vunpack.c.l.bf16 %v23
  %v42 = vunpack.c.l.bf16 %v24
  %v43 = vunpack.c.l.bf16 %v25
  %v44 = vunpack.c.l.bf16 %v26
  %v45 = vunpack.c.l.bf16 %v27
  %v46 = vunpack.c.l.bf16 %v28
  %v47 = vunpack.c.l.bf16 %v29
  %v48 = vunpack.c.l.bf16 %v30
  %v49 = vunpack.c.l.bf16 %v31
  %v50 = vld [vmem:[%s1] sm:$0x1]
  %v52 = vlaneseq
  %v53 = vshrl.u32 %v52, 7
  %v54 = vsub.s32 0, %v53
  %v55 = vrot.slane %v50, %v54
  %v57 = vmul.f32 %v32, %v55
  %v58 = vmul.f32 %v33, %v55
  %v59 = vmul.f32 %v34, %v55
  %v60 = vmul.f32 %v35, %v55
  %v61 = vmul.f32 %v36, %v55
  %v62 = vmul.f32 %v37, %v55
  %v63 = vmul.f32 %v38, %v55
  %v64 = vmul.f32 %v39, %v55
  %v65 = vmul.f32 %v40, %v55
  %v66 = vmul.f32 %v41, %v55
  %v67 = vmul.f32 %v42, %v55
  %v68 = vmul.f32 %v43, %v55
  %v69 = vmul.f32 %v44, %v55
  %v70 = vmul.f32 %v45, %v55
  %v71 = vmul.f32 %v46, %v55
  %v72 = vmul.f32 %v47, %v55
  %v73 = vmul.f32 %v48, %v55
  %v74 = vmul.f32 %v49, %v55
  %v75 = vld [vmem:[%s2] sm:$0x1]
  %v77 = vlaneseq
  %v78 = vshrl.u32 %v77, 7
  %v79 = vsub.s32 0, %v78
  %v80 = vrot.slane %v75, %v79
  %v82 = vadd.f32 %v57, %v80
  %v83 = vadd.f32 %v58, %v80
  %v84 = vadd.f32 %v59, %v80
  %v85 = vadd.f32 %v60, %v80
  %v86 = vadd.f32 %v61, %v80
  %v87 = vadd.f32 %v62, %v80
  %v88 = vadd.f32 %v63, %v80
  %v89 = vadd.f32 %v64, %v80
  %v90 = vadd.f32 %v65, %v80
  %v91 = vadd.f32 %v66, %v80
  %v92 = vadd.f32 %v67, %v80
  %v93 = vadd.f32 %v68, %v80
  %v94 = vadd.f32 %v69, %v80
  %v95 = vadd.f32 %v70, %v80
  %v96 = vadd.f32 %v71, %v80
  %v97 = vadd.f32 %v72, %v80
  %v98 = vadd.f32 %v73, %v80
  %v99 = vadd.f32 %v74, %v80
  %vm100 = vcmp.ge.f32.partialorder %v82, 0.0
  %vm101 = vcmp.ge.f32.partialorder %v83, 0.0
  %vm102 = vcmp.ge.f32.partialorder %v84, 0.0
  %vm103 = vcmp.ge.f32.partialorder %v85, 0.0
  %vm104 = vcmp.ge.f32.partialorder %v86, 0.0
  %vm105 = vcmp.ge.f32.partialorder %v87, 0.0
  %vm106 = vcmp.ge.f32.partialorder %v88, 0.0
  %vm107 = vcmp.ge.f32.partialorder %v89, 0.0
  %vm108 = vcmp.ge.f32.partialorder %v90, 0.0
  %vm109 = vcmp.ge.f32.partialorder %v91, 0.0
  %vm110 = vcmp.ge.f32.partialorder %v92, 0.0
  %vm111 = vcmp.ge.f32.partialorder %v93, 0.0
  %vm112 = vcmp.ge.f32.partialorder %v94, 0.0
  %vm113 = vcmp.ge.f32.partialorder %v95, 0.0
  %vm114 = vcmp.ge.f32.partialorder %v96, 0.0
  %vm115 = vcmp.ge.f32.partialorder %v97, 0.0
  %vm116 = vcmp.ge.f32.partialorder %v98, 0.0
  %vm117 = vcmp.ge.f32.partialorder %v99, 0.0
  %v118 = vmul.f32 %v82, 0.2
  %v119 = vmul.f32 %v83, 0.2
  %v120 = vmul.f32 %v84, 0.2
  %v121 = vmul.f32 %v85, 0.2
  %v122 = vmul.f32 %v86, 0.2
  %v123 = vmul.f32 %v87, 0.2
  %v124 = vmul.f32 %v88, 0.2
  %v125 = vmul.f32 %v89, 0.2
  %v126 = vmul.f32 %v90, 0.2
  %v127 = vmul.f32 %v91, 0.2
  %v128 = vmul.f32 %v92, 0.2
  %v129 = vmul.f32 %v93, 0.2
  %v130 = vmul.f32 %v94, 0.2
  %v131 = vmul.f32 %v95, 0.2
  %v132 = vmul.f32 %v96, 0.2
  %v133 = vmul.f32 %v97, 0.2
  %v134 = vmul.f32 %v98, 0.2
  %v135 = vmul.f32 %v99, 0.2
  %v136 = vsel %vm100, %v82, %v118
  %v137 = vsel %vm101, %v83, %v119
  %v138 = vsel %vm102, %v84, %v120
  %v139 = vsel %vm103, %v85, %v121
  %v140 = vsel %vm104, %v86, %v122
  %v141 = vsel %vm105, %v87, %v123
  %v142 = vsel %vm106, %v88, %v124
  %v143 = vsel %vm107, %v89, %v125
  %v144 = vsel %vm108, %v90, %v126
  %v145 = vsel %vm109, %v91, %v127
  %v146 = vsel %vm110, %v92, %v128
  %v147 = vsel %vm111, %v93, %v129
  %v148 = vsel %vm112, %v94, %v130
  %v149 = vsel %vm113, %v95, %v131
  %v150 = vsel %vm114, %v96, %v132
  %v151 = vsel %vm115, %v97, %v133
  %v152 = vsel %vm116, %v98, %v134
  %v153 = vsel %vm117, %v99, %v135
  %v154 = vpack.c.bf16 %v137, %v136
  %v155 = vpack.c.bf16 %v139, %v138
  %v156 = vpack.c.bf16 %v141, %v140
  %v157 = vpack.c.bf16 %v143, %v142
  %v158 = vpack.c.bf16 %v145, %v144
  %v159 = vpack.c.bf16 %v147, %v146
  %v160 = vpack.c.bf16 %v149, %v148
  %v161 = vpack.c.bf16 %v151, %v150
  %v162 = vpack.c.bf16 %v153, %v152
  %v172 = vunpack.c.l.b16 %v154
  %v173 = vunpack.c.h.b16 %v154
  %v174 = vunpack.c.l.b16 %v155
  %v175 = vunpack.c.h.b16 %v155
  %v176 = vunpack.c.l.b16 %v156
  %v177 = vunpack.c.h.b16 %v156
  %v178 = vunpack.c.l.b16 %v157
  %v179 = vunpack.c.h.b16 %v157
  %v180 = vunpack.c.l.b16 %v158
  %v181 = vunpack.c.h.b16 %v158
  %v182 = vunpack.c.l.b16 %v159
  %v183 = vunpack.c.h.b16 %v159
  %v184 = vunpack.c.l.b16 %v160
  %v185 = vunpack.c.h.b16 %v160
  %v186 = vunpack.c.l.b16 %v161
  %v187 = vunpack.c.h.b16 %v161
  %v188 = vunpack.c.l.b16 %v162
  %v189 = vunpack.c.h.b16 %v162
  %v190 = vpack.c.b16 %v172, %v172
  %v191 = vpack.c.b16 %v173, %v173
  %v192 = vpack.c.b16 %v174, %v174
  %v193 = vpack.c.b16 %v175, %v175
  %v194 = vpack.c.b16 %v176, %v176
  %v195 = vpack.c.b16 %v177, %v177
  %v196 = vpack.c.b16 %v178, %v178
  %v197 = vpack.c.b16 %v179, %v179
  %v198 = vpack.c.b16 %v180, %v180
  %v199 = vpack.c.b16 %v181, %v181
  %v200 = vpack.c.b16 %v182, %v182
  %v201 = vpack.c.b16 %v183, %v183
  %v202 = vpack.c.b16 %v184, %v184
  %v203 = vpack.c.b16 %v185, %v185
  %v204 = vpack.c.b16 %v186, %v186
  %v205 = vpack.c.b16 %v187, %v187
  %v206 = vpack.c.b16 %v188, %v188
  %v207 = vpack.c.b16 %v189, %v189
  %226 = vst [vmem:[%s3] sm:$0xf] %v190
  %227 = vst [vmem:[%s3 + $0x4] sm:$0xf] %v191
  %228 = vst [vmem:[%s3 + $0x8] sm:$0xf] %v192
  %229 = vst [vmem:[%s3 + $0xc] sm:$0xf] %v193
  %230 = vst [vmem:[%s3 + $0x10] sm:$0xf] %v194
  %231 = vst [vmem:[%s3 + $0x14] sm:$0xf] %v195
  %232 = vst [vmem:[%s3 + $0x18] sm:$0xf] %v196
  %233 = vst [vmem:[%s3 + $0x1c] sm:$0xf] %v197
  %234 = vst [vmem:[%s3 + $0x20] sm:$0xf] %v198
  %235 = vst [vmem:[%s3 + $0x24] sm:$0xf] %v199
  %236 = vst [vmem:[%s3 + $0x28] sm:$0xf] %v200
  %237 = vst [vmem:[%s3 + $0x2c] sm:$0xf] %v201
  %238 = vst [vmem:[%s3 + $0x30] sm:$0xf] %v202
  %239 = vst [vmem:[%s3 + $0x34] sm:$0xf] %v203
  %240 = vst [vmem:[%s3 + $0x38] sm:$0xf] %v204
  %241 = vst [vmem:[%s3 + $0x3c] sm:$0xf] %v205
  %242 = vst [vmem:[%s3 + $0x40] sm:$0xf] %v206
  %243 = vst [vmem:[%s3 + $0x44] sm:$0xf] %v207
  // Predicated region
  $region14: #{discriminator_sec_forward.7} parent=0 // pred_check
    _
  $region15: #{discriminator_sec_forward.7} parent=0 // pred_check_branch
    %245 = sbr.rel (0) target = $region17
  $region16: #{discriminator_sec_forward.7} parent=0 // pred_region
    _
  $region17: #{discriminator_sec_forward.7} parent=0 // pred_fallthru
    _
  // Predicated region
  $region18: #{discriminator_sec_forward.7} parent=0 // pred_check
    _
  $region19: #{discriminator_sec_forward.7} parent=0 // pred_check_branch
    %247 = sbr.rel (0) target = $region21
  $region20: #{discriminator_sec_forward.7} parent=0 // pred_region
    _
  $region21: #{discriminator_sec_forward.7} parent=0 // pred_fallthru
    _

// kernel: discriminator_sec_forward.6
$region0: #{discriminator_sec_forward.6}
  #allocation0 [shape = 'u32[]', space=smem, size = 0x4, offset = 0x4, fixed_abs, tag = 'smem constant byte address 0x4 - core index']
  #allocation1 [shape = 'u32[144,128]{1,0:T(1,128)}', space=vmem, size = 0x12000, scoped, tag = 'internal scratch']
  %s0 = inlined_call_operand.vmem [shape: bf16[2,89,256], index: 0, kind: input, shape index: {}]
  %s1 = inlined_call_operand.vmem [shape: bf16[4,256,128], index: 1, kind: input, shape index: {}]
  %s2 = inlined_call_operand.vmem [shape: bf16[2,72,128], index: 2, kind: output, shape index: {0}]
  %s3 = inlined_call_operand.vmem [shape: f32[2,1,128], index: 3, kind: output, shape index: {1}]
  %s4 = inlined_call_operand.vmem [shape: f32[2,1,128], index: 4, kind: output, shape index: {2}]
  %5 = xla_tuple %s2, %s3, %s4
  %s6 = sld [smem:[#allocation0]]
  $region57: #{discriminator_sec_forward.6} parent=0
    _
  %s8 = ssub.s32 1, %s6
  %s9 = scalar_select 0, %s8, %s6
  loop: start=0, step=1, limit=4
  $region2: #{discriminator_sec_forward.6} parent=0 // loop_pre_header
    _
  $region3: #{discriminator_sec_forward.6} parent=0 // loop_header
    %s11 = sphi 0, %s15
    %p12 = scmp.ge.s32.totalorder %s11, 4
    %s21 = sphi 0, %s23
    %s24 = sphi 0, %s21
    %s25 = sphi 0, %s24
    %s41 = sphi 0, %s25
    %s45 = sphi 0, %s45
    %s47 = sphi 0, %s45
    %s48 = sphi 0, %s47
    %s62 = sphi 0, %s48
    %s68 = sphi 0, %s70
    %s71 = sphi 0, %s68
    %s72 = sphi 0, %s71
    %s88 = sphi 0, %s72
    %s94 = sphi 0, %s96
    %s97 = sphi 0, %s94
    %s98 = sphi 0, %s97
    %s114 = sphi 0, %s98
    %s120 = sphi 0, %s122
    %s123 = sphi 0, %s120
    %s124 = sphi 0, %s123
    %s140 = sphi 0, %s124
  $region4: #{discriminator_sec_forward.6} parent=0 // loop_header_branch
    %14 = sbr.rel (%p12) target = $region8
  $region5: #{discriminator_sec_forward.6} parent=0 // loop_body
    %s16 = ssub.s32 %s11, 1
    %s17 = ssub.s32 %s11, 2
    %s18 = sadd.s32 %s11, 1
    %s19 = ssub.s32 %s11, %s18
    %p20 = scmp.eq.s32.totalorder %s19, 0
    %s22 = sadd.s32 %s21, 1
    %s23 = scalar_select %p20, %s21, %s22
    %p26 = pneg %p20
    %p27 = scmp.eq.s32.totalorder %s11, 1
    %p28 = por %p26, %p27
    %p29 = scmp.ne.s32.totalorder %s21, %s24
    %p30 = scmp.eq.s32.totalorder %s11, 0
    %p31 = por %p29, %p30
    %p32 = scmp.ne.s32.totalorder %s21, %s24
    %p33 = scmp.eq.s32.totalorder %s16, 1
    %p34 = por %p32, %p33
    %p35 = scmp.ne.s32.totalorder %s24, %s25
    %p36 = scmp.eq.s32.totalorder %s16, 0
    %p37 = por %p35, %p36
    %p38 = scmp.ne.s32.totalorder %s24, %s25
    %p39 = scmp.eq.s32.totalorder %s17, 1
    %p40 = por %p38, %p39
    %p42 = scmp.ne.s32.totalorder %s25, %s41
    %p43 = scmp.eq.s32.totalorder %s17, 0
    %p44 = por %p42, %p43
    %s46 = sadd.s32 %s45, 1
    %p49 = scmp.eq.s32.totalorder %s11, 1
    %p50 = scmp.ne.s32.totalorder %s45, %s47
    %p51 = scmp.eq.s32.totalorder %s11, 0
    %p52 = por %p50, %p51
    %p53 = scmp.ne.s32.totalorder %s45, %s47
    %p54 = scmp.eq.s32.totalorder %s16, 1
    %p55 = por %p53, %p54
    %p56 = scmp.ne.s32.totalorder %s47, %s48
    %p57 = scmp.eq.s32.totalorder %s16, 0
    %p58 = por %p56, %p57
    %p59 = scmp.ne.s32.totalorder %s47, %s48
    %p60 = scmp.eq.s32.totalorder %s17, 1
    %p61 = por %p59, %p60
    %p63 = scmp.ne.s32.totalorder %s48, %s62
    %p64 = scmp.eq.s32.totalorder %s17, 0
    %p65 = por %p63, %p64
    %s66 = ssub.s32 %s11, %s18
    %p67 = scmp.eq.s32.totalorder %s66, 0
    %s69 = sadd.s32 %s68, 1
    %s70 = scalar_select %p67, %s68, %s69
    %p73 = pneg %p67
    %p74 = scmp.eq.s32.totalorder %s11, 1
    %p75 = por %p73, %p74
    %p76 = scmp.ne.s32.totalorder %s68, %s71
    %p77 = scmp.eq.s32.totalorder %s11, 0
    %p78 = por %p76, %p77
    %p79 = scmp.ne.s32.totalorder %s68, %s71
    %p80 = scmp.eq.s32.totalorder %s16, 1
    %p81 = por %p79, %p80
    %p82 = scmp.ne.s32.totalorder %s71, %s72
    %p83 = scmp.eq.s32.totalorder %s16, 0
    %p84 = por %p82, %p83
    %p85 = scmp.ne.s32.totalorder %s71, %s72
    %p86 = scmp.eq.s32.totalorder %s17, 1
    %p87 = por %p85, %p86
    %p89 = scmp.ne.s32.totalorder %s72, %s88
    %p90 = scmp.eq.s32.totalorder %s17, 0
    %p91 = por %p89, %p90
    %s92 = ssub.s32 %s11, %s18
    %p93 = scmp.eq.s32.totalorder %s92, 0
    %s95 = sadd.s32 %s94, 1
    %s96 = scalar_select %p93, %s94, %s95
    %p99 = pneg %p93
    %p100 = scmp.eq.s32.totalorder %s11, 1
    %p101 = por %p99, %p100
    %p102 = scmp.ne.s32.totalorder %s94, %s97
    %p103 = scmp.eq.s32.totalorder %s11, 0
    %p104 = por %p102, %p103
    %p105 = scmp.ne.s32.totalorder %s94, %s97
    %p106 = scmp.eq.s32.totalorder %s16, 1
    %p107 = por %p105, %p106
    %p108 = scmp.ne.s32.totalorder %s97, %s98
    %p109 = scmp.eq.s32.totalorder %s16, 0
    %p110 = por %p108, %p109
    %p111 = scmp.ne.s32.totalorder %s97, %s98
    %p112 = scmp.eq.s32.totalorder %s17, 1
    %p113 = por %p111, %p112
    %p115 = scmp.ne.s32.totalorder %s98, %s114
    %p116 = scmp.eq.s32.totalorder %s17, 0
    %p117 = por %p115, %p116
    %s118 = ssub.s32 %s11, %s18
    %p119 = scmp.eq.s32.totalorder %s118, 0
    %s121 = sadd.s32 %s120, 1
    %s122 = scalar_select %p119, %s120, %s121
    %p125 = pneg %p119
    %p126 = scmp.eq.s32.totalorder %s11, 1
    %p127 = por %p125, %p126
    %p128 = scmp.ne.s32.totalorder %s120, %s123
    %p129 = scmp.eq.s32.totalorder %s11, 0
    %p130 = por %p128, %p129
    %p131 = scmp.ne.s32.totalorder %s120, %s123
    %p132 = scmp.eq.s32.totalorder %s16, 1
    %p133 = por %p131, %p132
    %p134 = scmp.ne.s32.totalorder %s123, %s124
    %p135 = scmp.eq.s32.totalorder %s16, 0
    %p136 = por %p134, %p135
    %p137 = scmp.ne.s32.totalorder %s123, %s124
    %p138 = scmp.eq.s32.totalorder %s17, 1
    %p139 = por %p137, %p138
    %p141 = scmp.ne.s32.totalorder %s124, %s140
    %p142 = scmp.eq.s32.totalorder %s17, 0
    %p143 = por %p141, %p142
    %p144 = scmp.le.s32.totalorder 1, %s11
    %p145 = scmp.lt.s32.totalorder %s11, 3
    %p146 = pnand %p144, %p145
    %p147 = pneg %p146
    // Predicated region
    $region9: #{discriminator_sec_forward.6} parent=5 // pred_check
      _
    $region10: #{discriminator_sec_forward.6} parent=5 // pred_check_branch
      %149 = sbr.rel (%p146) target = $region12
    $region11: #{discriminator_sec_forward.6} parent=5 // pred_region
      %s150 = ssub.s32 %s11, 1
      // Predicated region
      $region13: #{discriminator_sec_forward.6} parent=11 // pred_check
        %p151 = pneg %p58
      $region14: #{discriminator_sec_forward.6} parent=11 // pred_check_branch
        %153 = sbr.rel (%p151) target = $region16
      $region15: #{discriminator_sec_forward.6} parent=11 // pred_region
        _
      $region16: #{discriminator_sec_forward.6} parent=11 // pred_fallthru
        _
    $region12: #{discriminator_sec_forward.6} parent=5 // pred_fallthru
      _
    %p154 = scmp.lt.s32.totalorder %s11, 2
    // Predicated region
    $region17: #{discriminator_sec_forward.6} parent=5 // pred_check
      %p155 = pneg %p154
    $region18: #{discriminator_sec_forward.6} parent=5 // pred_check_branch
      %157 = sbr.rel (%p155) target = $region20
    $region19: #{discriminator_sec_forward.6} parent=5 // pred_region
      // Predicated region
      $region21: #{discriminator_sec_forward.6} parent=19 // pred_check
        %p158 = pneg %p31
      $region22: #{discriminator_sec_forward.6} parent=19 // pred_check_branch
        %160 = sbr.rel (%p158) target = $region24
      $region23: #{discriminator_sec_forward.6} parent=19 // pred_region
        %p161 = scmp.lt.s32.totalorder %s11, 1
        %s162 = scalar_select %p161, %s11, 1
        %s163 = smul.addr %s162, 24
        %s164 = smul.addr %s163, 4
        %s165 = scalar_lea.vmem %s0, %s164
      $region24: #{discriminator_sec_forward.6} parent=19 // pred_fallthru
        _
    $region20: #{discriminator_sec_forward.6} parent=5 // pred_fallthru
      _
    %p166 = scmp.le.s32.totalorder 1, %s11
    %p167 = scmp.lt.s32.totalorder %s11, 3
    %p168 = pnand %p166, %p167
    %p169 = pneg %p168
    // Predicated region
    $region25: #{discriminator_sec_forward.6} parent=5 // pred_check
      _
    $region26: #{discriminator_sec_forward.6} parent=5 // pred_check_branch
      %171 = sbr.rel (%p168) target = $region28
    $region27: #{discriminator_sec_forward.6} parent=5 // pred_region
      %s172 = ssub.s32 %s11, 1
      %p173 = scmp.lt.s32.totalorder %s16, 1
      %s174 = scalar_select %p173, %s16, 1
      %s175 = smul.addr %s174, 24
      %s176 = smul.addr %s175, 4
      %s177 = scalar_lea.vmem %s0, %s176
      %p178 = pneg %p37
      %p179 = pneg %p34
      %p180 = pneg %p58
      %p181 = pneg %p55
      %p182 = pneg %p84
      %p183 = pneg %p81
      %p184 = scmp.lt.s32.totalorder %s16, 1
      %s185 = scalar_select %p184, %s16, 1
      %s186 = smul.addr %s185, 9
      %s187 = smul.addr %s186, 4
      %s188 = scalar_lea.vmem %s2, %s187
      %p189 = pneg %p110
      %p190 = pneg %p107
      %p191 = scmp.lt.s32.totalorder %s16, 1
      %s192 = scalar_select %p191, %s16, 1
      %s193 = scalar_lea.vmem %s3, %s192
      %p194 = pneg %p136
      %p195 = pneg %p133
      %p196 = scmp.lt.s32.totalorder %s16, 1
      %s197 = scalar_select %p196, %s16, 1
      %s198 = scalar_lea.vmem %s4, %s197
      %p199 = scmp.lt.s32.totalorder %s16, 1
      %s200 = scalar_select %p199, %s16, 1
      %s201 = smul.addr %s200, 24
      %s202 = smul.addr %s201, 4
      %s203 = scalar_lea.vmem %s0, %s202
      %p204 = scmp.lt.s32.totalorder %s16, 1
      %s205 = scalar_select %p204, %s16, 1
      %s206 = smul.addr %s205, 9
      %s207 = smul.addr %s206, 4
      %s208 = scalar_lea.vmem %s2, %s207
      %p209 = scmp.lt.s32.totalorder %s16, 1
      %s210 = scalar_select %p209, %s16, 1
      %s211 = scalar_lea.vmem %s3, %s210
      %p212 = scmp.lt.s32.totalorder %s16, 1
      %s213 = scalar_select %p212, %s16, 1
      %s214 = scalar_lea.vmem %s4, %s213
      %v216 = vld [vmem:[%s203] sm:$0xff]
      %v217 = vld [vmem:[%s203 + $0x8] sm:$0xff]
      %v218 = vld [vmem:[%s203 + $0x10] sm:$0xff]
      %v219 = vld [vmem:[%s203 + $0x18] sm:$0xff]
      %v220 = vld [vmem:[%s203 + $0x20] sm:$0xff]
      %v221 = vld [vmem:[%s203 + $0x28] sm:$0xff]
      %v222 = vld [vmem:[%s203 + $0x30] sm:$0xff]
      %v223 = vld [vmem:[%s203 + $0x38] sm:$0xff]
      %v224 = vld [vmem:[%s203 + $0x40] sm:$0xff]
      %v225 = vld [vmem:[%s1] sm:$0xf]
      %v226 = vld [vmem:[%s1 + $0x4] sm:$0xf]
      %v227 = vld [vmem:[%s1 + $0x8] sm:$0xf]
      %v228 = vld [vmem:[%s1 + $0xc] sm:$0xf]
      %v229 = vld [vmem:[%s1 + $0x10] sm:$0xf]
      %v230 = vld [vmem:[%s1 + $0x14] sm:$0xf]
      %v231 = vld [vmem:[%s1 + $0x18] sm:$0xf]
      %v232 = vld [vmem:[%s1 + $0x1c] sm:$0xf]
      %v233 = vld [vmem:[%s1 + $0x20] sm:$0xf]
      %v234 = vld [vmem:[%s1 + $0x24] sm:$0xf]
      %v235 = vld [vmem:[%s1 + $0x28] sm:$0xf]
      %v236 = vld [vmem:[%s1 + $0x2c] sm:$0xf]
      %v237 = vld [vmem:[%s1 + $0x30] sm:$0xf]
      %v238 = vld [vmem:[%s1 + $0x34] sm:$0xf]
      %v239 = vld [vmem:[%s1 + $0x38] sm:$0xf]
      %v240 = vld [vmem:[%s1 + $0x3c] sm:$0xf]
      %v241 = vld [vmem:[%s1 + $0x40] sm:$0xf]
      %v242 = vld [vmem:[%s1 + $0x44] sm:$0xf]
      %v243 = vld [vmem:[%s1 + $0x48] sm:$0xf]
      %v244 = vld [vmem:[%s1 + $0x4c] sm:$0xf]
      %v245 = vld [vmem:[%s1 + $0x50] sm:$0xf]
      %v246 = vld [vmem:[%s1 + $0x54] sm:$0xf]
      %v247 = vld [vmem:[%s1 + $0x58] sm:$0xf]
      %v248 = vld [vmem:[%s1 + $0x5c] sm:$0xf]
      %v249 = vld [vmem:[%s1 + $0x60] sm:$0xf]
      %v250 = vld [vmem:[%s1 + $0x64] sm:$0xf]
      %v251 = vld [vmem:[%s1 + $0x68] sm:$0xf]
      %v252 = vld [vmem:[%s1 + $0x6c] sm:$0xf]
      %v253 = vld [vmem:[%s1 + $0x70] sm:$0xf]
      %v254 = vld [vmem:[%s1 + $0x74] sm:$0xf]
      %v255 = vld [vmem:[%s1 + $0x78] sm:$0xf]
      %v256 = vld [vmem:[%s1 + $0x7c] sm:$0xf]
      %v257 = vld [vmem:[%s203 + $0x48] sm:$0x11]
      %s258 = scalar_lea.vmem %s1, 128
      %v259 = vld [vmem:[%s258] sm:$0xf]
      %v260 = vld [vmem:[%s258 + $0x4] sm:$0xf]
      %v261 = vld [vmem:[%s258 + $0x8] sm:$0xf]
      %v262 = vld [vmem:[%s258 + $0xc] sm:$0xf]
      %v263 = vld [vmem:[%s258 + $0x10] sm:$0xf]
      %v264 = vld [vmem:[%s258 + $0x14] sm:$0xf]
      %v265 = vld [vmem:[%s258 + $0x18] sm:$0xf]
      %v266 = vld [vmem:[%s258 + $0x1c] sm:$0xf]
      %v267 = vld [vmem:[%s258 + $0x20] sm:$0xf]
      %v268 = vld [vmem:[%s258 + $0x24] sm:$0xf]
      %v269 = vld [vmem:[%s258 + $0x28] sm:$0xf]
      %v270 = vld [vmem:[%s258 + $0x2c] sm:$0xf]
      %v271 = vld [vmem:[%s258 + $0x30] sm:$0xf]
      %v272 = vld [vmem:[%s258 + $0x34] sm:$0xf]
      %v273 = vld [vmem:[%s258 + $0x38] sm:$0xf]
      %v274 = vld [vmem:[%s258 + $0x3c] sm:$0xf]
      %v275 = vld [vmem:[%s258 + $0x40] sm:$0xf]
      %v276 = vld [vmem:[%s258 + $0x44] sm:$0xf]
      %v277 = vld [vmem:[%s258 + $0x48] sm:$0xf]
      %v278 = vld [vmem:[%s258 + $0x4c] sm:$0xf]
      %v279 = vld [vmem:[%s258 + $0x50] sm:$0xf]
      %v280 = vld [vmem:[%s258 + $0x54] sm:$0xf]
      %v281 = vld [vmem:[%s258 + $0x58] sm:$0xf]
      %v282 = vld [vmem:[%s258 + $0x5c] sm:$0xf]
      %v283 = vld [vmem:[%s258 + $0x60] sm:$0xf]
      %v284 = vld [vmem:[%s258 + $0x64] sm:$0xf]
      %v285 = vld [vmem:[%s258 + $0x68] sm:$0xf]
      %v286 = vld [vmem:[%s258 + $0x6c] sm:$0xf]
      %v287 = vld [vmem:[%s258 + $0x70] sm:$0xf]
      %v288 = vld [vmem:[%s258 + $0x74] sm:$0xf]
      %v289 = vld [vmem:[%s258 + $0x78] sm:$0xf]
      %v290 = vld [vmem:[%s258 + $0x7c] sm:$0xf]
      %v301 = vunpack.c.l.b16 %v216
      %v302 = vunpack.c.h.b16 %v216
      %v303 = vunpack.c.l.b16 %v217
      %v304 = vunpack.c.h.b16 %v217
      %v305 = vunpack.c.l.b16 %v218
      %v306 = vunpack.c.h.b16 %v218
      %v307 = vunpack.c.l.b16 %v219
      %v308 = vunpack.c.h.b16 %v219
      %v309 = vunpack.c.l.b16 %v220
      %v310 = vunpack.c.h.b16 %v220
      %v311 = vunpack.c.l.b16 %v221
      %v312 = vunpack.c.h.b16 %v221
      %v313 = vunpack.c.l.b16 %v222
      %v314 = vunpack.c.h.b16 %v222
      %v315 = vunpack.c.l.b16 %v223
      %v316 = vunpack.c.h.b16 %v223
      %v317 = vunpack.c.l.b16 %v224
      %v318 = vunpack.c.h.b16 %v224
      %v319 = vunpack.c.l.b16 %v257
      %v320 = vunpack.c.h.b16 %v257
      %v321 = vpack.c.b16 %v303, %v301
      %v322 = vpack.c.b16 %v304, %v302
      %v323 = vpack.c.b16 %v307, %v305
      %v324 = vpack.c.b16 %v308, %v306
      %v325 = vpack.c.b16 %v311, %v309
      %v326 = vpack.c.b16 %v312, %v310
      %v327 = vpack.c.b16 %v315, %v313
      %v328 = vpack.c.b16 %v316, %v314
      %v329 = vpack.c.b16 %v319, %v317
      %v330 = vpack.c.b16 %v320, %v318
      %vm331 = vsmask.f32 7424
      %v333 = vshrl.u32 %v321, 16
      %v335 = vshll.u32 %v321, 16
      %v337 = vrot.slane %v335, 1
      %v338 = vor.u32 %v333, %v337
      %v340 = vshll.u32 %v323, 16
      %v342 = vrot.slane %v340, 1
      %v343 = vsel %vm331, %v338, %v342
      %v345 = vshrl.u32 %v322, 16
      %v347 = vshll.u32 %v322, 16
      %v349 = vrot.slane %v347, 1
      %v350 = vor.u32 %v345, %v349
      %v352 = vshll.u32 %v324, 16
      %v354 = vrot.slane %v352, 1
      %v355 = vsel %vm331, %v350, %v354
      %v356 = vshrl.u32 %v323, 16
      %v358 = vor.u32 %v356, %v342
      %v360 = vshll.u32 %v325, 16
      %v362 = vrot.slane %v360, 1
      %v363 = vsel %vm331, %v358, %v362
      %v364 = vshrl.u32 %v324, 16
      %v366 = vor.u32 %v364, %v354
      %v368 = vshll.u32 %v326, 16
      %v370 = vrot.slane %v368, 1
      %v371 = vsel %vm331, %v366, %v370
      %v372 = vshrl.u32 %v325, 16
      %v374 = vor.u32 %v372, %v362
      %v376 = vshll.u32 %v327, 16
      %v378 = vrot.slane %v376, 1
      %v379 = vsel %vm331, %v374, %v378
      %v380 = vshrl.u32 %v326, 16
      %v382 = vor.u32 %v380, %v370
      %v384 = vshll.u32 %v328, 16
      %v386 = vrot.slane %v384, 1
      %v387 = vsel %vm331, %v382, %v386
      %v388 = vshrl.u32 %v327, 16
      %v390 = vor.u32 %v388, %v378
      %v392 = vshll.u32 %v329, 16
      %v394 = vrot.slane %v392, 1
      %v395 = vsel %vm331, %v390, %v394
      %v396 = vshrl.u32 %v328, 16
      %v398 = vor.u32 %v396, %v386
      %v400 = vshll.u32 %v330, 16
      %v402 = vrot.slane %v400, 1
      %v403 = vsel %vm331, %v398, %v402
      %v404 = vshrl.u32 %v329, 16
      %v406 = vor.u32 %v404, %v394
      %v407 = vshrl.u32 %v330, 16
      %v409 = vor.u32 %v407, %v402
      %v452 = vunpack.c.l.b16 %v259
      %v453 = vunpack.c.l.b16 %v260
      %v454 = vunpack.c.l.b16 %v261
      %v455 = vunpack.c.l.b16 %v262
      %v456 = vunpack.c.l.b16 %v263
      %v457 = vunpack.c.l.b16 %v264
      %v458 = vunpack.c.l.b16 %v265
      %v459 = vunpack.c.l.b16 %v266
      %v460 = vunpack.c.l.b16 %v267
      %v461 = vunpack.c.l.b16 %v268
      %v462 = vunpack.c.l.b16 %v269
      %v463 = vunpack.c.l.b16 %v270
      %v464 = vunpack.c.l.b16 %v271
      %v465 = vunpack.c.l.b16 %v272
      %v466 = vunpack.c.l.b16 %v273
      %v467 = vunpack.c.l.b16 %v274
      %v468 = vunpack.c.l.b16 %v275
      %v469 = vunpack.c.l.b16 %v276
      %v470 = vunpack.c.l.b16 %v277
      %v471 = vunpack.c.l.b16 %v278
      %v472 = vunpack.c.l.b16 %v279
      %v473 = vunpack.c.l.b16 %v280
      %v474 = vunpack.c.l.b16 %v281
      %v475 = vunpack.c.l.b16 %v282
      %v476 = vunpack.c.l.b16 %v283
      %v477 = vunpack.c.l.b16 %v284
      %v478 = vunpack.c.l.b16 %v285
      %v479 = vunpack.c.l.b16 %v286
      %v480 = vunpack.c.l.b16 %v287
      %v481 = vunpack.c.l.b16 %v288
      %v482 = vunpack.c.l.b16 %v289
      %v483 = vunpack.c.l.b16 %v290
      %v484 = vpack.c.b16 %v453, %v452
      %v485 = vpack.c.b16 %v455, %v454
      %v486 = vpack.c.b16 %v457, %v456
      %v487 = vpack.c.b16 %v459, %v458
      %v488 = vpack.c.b16 %v461, %v460
      %v489 = vpack.c.b16 %v463, %v462
      %v490 = vpack.c.b16 %v465, %v464
      %v491 = vpack.c.b16 %v467, %v466
      %v492 = vpack.c.b16 %v469, %v468
      %v493 = vpack.c.b16 %v471, %v470
      %v494 = vpack.c.b16 %v473, %v472
      %v495 = vpack.c.b16 %v475, %v474
      %v496 = vpack.c.b16 %v477, %v476
      %v497 = vpack.c.b16 %v479, %v478
      %v498 = vpack.c.b16 %v481, %v480
      %v499 = vpack.c.b16 %v483, %v482
      %516 = vmatprep.subr.bf16.mxu0 0
      %517 = vmatpush1.bf16.msra.mxu0 %v484
      %518 = vmatprep.subr.bf16.mxu0 0
      %519 = vmatpush1.bf16.msra.mxu0 %v485
      %520 = vmatprep.subr.bf16.mxu0 0
      %521 = vmatpush1.bf16.msra.mxu0 %v486
      %522 = vmatprep.subr.bf16.mxu0 0
      %523 = vmatpush1.bf16.msra.mxu0 %v487
      %524 = vmatprep.subr.bf16.mxu0 0
      %525 = vmatpush1.bf16.msra.mxu0 %v488
      %526 = vmatprep.subr.bf16.mxu0 0
      %527 = vmatpush1.bf16.msra.mxu0 %v489
      %528 = vmatprep.subr.bf16.mxu0 0
      %529 = vmatpush1.bf16.msra.mxu0 %v490
      %530 = vmatprep.subr.bf16.mxu0 0
      %531 = vmatpush1.bf16.msra.mxu0 %v491
      %532 = vmatprep.subr.bf16.mxu0 0
      %533 = vmatpush1.bf16.msra.mxu0 %v492
      %534 = vmatprep.subr.bf16.mxu0 0
      %535 = vmatpush1.bf16.msra.mxu0 %v493
      %536 = vmatprep.subr.bf16.mxu0 0
      %537 = vmatpush1.bf16.msra.mxu0 %v494
      %538 = vmatprep.subr.bf16.mxu0 0
      %539 = vmatpush1.bf16.msra.mxu0 %v495
      %540 = vmatprep.subr.bf16.mxu0 0
      %541 = vmatpush1.bf16.msra.mxu0 %v496
      %542 = vmatprep.subr.bf16.mxu0 0
      %543 = vmatpush1.bf16.msra.mxu0 %v497
      %544 = vmatprep.subr.bf16.mxu0 0
      %545 = vmatpush1.bf16.msra.mxu0 %v498
      %546 = vmatprep.subr.bf16.mxu0 0
      %547 = vmatpush1.bf16.msra.mxu0 %v499
      %548 = vmatprep.mubr.bf16.mxu0 %v355
      %549 = vmatmul.mubr.bf16.gmra.mrb[0].mxu0 %v343
      %v550 = vpop.f32.mrb[0].mxu0
      %v551 = vadd.f32 0.0, %v550
      %v552 = vpop.f32.mrb[0].mxu0
      %v553 = vpop.f32.mrb[0].mxu0
      %v554 = vadd.f32 0.0, %v553
      %v555 = vpop.f32.mrb[0].mxu0
      %556 = vmatprep.mubr.bf16.mxu0 %v371
      %557 = vmatmul.mubr.bf16.gmra.mrb[0].mxu0 %v363
      %v558 = vpop.f32.mrb[0].mxu0
      %v559 = vadd.f32 0.0, %v558
      %v560 = vpop.f32.mrb[0].mxu0
      %v561 = vpop.f32.mrb[0].mxu0
      %v562 = vadd.f32 0.0, %v561
      %v563 = vpop.f32.mrb[0].mxu0
      %564 = vmatprep.mubr.bf16.mxu0 %v387
      %565 = vmatmul.mubr.bf16.gmra.mrb[0].mxu0 %v379
      %v566 = vpop.f32.mrb[0].mxu0
      %v567 = vadd.f32 0.0, %v566
      %v568 = vpop.f32.mrb[0].mxu0
      %v569 = vpop.f32.mrb[0].mxu0
      %v570 = vadd.f32 0.0, %v569
      %v571 = vpop.f32.mrb[0].mxu0
      %572 = vmatprep.mubr.bf16.mxu0 %v403
      %573 = vmatmul.mubr.bf16.gmra.mrb[0].mxu0 %v395
      %v574 = vpop.f32.mrb[0].mxu0
      %v575 = vadd.f32 0.0, %v574
      %v576 = vpop.f32.mrb[0].mxu0
      %v577 = vpop.f32.mrb[0].mxu0
      %v578 = vadd.f32 0.0, %v577
      %v579 = vpop.f32.mrb[0].mxu0
      %580 = vmatprep.mubr.bf16.mxu0 %v409
      %581 = vmatmul.mubr.bf16.gmra.mrb[0].mxu0 %v406
      %v582 = vpop.f32.mrb[0].mxu0
      %v583 = vadd.f32 0.0, %v582
      %v584 = vpop.f32.mrb[0].mxu0
      %v585 = vpop.f32.mrb[0].mxu0
      %v586 = vpop.f32.mrb[0].mxu0
      %587 = vdwg.mxu0
      %v588 = vpack.c.b16 %v317, %v317
      %v589 = vpack.c.b16 %v318, %v318
      %v632 = vunpack.c.l.b16 %v225
      %v633 = vunpack.c.l.b16 %v226
      %v634 = vunpack.c.l.b16 %v227
      %v635 = vunpack.c.l.b16 %v228
      %v636 = vunpack.c.l.b16 %v229
      %v637 = vunpack.c.l.b16 %v230
      %v638 = vunpack.c.l.b16 %v231
      %v639 = vunpack.c.l.b16 %v232
      %v640 = vunpack.c.l.b16 %v233
      %v641 = vunpack.c.l.b16 %v234
      %v642 = vunpack.c.l.b16 %v235
      %v643 = vunpack.c.l.b16 %v236
      %v644 = vunpack.c.l.b16 %v237
      %v645 = vunpack.c.l.b16 %v238
      %v646 = vunpack.c.l.b16 %v239
      %v647 = vunpack.c.l.b16 %v240
      %v648 = vunpack.c.l.b16 %v241
      %v649 = vunpack.c.l.b16 %v242
      %v650 = vunpack.c.l.b16 %v243
      %v651 = vunpack.c.l.b16 %v244
      %v652 = vunpack.c.l.b16 %v245
      %v653 = vunpack.c.l.b16 %v246
      %v654 = vunpack.c.l.b16 %v247
      %v655 = vunpack.c.l.b16 %v248
      %v656 = vunpack.c.l.b16 %v249
      %v657 = vunpack.c.l.b16 %v250
      %v658 = vunpack.c.l.b16 %v251
      %v659 = vunpack.c.l.b16 %v252
      %v660 = vunpack.c.l.b16 %v253
      %v661 = vunpack.c.l.b16 %v254
      %v662 = vunpack.c.l.b16 %v255
      %v663 = vunpack.c.l.b16 %v256
      %v664 = vpack.c.b16 %v633, %v632
      %v665 = vpack.c.b16 %v635, %v634
      %v666 = vpack.c.b16 %v637, %v636
      %v667 = vpack.c.b16 %v639, %v638
      %v668 = vpack.c.b16 %v641, %v640
      %v669 = vpack.c.b16 %v643, %v642
      %v670 = vpack.c.b16 %v645, %v644
      %v671 = vpack.c.b16 %v647, %v646
      %v672 = vpack.c.b16 %v649, %v648
      %v673 = vpack.c.b16 %v651, %v650
      %v674 = vpack.c.b16 %v653, %v652
      %v675 = vpack.c.b16 %v655, %v654
      %v676 = vpack.c.b16 %v657, %v656
      %v677 = vpack.c.b16 %v659, %v658
      %v678 = vpack.c.b16 %v661, %v660
      %v679 = vpack.c.b16 %v663, %v662
      %696 = vmatprep.subr.bf16.mxu0 0
      %697 = vmatpush1.bf16.msra.mxu0 %v664
      %698 = vmatprep.subr.bf16.mxu0 0
      %699 = vmatpush1.bf16.msra.mxu0 %v665
      %700 = vmatprep.subr.bf16.mxu0 0
      %701 = vmatpush1.bf16.msra.mxu0 %v666
      %702 = vmatprep.subr.bf16.mxu0 0
      %703 = vmatpush1.bf16.msra.mxu0 %v667
      %704 = vmatprep.subr.bf16.mxu0 0
      %705 = vmatpush1.bf16.msra.mxu0 %v668
      %706 = vmatprep.subr.bf16.mxu0 0
      %707 = vmatpush1.bf16.msra.mxu0 %v669
      %708 = vmatprep.subr.bf16.mxu0 0
      %709 = vmatpush1.bf16.msra.mxu0 %v670
      %710 = vmatprep.subr.bf16.mxu0 0
      %711 = vmatpush1.bf16.msra.mxu0 %v671
      %712 = vmatprep.subr.bf16.mxu0 0
      %713 = vmatpush1.bf16.msra.mxu0 %v672
      %714 = vmatprep.subr.bf16.mxu0 0
      %715 = vmatpush1.bf16.msra.mxu0 %v673
      %716 = vmatprep.subr.bf16.mxu0 0
      %717 = vmatpush1.bf16.msra.mxu0 %v674
      %718 = vmatprep.subr.bf16.mxu0 0
      %719 = vmatpush1.bf16.msra.mxu0 %v675
      %720 = vmatprep.subr.bf16.mxu0 0
      %721 = vmatpush1.bf16.msra.mxu0 %v676
      %722 = vmatprep.subr.bf16.mxu0 0
      %723 = vmatpush1.bf16.msra.mxu0 %v677
      %724 = vmatprep.subr.bf16.mxu0 0
      %725 = vmatpush1.bf16.msra.mxu0 %v678
      %726 = vmatprep.subr.bf16.mxu0 0
      %727 = vmatpush1.bf16.msra.mxu0 %v679
      %728 = vmatprep.mubr.bf16.mxu0 %v322
      %729 = vmatmul.mubr.bf16.gmra.mrb[0].mxu0 %v321
      %v730 = vpop.f32.mrb[0].mxu0
      %v731 = vadd.f32 %v551, %v730
      %v732 = vpop.f32.mrb[0].mxu0
      %v733 = vpop.f32.mrb[0].mxu0
      %v734 = vadd.f32 %v554, %v733
      %v735 = vpop.f32.mrb[0].mxu0
      %736 = vmatprep.mubr.bf16.mxu0 %v324
      %737 = vmatmul.mubr.bf16.gmra.mrb[0].mxu0 %v323
      %v738 = vpop.f32.mrb[0].mxu0
      %v739 = vadd.f32 %v559, %v738
      %v740 = vpop.f32.mrb[0].mxu0
      %v741 = vpop.f32.mrb[0].mxu0
      %v742 = vadd.f32 %v562, %v741
      %v743 = vpop.f32.mrb[0].mxu0
      %744 = vmatprep.mubr.bf16.mxu0 %v326
      %745 = vmatmul.mubr.bf16.gmra.mrb[0].mxu0 %v325
      %v746 = vpop.f32.mrb[0].mxu0
      %v747 = vadd.f32 %v567, %v746
      %v748 = vpop.f32.mrb[0].mxu0
      %v749 = vpop.f32.mrb[0].mxu0
      %v750 = vadd.f32 %v570, %v749
      %v751 = vpop.f32.mrb[0].mxu0
      %752 = vmatprep.mubr.bf16.mxu0 %v328
      %753 = vmatmul.mubr.bf16.gmra.mrb[0].mxu0 %v327
      %v754 = vpop.f32.mrb[0].mxu0
      %v755 = vadd.f32 %v575, %v754
      %v756 = vpop.f32.mrb[0].mxu0
      %v757 = vpop.f32.mrb[0].mxu0
      %v758 = vadd.f32 %v578, %v757
      %v759 = vpop.f32.mrb[0].mxu0
      %760 = vmatprep.mubr.bf16.mxu0 %v589
      %761 = vmatmul.mubr.bf16.gmra.mrb[0].mxu0 %v588
      %v762 = vpop.f32.mrb[0].mxu0
      %v763 = vadd.f32 %v583, %v762
      %v764 = vpop.f32.mrb[0].mxu0
      %v765 = vpop.f32.mrb[0].mxu0
      %v766 = vpop.f32.mrb[0].mxu0
      %767 = vdwg.mxu0
      %v768 = vld [vmem:[%s203 + $0x8] sm:$0xff]
      %v769 = vld [vmem:[%s203 + $0x10] sm:$0xff]
      %v770 = vld [vmem:[%s203 + $0x18] sm:$0xff]
      %v771 = vld [vmem:[%s203 + $0x20] sm:$0xff]
      %v772 = vld [vmem:[%s203 + $0x28] sm:$0xff]
      %v773 = vld [vmem:[%s203 + $0x30] sm:$0xff]
      %v774 = vld [vmem:[%s203 + $0x38] sm:$0xff]
      %v775 = vld [vmem:[%s203 + $0x40] sm:$0xff]
      %v776 = vld [vmem:[%s203 + $0x48] sm:$0xff]
      %v777 = vld [vmem:[%s203 + $0x50] sm:$0x11]
      %s778 = scalar_lea.vmem %s1, 256
      %v779 = vld [vmem:[%s778] sm:$0xf]
      %v780 = vld [vmem:[%s778 + $0x4] sm:$0xf]
      %v781 = vld [vmem:[%s778 + $0x8] sm:$0xf]
      %v782 = vld [vmem:[%s778 + $0xc] sm:$0xf]
      %v783 = vld [vmem:[%s778 + $0x10] sm:$0xf]
      %v784 = vld [vmem:[%s778 + $0x14] sm:$0xf]
      %v785 = vld [vmem:[%s778 + $0x18] sm:$0xf]
      %v786 = vld [vmem:[%s778 + $0x1c] sm:$0xf]
      %v787 = vld [vmem:[%s778 + $0x20] sm:$0xf]
      %v788 = vld [vmem:[%s778 + $0x24] sm:$0xf]
      %v789 = vld [vmem:[%s778 + $0x28] sm:$0xf]
      %v790 = vld [vmem:[%s778 + $0x2c] sm:$0xf]
      %v791 = vld [vmem:[%s778 + $0x30] sm:$0xf]
      %v792 = vld [vmem:[%s778 + $0x34] sm:$0xf]
      %v793 = vld [vmem:[%s778 + $0x38] sm:$0xf]
      %v794 = vld [vmem:[%s778 + $0x3c] sm:$0xf]
      %v795 = vld [vmem:[%s778 + $0x40] sm:$0xf]
      %v796 = vld [vmem:[%s778 + $0x44] sm:$0xf]
      %v797 = vld [vmem:[%s778 + $0x48] sm:$0xf]
      %v798 = vld [vmem:[%s778 + $0x4c] sm:$0xf]
      %v799 = vld [vmem:[%s778 + $0x50] sm:$0xf]
      %v800 = vld [vmem:[%s778 + $0x54] sm:$0xf]
      %v801 = vld [vmem:[%s778 + $0x58] sm:$0xf]
      %v802 = vld [vmem:[%s778 + $0x5c] sm:$0xf]
      %v803 = vld [vmem:[%s778 + $0x60] sm:$0xf]
      %v804 = vld [vmem:[%s778 + $0x64] sm:$0xf]
      %v805 = vld [vmem:[%s778 + $0x68] sm:$0xf]
      %v806 = vld [vmem:[%s778 + $0x6c] sm:$0xf]
      %v807 = vld [vmem:[%s778 + $0x70] sm:$0xf]
      %v808 = vld [vmem:[%s778 + $0x74] sm:$0xf]
      %v809 = vld [vmem:[%s778 + $0x78] sm:$0xf]
      %v810 = vld [vmem:[%s778 + $0x7c] sm:$0xf]
      %v821 = vunpack.c.l.b16 %v768
      %v822 = vunpack.c.h.b16 %v768
      %v823 = vunpack.c.l.b16 %v769
      %v824 = vunpack.c.h.b16 %v769
      %v825 = vunpack.c.l.b16 %v770
      %v826 = vunpack.c.h.b16 %v770
      %v827 = vunpack.c.l.b16 %v771
      %v828 = vunpack.c.h.b16 %v771
      %v829 = vunpack.c.l.b16 %v772
      %v830 = vunpack.c.h.b16 %v772
      %v831 = vunpack.c.l.b16 %v773
      %v832 = vunpack.c.h.b16 %v773
      %v833 = vunpack.c.l.b16 %v774
      %v834 = vunpack.c.h.b16 %v774
      %v835 = vunpack.c.l.b16 %v775
      %v836 = vunpack.c.h.b16 %v775
      %v837 = vunpack.c.l.b16 %v776
      %v838 = vunpack.c.h.b16 %v776
      %v839 = vunpack.c.l.b16 %v777
      %v840 = vunpack.c.h.b16 %v777
      %v841 = vpack.c.b16 %v823, %v821
      %v842 = vpack.c.b16 %v824, %v822
      %v843 = vpack.c.b16 %v827, %v825
      %v844 = vpack.c.b16 %v828, %v826
      %v845 = vpack.c.b16 %v831, %v829
      %v846 = vpack.c.b16 %v832, %v830
      %v847 = vpack.c.b16 %v835, %v833
      %v848 = vpack.c.b16 %v836, %v834
      %v849 = vpack.c.b16 %v839, %v837
      %v850 = vpack.c.b16 %v840, %v838
      %v852 = vshrl.u32 %v841, 16
      %v854 = vshll.u32 %v841, 16
      %v856 = vrot.slane %v854, 1
      %v857 = vor.u32 %v852, %v856
      %v859 = vshll.u32 %v843, 16
      %v861 = vrot.slane %v859, 1
      %v862 = vsel %vm331, %v857, %v861
      %v864 = vshrl.u32 %v842, 16
      %v866 = vshll.u32 %v842, 16
      %v868 = vrot.slane %v866, 1
      %v869 = vor.u32 %v864, %v868
      %v871 = vshll.u32 %v844, 16
      %v873 = vrot.slane %v871, 1
      %v874 = vsel %vm331, %v869, %v873
      %v875 = vshrl.u32 %v843, 16
      %v877 = vor.u32 %v875, %v861
      %v879 = vshll.u32 %v845, 16
      %v881 = vrot.slane %v879, 1
      %v882 = vsel %vm331, %v877, %v881
      %v883 = vshrl.u32 %v844, 16
      %v885 = vor.u32 %v883, %v873
      %v887 = vshll.u32 %v846, 16
      %v889 = vrot.slane %v887, 1
      %v890 = vsel %vm331, %v885, %v889
      %v891 = vshrl.u32 %v845, 16
      %v893 = vor.u32 %v891, %v881
      %v895 = vshll.u32 %v847, 16
      %v897 = vrot.slane %v895, 1
      %v898 = vsel %vm331, %v893, %v897
      %v899 = vshrl.u32 %v846, 16
      %v901 = vor.u32 %v899, %v889
      %v903 = vshll.u32 %v848, 16
      %v905 = vrot.slane %v903, 1
      %v906 = vsel %vm331, %v901, %v905
      %v907 = vshrl.u32 %v847, 16
      %v909 = vor.u32 %v907, %v897
      %v911 = vshll.u32 %v849, 16
      %v913 = vrot.slane %v911, 1
      %v914 = vsel %vm331, %v909, %v913
      %v915 = vshrl.u32 %v848, 16
      %v917 = vor.u32 %v915, %v905
      %v919 = vshll.u32 %v850, 16
      %v921 = vrot.slane %v919, 1
      %v922 = vsel %vm331, %v917, %v921
      %v923 = vshrl.u32 %v849, 16
      %v925 = vor.u32 %v923, %v913
      %v926 = vshrl.u32 %v850, 16
      %v928 = vor.u32 %v926, %v921
      %v971 = vunpack.c.l.b16 %v779
      %v972 = vunpack.c.l.b16 %v780
      %v973 = vunpack.c.l.b16 %v781
      %v974 = vunpack.c.l.b16 %v782
      %v975 = vunpack.c.l.b16 %v783
      %v976 = vunpack.c.l.b16 %v784
      %v977 = vunpack.c.l.b16 %v785
      %v978 = vunpack.c.l.b16 %v786
      %v979 = vunpack.c.l.b16 %v787
      %v980 = vunpack.c.l.b16 %v788
      %v981 = vunpack.c.l.b16 %v789
      %v982 = vunpack.c.l.b16 %v790
      %v983 = vunpack.c.l.b16 %v791
      %v984 = vunpack.c.l.b16 %v792
      %v985 = vunpack.c.l.b16 %v793
      %v986 = vunpack.c.l.b16 %v794
      %v987 = vunpack.c.l.b16 %v795
      %v988 = vunpack.c.l.b16 %v796
      %v989 = vunpack.c.l.b16 %v797
      %v990 = vunpack.c.l.b16 %v798
      %v991 = vunpack.c.l.b16 %v799
      %v992 = vunpack.c.l.b16 %v800
      %v993 = vunpack.c.l.b16 %v801
      %v994 = vunpack.c.l.b16 %v802
      %v995 = vunpack.c.l.b16 %v803
      %v996 = vunpack.c.l.b16 %v804
      %v997 = vunpack.c.l.b16 %v805
      %v998 = vunpack.c.l.b16 %v806
      %v999 = vunpack.c.l.b16 %v807
      %v1000 = vunpack.c.l.b16 %v808
      %v1001 = vunpack.c.l.b16 %v809
      %v1002 = vunpack.c.l.b16 %v810
      %v1003 = vpack.c.b16 %v972, %v971
      %v1004 = vpack.c.b16 %v974, %v973
      %v1005 = vpack.c.b16 %v976, %v975
      %v1006 = vpack.c.b16 %v978, %v977
      %v1007 = vpack.c.b16 %v980, %v979
      %v1008 = vpack.c.b16 %v982, %v981
      %v1009 = vpack.c.b16 %v984, %v983
      %v1010 = vpack.c.b16 %v986, %v985
      %v1011 = vpack.c.b16 %v988, %v987
      %v1012 = vpack.c.b16 %v990, %v989
      %v1013 = vpack.c.b16 %v992, %v991
      %v1014 = vpack.c.b16 %v994, %v993
      %v1015 = vpack.c.b16 %v996, %v995
      %v1016 = vpack.c.b16 %v998, %v997
      %v1017 = vpack.c.b16 %v1000, %v999
      %v1018 = vpack.c.b16 %v1002, %v1001
      %1035 = vmatprep.subr.bf16.mxu0 0
      %1036 = vmatpush1.bf16.msra.mxu0 %v1003
      %1037 = vmatprep.subr.bf16.mxu0 0
      %1038 = vmatpush1.bf16.msra.mxu0 %v1004
      %1039 = vmatprep.subr.bf16.mxu0 0
      %1040 = vmatpush1.bf16.msra.mxu0 %v1005
      %1041 = vmatprep.subr.bf16.mxu0 0
      %1042 = vmatpush1.bf16.msra.mxu0 %v1006
      %1043 = vmatprep.subr.bf16.mxu0 0
      %1044 = vmatpush1.bf16.msra.mxu0 %v1007
      %1045 = vmatprep.subr.bf16.mxu0 0
      %1046 = vmatpush1.bf16.msra.mxu0 %v1008
      %1047 = vmatprep.subr.bf16.mxu0 0
      %1048 = vmatpush1.bf16.msra.mxu0 %v1009
      %1049 = vmatprep.subr.bf16.mxu0 0
      %1050 = vmatpush1.bf16.msra.mxu0 %v1010
      %1051 = vmatprep.subr.bf16.mxu0 0
      %1052 = vmatpush1.bf16.msra.mxu0 %v1011
      %1053 = vmatprep.subr.bf16.mxu0 0
      %1054 = vmatpush1.bf16.msra.mxu0 %v1012
      %1055 = vmatprep.subr.bf16.mxu0 0
      %1056 = vmatpush1.bf16.msra.mxu0 %v1013
      %1057 = vmatprep.subr.bf16.mxu0 0
      %1058 = vmatpush1.bf16.msra.mxu0 %v1014
      %1059 = vmatprep.subr.bf16.mxu0 0
      %1060 = vmatpush1.bf16.msra.mxu0 %v1015
      %1061 = vmatprep.subr.bf16.mxu0 0
      %1062 = vmatpush1.bf16.msra.mxu0 %v1016
      %1063 = vmatprep.subr.bf16.mxu0 0
      %1064 = vmatpush1.bf16.msra.mxu0 %v1017
      %1065 = vmatprep.subr.bf16.mxu0 0
      %1066 = vmatpush1.bf16.msra.mxu0 %v1018
      %1067 = vmatprep.mubr.bf16.mxu0 %v874
      %1068 = vmatmul.mubr.bf16.gmra.mrb[0].mxu0 %v862
      %v1069 = vpop.f32.mrb[0].mxu0
      %v1070 = vadd.f32 0.0, %v1069
      %v1071 = vpop.f32.mrb[0].mxu0
      %v1072 = vpop.f32.mrb[0].mxu0
      %v1073 = vadd.f32 0.0, %v1072
      %v1074 = vpop.f32.mrb[0].mxu0
      %1075 = vmatprep.mubr.bf16.mxu0 %v890
      %1076 = vmatmul.mubr.bf16.gmra.mrb[0].mxu0 %v882
      %v1077 = vpop.f32.mrb[0].mxu0
      %v1078 = vadd.f32 0.0, %v1077
      %v1079 = vpop.f32.mrb[0].mxu0
      %v1080 = vpop.f32.mrb[0].mxu0
      %v1081 = vadd.f32 0.0, %v1080
      %v1082 = vpop.f32.mrb[0].mxu0
      %1083 = vmatprep.mubr.bf16.mxu0 %v906
      %1084 = vmatmul.mubr.bf16.gmra.mrb[0].mxu0 %v898
      %v1085 = vpop.f32.mrb[0].mxu0
      %v1086 = vadd.f32 0.0, %v1085
      %v1087 = vpop.f32.mrb[0].mxu0
      %v1088 = vpop.f32.mrb[0].mxu0
      %v1089 = vadd.f32 0.0, %v1088
      %v1090 = vpop.f32.mrb[0].mxu0
      %1091 = vmatprep.mubr.bf16.mxu0 %v922
      %1092 = vmatmul.mubr.bf16.gmra.mrb[0].mxu0 %v914
      %v1093 = vpop.f32.mrb[0].mxu0
      %v1094 = vadd.f32 0.0, %v1093
      %v1095 = vpop.f32.mrb[0].mxu0
      %v1096 = vpop.f32.mrb[0].mxu0
      %v1097 = vadd.f32 0.0, %v1096
      %v1098 = vpop.f32.mrb[0].mxu0
      %1099 = vmatprep.mubr.bf16.mxu0 %v928
      %1100 = vmatmul.mubr.bf16.gmra.mrb[0].mxu0 %v925
      %v1101 = vpop.f32.mrb[0].mxu0
      %v1102 = vadd.f32 0.0, %v1101
      %v1103 = vpop.f32.mrb[0].mxu0
      %v1104 = vpop.f32.mrb[0].mxu0
      %v1105 = vpop.f32.mrb[0].mxu0
      %1106 = vdwg.mxu0
      %v1107 = vadd.f32 %v731, %v1070
      %v1108 = vadd.f32 %v734, %v1073
      %v1109 = vadd.f32 %v739, %v1078
      %v1110 = vadd.f32 %v742, %v1081
      %v1111 = vadd.f32 %v747, %v1086
      %v1112 = vadd.f32 %v750, %v1089
      %v1113 = vadd.f32 %v755, %v1094
      %v1114 = vadd.f32 %v758, %v1097
      %v1115 = vadd.f32 %v763, %v1102
      %v1116 = vld [vmem:[%s203 + $0x8] sm:$0xee]
      %s1117 = scalar_lea.vmem %s1, 384
      %v1118 = vld [vmem:[%s1117] sm:$0xf]
      %v1119 = vld [vmem:[%s1117 + $0x4] sm:$0xf]
      %v1120 = vld [vmem:[%s1117 + $0x8] sm:$0xf]
      %v1121 = vld [vmem:[%s1117 + $0xc] sm:$0xf]
      %v1122 = vld [vmem:[%s1117 + $0x10] sm:$0xf]
      %v1123 = vld [vmem:[%s1117 + $0x14] sm:$0xf]
      %v1124 = vld [vmem:[%s1117 + $0x18] sm:$0xf]
      %v1125 = vld [vmem:[%s1117 + $0x1c] sm:$0xf]
      %v1126 = vld [vmem:[%s1117 + $0x20] sm:$0xf]
      %v1127 = vld [vmem:[%s1117 + $0x24] sm:$0xf]
      %v1128 = vld [vmem:[%s1117 + $0x28] sm:$0xf]
      %v1129 = vld [vmem:[%s1117 + $0x2c] sm:$0xf]
      %v1130 = vld [vmem:[%s1117 + $0x30] sm:$0xf]
      %v1131 = vld [vmem:[%s1117 + $0x34] sm:$0xf]
      %v1132 = vld [vmem:[%s1117 + $0x38] sm:$0xf]
      %v1133 = vld [vmem:[%s1117 + $0x3c] sm:$0xf]
      %v1134 = vld [vmem:[%s1117 + $0x40] sm:$0xf]
      %v1135 = vld [vmem:[%s1117 + $0x44] sm:$0xf]
      %v1136 = vld [vmem:[%s1117 + $0x48] sm:$0xf]
      %v1137 = vld [vmem:[%s1117 + $0x4c] sm:$0xf]
      %v1138 = vld [vmem:[%s1117 + $0x50] sm:$0xf]
      %v1139 = vld [vmem:[%s1117 + $0x54] sm:$0xf]
      %v1140 = vld [vmem:[%s1117 + $0x58] sm:$0xf]
      %v1141 = vld [vmem:[%s1117 + $0x5c] sm:$0xf]
      %v1142 = vld [vmem:[%s1117 + $0x60] sm:$0xf]
      %v1143 = vld [vmem:[%s1117 + $0x64] sm:$0xf]
      %v1144 = vld [vmem:[%s1117 + $0x68] sm:$0xf]
      %v1145 = vld [vmem:[%s1117 + $0x6c] sm:$0xf]
      %v1146 = vld [vmem:[%s1117 + $0x70] sm:$0xf]
      %v1147 = vld [vmem:[%s1117 + $0x74] sm:$0xf]
      %v1148 = vld [vmem:[%s1117 + $0x78] sm:$0xf]
      %v1149 = vld [vmem:[%s1117 + $0x7c] sm:$0xf]
      %v1151 = vunpack.c.l.b16 %v1116
      %v1152 = vunpack.c.h.b16 %v1116
      %v1153 = vpack.c.b16 %v823, %v1151
      %v1154 = vpack.c.b16 %v824, %v1152
      %vm1155 = vcmask 1046528
      %v1156 = vrot.slane %v1153, 1
      %v1157 = vrot.slane %v843, 1
      %v1158 = vsel %vm1155, %v1156, %v1157
      %v1159 = vrot.slane %v1154, 1
      %v1160 = vrot.slane %v844, 1
      %v1161 = vsel %vm1155, %v1159, %v1160
      %v1162 = vrot.slane %v845, 1
      %v1163 = vsel %vm1155, %v1157, %v1162
      %v1164 = vrot.slane %v846, 1
      %v1165 = vsel %vm1155, %v1160, %v1164
      %v1166 = vrot.slane %v847, 1
      %v1167 = vsel %vm1155, %v1162, %v1166
      %v1168 = vrot.slane %v848, 1
      %v1169 = vsel %vm1155, %v1164, %v1168
      %v1170 = vrot.slane %v849, 1
      %v1171 = vsel %vm1155, %v1166, %v1170
      %v1172 = vrot.slane %v850, 1
      %v1173 = vsel %vm1155, %v1168, %v1172
      %v1216 = vunpack.c.l.b16 %v1118
      %v1217 = vunpack.c.l.b16 %v1119
      %v1218 = vunpack.c.l.b16 %v1120
      %v1219 = vunpack.c.l.b16 %v1121
      %v1220 = vunpack.c.l.b16 %v1122
      %v1221 = vunpack.c.l.b16 %v1123
      %v1222 = vunpack.c.l.b16 %v1124
      %v1223 = vunpack.c.l.b16 %v1125
      %v1224 = vunpack.c.l.b16 %v1126
      %v1225 = vunpack.c.l.b16 %v1127
      %v1226 = vunpack.c.l.b16 %v1128
      %v1227 = vunpack.c.l.b16 %v1129
      %v1228 = vunpack.c.l.b16 %v1130
      %v1229 = vunpack.c.l.b16 %v1131
      %v1230 = vunpack.c.l.b16 %v1132
      %v1231 = vunpack.c.l.b16 %v1133
      %v1232 = vunpack.c.l.b16 %v1134
      %v1233 = vunpack.c.l.b16 %v1135
      %v1234 = vunpack.c.l.b16 %v1136
      %v1235 = vunpack.c.l.b16 %v1137
      %v1236 = vunpack.c.l.b16 %v1138
      %v1237 = vunpack.c.l.b16 %v1139
      %v1238 = vunpack.c.l.b16 %v1140
      %v1239 = vunpack.c.l.b16 %v1141
      %v1240 = vunpack.c.l.b16 %v1142
      %v1241 = vunpack.c.l.b16 %v1143
      %v1242 = vunpack.c.l.b16 %v1144
      %v1243 = vunpack.c.l.b16 %v1145
      %v1244 = vunpack.c.l.b16 %v1146
      %v1245 = vunpack.c.l.b16 %v1147
      %v1246 = vunpack.c.l.b16 %v1148
      %v1247 = vunpack.c.l.b16 %v1149
      %v1248 = vpack.c.b16 %v1217, %v1216
      %v1249 = vpack.c.b16 %v1219, %v1218
      %v1250 = vpack.c.b16 %v1221, %v1220
      %v1251 = vpack.c.b16 %v1223, %v1222
      %v1252 = vpack.c.b16 %v1225, %v1224
      %v1253 = vpack.c.b16 %v1227, %v1226
      %v1254 = vpack.c.b16 %v1229, %v1228
      %v1255 = vpack.c.b16 %v1231, %v1230
      %v1256 = vpack.c.b16 %v1233, %v1232
      %v1257 = vpack.c.b16 %v1235, %v1234
      %v1258 = vpack.c.b16 %v1237, %v1236
      %v1259 = vpack.c.b16 %v1239, %v1238
      %v1260 = vpack.c.b16 %v1241, %v1240
      %v1261 = vpack.c.b16 %v1243, %v1242
      %v1262 = vpack.c.b16 %v1245, %v1244
      %v1263 = vpack.c.b16 %v1247, %v1246
      %1280 = vmatprep.subr.bf16.mxu0 0
      %1281 = vmatpush1.bf16.msra.mxu0 %v1248
      %1282 = vmatprep.subr.bf16.mxu0 0
      %1283 = vmatpush1.bf16.msra.mxu0 %v1249
      %1284 = vmatprep.subr.bf16.mxu0 0
      %1285 = vmatpush1.bf16.msra.mxu0 %v1250
      %1286 = vmatprep.subr.bf16.mxu0 0
      %1287 = vmatpush1.bf16.msra.mxu0 %v1251
      %1288 = vmatprep.subr.bf16.mxu0 0
      %1289 = vmatpush1.bf16.msra.mxu0 %v1252
      %1290 = vmatprep.subr.bf16.mxu0 0
      %1291 = vmatpush1.bf16.msra.mxu0 %v1253
      %1292 = vmatprep.subr.bf16.mxu0 0
      %1293 = vmatpush1.bf16.msra.mxu0 %v1254
      %1294 = vmatprep.subr.bf16.mxu0 0
      %1295 = vmatpush1.bf16.msra.mxu0 %v1255
      %1296 = vmatprep.subr.bf16.mxu0 0
      %1297 = vmatpush1.bf16.msra.mxu0 %v1256
      %1298 = vmatprep.subr.bf16.mxu0 0
      %1299 = vmatpush1.bf16.msra.mxu0 %v1257
      %1300 = vmatprep.subr.bf16.mxu0 0
      %1301 = vmatpush1.bf16.msra.mxu0 %v1258
      %1302 = vmatprep.subr.bf16.mxu0 0
      %1303 = vmatpush1.bf16.msra.mxu0 %v1259
      %1304 = vmatprep.subr.bf16.mxu0 0
      %1305 = vmatpush1.bf16.msra.mxu0 %v1260
      %1306 = vmatprep.subr.bf16.mxu0 0
      %1307 = vmatpush1.bf16.msra.mxu0 %v1261
      %1308 = vmatprep.subr.bf16.mxu0 0
      %1309 = vmatpush1.bf16.msra.mxu0 %v1262
      %1310 = vmatprep.subr.bf16.mxu0 0
      %1311 = vmatpush1.bf16.msra.mxu0 %v1263
      %1312 = vmatprep.mubr.bf16.mxu0 %v1161
      %1313 = vmatmul.mubr.bf16.gmra.mrb[0].mxu0 %v1158
      %v1314 = vpop.f32.mrb[0].mxu0
      %v1315 = vadd.f32 0.0, %v1314
      %v1316 = vpop.f32.mrb[0].mxu0
      %v1317 = vpop.f32.mrb[0].mxu0
      %v1318 = vadd.f32 0.0, %v1317
      %v1319 = vpop.f32.mrb[0].mxu0
      %1320 = vmatprep.mubr.bf16.mxu0 %v1165
      %1321 = vmatmul.mubr.bf16.gmra.mrb[0].mxu0 %v1163
      %v1322 = vpop.f32.mrb[0].mxu0
      %v1323 = vadd.f32 0.0, %v1322
      %v1324 = vpop.f32.mrb[0].mxu0
      %v1325 = vpop.f32.mrb[0].mxu0
      %v1326 = vadd.f32 0.0, %v1325
      %v1327 = vpop.f32.mrb[0].mxu0
      %1328 = vmatprep.mubr.bf16.mxu0 %v1169
      %1329 = vmatmul.mubr.bf16.gmra.mrb[0].mxu0 %v1167
      %v1330 = vpop.f32.mrb[0].mxu0
      %v1331 = vadd.f32 0.0, %v1330
      %v1332 = vpop.f32.mrb[0].mxu0
      %v1333 = vpop.f32.mrb[0].mxu0
      %v1334 = vadd.f32 0.0, %v1333
      %v1335 = vpop.f32.mrb[0].mxu0
      %1336 = vmatprep.mubr.bf16.mxu0 %v1173
      %1337 = vmatmul.mubr.bf16.gmra.mrb[0].mxu0 %v1171
      %v1338 = vpop.f32.mrb[0].mxu0
      %v1339 = vadd.f32 0.0, %v1338
      %v1340 = vpop.f32.mrb[0].mxu0
      %v1341 = vpop.f32.mrb[0].mxu0
      %v1342 = vadd.f32 0.0, %v1341
      %v1343 = vpop.f32.mrb[0].mxu0
      %1344 = vmatprep.mubr.bf16.mxu0 %v1172
      %1345 = vmatmul.mubr.bf16.gmra.mrb[0].mxu0 %v1170
      %v1346 = vpop.f32.mrb[0].mxu0
      %v1347 = vadd.f32 0.0, %v1346
      %v1348 = vpop.f32.mrb[0].mxu0
      %v1349 = vpop.f32.mrb[0].mxu0
      %v1350 = vpop.f32.mrb[0].mxu0
      %1351 = vdwg.mxu0
      %v1352 = vadd.f32 %v1107, %v1315
      %v1353 = vadd.f32 %v1108, %v1318
      %v1354 = vadd.f32 %v1109, %v1323
      %v1355 = vadd.f32 %v1110, %v1326
      %v1356 = vadd.f32 %v1111, %v1331
      %v1357 = vadd.f32 %v1112, %v1334
      %v1358 = vadd.f32 %v1113, %v1339
      %v1359 = vadd.f32 %v1114, %v1342
      %v1360 = vadd.f32 %v1115, %v1347
      %v1361 = vlaneseq
      %v1362 = vshrl.u32 %v1361, 7
      %v1363 = vadd.s32 %v1362, 8
      %v1364 = vadd.s32 %v1362, 16
      %v1365 = vadd.s32 %v1362, 24
      %v1366 = vadd.s32 %v1362, 32
      %v1367 = vadd.s32 %v1362, 40
      %v1368 = vadd.s32 %v1362, 48
      %v1369 = vadd.s32 %v1362, 56
      %v1370 = vadd.s32 %v1362, 64
      %vm1371 = vcmp.lt.s32.totalorder %v1362, 0
      %v1372 = vsub.s32 0, %v1362
      %v1373 = vsel %vm1371, %v1372, %v1362
      %v1374 = vmul.u32.u64.compose %v1373, 3817748708
      %v1375 = vextract.low.u32 %v1374
      %v1376 = vextract.high.u32 %v1374
      %v1377 = vshrl.u32 %v1376, 3
      %v1378 = vmul.u32 %v1377, 9
      %v1379 = vsub.s32 %v1373, %v1378
      %v1380 = vsub.s32 0, %v1379
      %v1381 = vsel %vm1371, %v1380, %v1379
      %vm1382 = vcmp.lt.s32.totalorder %v1363, 0
      %v1383 = vsub.s32 0, %v1363
      %v1384 = vsel %vm1382, %v1383, %v1363
      %v1385 = vmul.u32.u64.compose %v1384, 3817748708
      %v1386 = vextract.low.u32 %v1385
      %v1387 = vextract.high.u32 %v1385
      %v1388 = vshrl.u32 %v1387, 3
      %v1389 = vmul.u32 %v1388, 9
      %v1390 = vsub.s32 %v1384, %v1389
      %v1391 = vsub.s32 0, %v1390
      %v1392 = vsel %vm1382, %v1391, %v1390
      %vm1393 = vcmp.lt.s32.totalorder %v1364, 0
      %v1394 = vsub.s32 0, %v1364
      %v1395 = vsel %vm1393, %v1394, %v1364
      %v1396 = vmul.u32.u64.compose %v1395, 3817748708
      %v1397 = vextract.low.u32 %v1396
      %v1398 = vextract.high.u32 %v1396
      %v1399 = vshrl.u32 %v1398, 3
      %v1400 = vmul.u32 %v1399, 9
      %v1401 = vsub.s32 %v1395, %v1400
      %v1402 = vsub.s32 0, %v1401
      %v1403 = vsel %vm1393, %v1402, %v1401
      %vm1404 = vcmp.lt.s32.totalorder %v1365, 0
      %v1405 = vsub.s32 0, %v1365
      %v1406 = vsel %vm1404, %v1405, %v1365
      %v1407 = vmul.u32.u64.compose %v1406, 3817748708
      %v1408 = vextract.low.u32 %v1407
      %v1409 = vextract.high.u32 %v1407
      %v1410 = vshrl.u32 %v1409, 3
      %v1411 = vmul.u32 %v1410, 9
      %v1412 = vsub.s32 %v1406, %v1411
      %v1413 = vsub.s32 0, %v1412
      %v1414 = vsel %vm1404, %v1413, %v1412
      %vm1415 = vcmp.lt.s32.totalorder %v1366, 0
      %v1416 = vsub.s32 0, %v1366
      %v1417 = vsel %vm1415, %v1416, %v1366
      %v1418 = vmul.u32.u64.compose %v1417, 3817748708
      %v1419 = vextract.low.u32 %v1418
      %v1420 = vextract.high.u32 %v1418
      %v1421 = vshrl.u32 %v1420, 3
      %v1422 = vmul.u32 %v1421, 9
      %v1423 = vsub.s32 %v1417, %v1422
      %v1424 = vsub.s32 0, %v1423
      %v1425 = vsel %vm1415, %v1424, %v1423
      %vm1426 = vcmp.lt.s32.totalorder %v1367, 0
      %v1427 = vsub.s32 0, %v1367
      %v1428 = vsel %vm1426, %v1427, %v1367
      %v1429 = vmul.u32.u64.compose %v1428, 3817748708
      %v1430 = vextract.low.u32 %v1429
      %v1431 = vextract.high.u32 %v1429
      %v1432 = vshrl.u32 %v1431, 3
      %v1433 = vmul.u32 %v1432, 9
      %v1434 = vsub.s32 %v1428, %v1433
      %v1435 = vsub.s32 0, %v1434
      %v1436 = vsel %vm1426, %v1435, %v1434
      %vm1437 = vcmp.lt.s32.totalorder %v1368, 0
      %v1438 = vsub.s32 0, %v1368
      %v1439 = vsel %vm1437, %v1438, %v1368
      %v1440 = vmul.u32.u64.compose %v1439, 3817748708
      %v1441 = vextract.low.u32 %v1440
      %v1442 = vextract.high.u32 %v1440
      %v1443 = vshrl.u32 %v1442, 3
      %v1444 = vmul.u32 %v1443, 9
      %v1445 = vsub.s32 %v1439, %v1444
      %v1446 = vsub.s32 0, %v1445
      %v1447 = vsel %vm1437, %v1446, %v1445
      %vm1448 = vcmp.lt.s32.totalorder %v1369, 0
      %v1449 = vsub.s32 0, %v1369
      %v1450 = vsel %vm1448, %v1449, %v1369
      %v1451 = vmul.u32.u64.compose %v1450, 3817748708
      %v1452 = vextract.low.u32 %v1451
      %v1453 = vextract.high.u32 %v1451
      %v1454 = vshrl.u32 %v1453, 3
      %v1455 = vmul.u32 %v1454, 9
      %v1456 = vsub.s32 %v1450, %v1455
      %v1457 = vsub.s32 0, %v1456
      %v1458 = vsel %vm1448, %v1457, %v1456
      %vm1459 = vcmp.lt.s32.totalorder %v1370, 0
      %v1460 = vsub.s32 0, %v1370
      %v1461 = vsel %vm1459, %v1460, %v1370
      %v1462 = vmul.u32.u64.compose %v1461, 3817748708
      %v1463 = vextract.low.u32 %v1462
      %v1464 = vextract.high.u32 %v1462
      %v1465 = vshrl.u32 %v1464, 3
      %v1466 = vmul.u32 %v1465, 9
      %v1467 = vsub.s32 %v1461, %v1466
      %v1468 = vsub.s32 0, %v1467
      %v1469 = vsel %vm1459, %v1468, %v1467
      %vm1470 = vcmp.ne.s32.totalorder %v1381, 0
      %vm1471 = vcmp.ne.s32.totalorder %v1392, 0
      %vm1472 = vcmp.ne.s32.totalorder %v1403, 0
      %vm1473 = vcmp.ne.s32.totalorder %v1414, 0
      %vm1474 = vcmp.ne.s32.totalorder %v1425, 0
      %vm1475 = vcmp.ne.s32.totalorder %v1436, 0
      %vm1476 = vcmp.ne.s32.totalorder %v1447, 0
      %vm1477 = vcmp.ne.s32.totalorder %v1458, 0
      %vm1478 = vcmp.ne.s32.totalorder %v1469, 0
      %vm1479 = vcmp.lt.s32.totalorder %v1381, 0
      %vm1480 = vcmp.lt.s32.totalorder %v1392, 0
      %vm1481 = vcmp.lt.s32.totalorder %v1403, 0
      %vm1482 = vcmp.lt.s32.totalorder %v1414, 0
      %vm1483 = vcmp.lt.s32.totalorder %v1425, 0
      %vm1484 = vcmp.lt.s32.totalorder %v1436, 0
      %vm1485 = vcmp.lt.s32.totalorder %v1447, 0
      %vm1486 = vcmp.lt.s32.totalorder %v1458, 0
      %vm1487 = vcmp.lt.s32.totalorder %v1469, 0
      %vm1488 = vmand %vm1479, %vm1470
      %vm1489 = vmand %vm1480, %vm1471
      %vm1490 = vmand %vm1481, %vm1472
      %vm1491 = vmand %vm1482, %vm1473
      %vm1492 = vmand %vm1483, %vm1474
      %vm1493 = vmand %vm1484, %vm1475
      %vm1494 = vmand %vm1485, %vm1476
      %vm1495 = vmand %vm1486, %vm1477
      %vm1496 = vmand %vm1487, %vm1478
      %v1497 = vadd.s32 %v1381, 9
      %v1498 = vadd.s32 %v1392, 9
      %v1499 = vadd.s32 %v1403, 9
      %v1500 = vadd.s32 %v1414, 9
      %v1501 = vadd.s32 %v1425, 9
      %v1502 = vadd.s32 %v1436, 9
      %v1503 = vadd.s32 %v1447, 9
      %v1504 = vadd.s32 %v1458, 9
      %v1505 = vadd.s32 %v1469, 9
      %v1506 = vsel %vm1488, %v1497, %v1381
      %v1507 = vsel %vm1489, %v1498, %v1392
      %v1508 = vsel %vm1490, %v1499, %v1403
      %v1509 = vsel %vm1491, %v1500, %v1414
      %v1510 = vsel %vm1492, %v1501, %v1425
      %v1511 = vsel %vm1493, %v1502, %v1436
      %v1512 = vsel %vm1494, %v1503, %v1447
      %v1513 = vsel %vm1495, %v1504, %v1458
      %v1514 = vsel %vm1496, %v1505, %v1469
      %vm1515 = vcmp.ne.s32.totalorder %v1506, 8
      %vm1516 = vcmp.ne.s32.totalorder %v1507, 8
      %vm1517 = vcmp.ne.s32.totalorder %v1508, 8
      %vm1518 = vcmp.ne.s32.totalorder %v1509, 8
      %vm1519 = vcmp.ne.s32.totalorder %v1510, 8
      %vm1520 = vcmp.ne.s32.totalorder %v1511, 8
      %vm1521 = vcmp.ne.s32.totalorder %v1512, 8
      %vm1522 = vcmp.ne.s32.totalorder %v1513, 8
      %vm1523 = vcmp.ne.s32.totalorder %v1514, 8
      %v1524 = vsel %vm1515, 1, 0
      %v1525 = vsel %vm1516, 1, 0
      %v1526 = vsel %vm1517, 1, 0
      %v1527 = vsel %vm1518, 1, 0
      %v1528 = vsel %vm1519, 1, 0
      %v1529 = vsel %vm1520, 1, 0
      %v1530 = vsel %vm1521, 1, 0
      %v1531 = vsel %vm1522, 1, 0
      %v1532 = vsel %vm1523, 1, 0
      %vm1533 = vcmp.eq.s32.totalorder %v1524, 1
      %vm1534 = vcmp.eq.s32.totalorder %v1525, 1
      %vm1535 = vcmp.eq.s32.totalorder %v1526, 1
      %vm1536 = vcmp.eq.s32.totalorder %v1527, 1
      %vm1537 = vcmp.eq.s32.totalorder %v1528, 1
      %vm1538 = vcmp.eq.s32.totalorder %v1529, 1
      %vm1539 = vcmp.eq.s32.totalorder %v1530, 1
      %vm1540 = vcmp.eq.s32.totalorder %v1531, 1
      %vm1541 = vcmp.eq.s32.totalorder %v1532, 1
      %v1542 = vsel %vm1533, %v1352, 0.0
      %v1543 = vsel %vm1534, %v1353, 0.0
      %v1544 = vsel %vm1535, %v1354, 0.0
      %v1545 = vsel %vm1536, %v1355, 0.0
      %v1546 = vsel %vm1537, %v1356, 0.0
      %v1547 = vsel %vm1538, %v1357, 0.0
      %v1548 = vsel %vm1539, %v1358, 0.0
      %v1549 = vsel %vm1540, %v1359, 0.0
      %v1550 = vsel %vm1541, %v1360, 0.0
      %v1551 = vadd.f32 %v1542, %v1543
      %v1552 = vadd.f32 %v1551, %v1544
      %v1553 = vadd.f32 %v1552, %v1545
      %v1554 = vadd.f32 %v1553, %v1546
      %v1555 = vadd.f32 %v1554, %v1547
      %v1556 = vadd.f32 %v1555, %v1548
      %v1557 = vadd.f32 %v1556, %v1549
      %v1558 = vadd.f32 %v1557, %v1550
      %v1559 = vrot.slane %v1558, 4
      %v1560 = vadd.f32 %v1558, %v1559
      %v1561 = vrot.slane %v1560, 2
      %v1562 = vadd.f32 %v1560, %v1561
      %v1563 = vrot.slane %v1562, 1
      %v1564 = vadd.f32 %v1562, %v1563
      %1565 = vst [vmem:[%s211] sm:$0x1] %v1564
      %v1566 = vmul.f32 %v1542, %v1542
      %v1567 = vmul.f32 %v1543, %v1543
      %v1568 = vmul.f32 %v1544, %v1544
      %v1569 = vmul.f32 %v1545, %v1545
      %v1570 = vmul.f32 %v1546, %v1546
      %v1571 = vmul.f32 %v1547, %v1547
      %v1572 = vmul.f32 %v1548, %v1548
      %v1573 = vmul.f32 %v1549, %v1549
      %v1574 = vmul.f32 %v1550, %v1550
      %v1575 = vadd.f32 %v1566, %v1567
      %v1576 = vadd.f32 %v1575, %v1568
      %v1577 = vadd.f32 %v1576, %v1569
      %v1578 = vadd.f32 %v1577, %v1570
      %v1579 = vadd.f32 %v1578, %v1571
      %v1580 = vadd.f32 %v1579, %v1572
      %v1581 = vadd.f32 %v1580, %v1573
      %v1582 = vadd.f32 %v1581, %v1574
      %v1583 = vrot.slane %v1582, 4
      %v1584 = vadd.f32 %v1582, %v1583
      %v1585 = vrot.slane %v1584, 2
      %v1586 = vadd.f32 %v1584, %v1585
      %v1587 = vrot.slane %v1586, 1
      %v1588 = vadd.f32 %v1586, %v1587
      %1589 = vst [vmem:[%s214] sm:$0x1] %v1588
      %v1590 = vpack.c.bf16 %v1353, %v1352
      %v1591 = vpack.c.bf16 %v1355, %v1354
      %v1592 = vpack.c.bf16 %v1357, %v1356
      %v1593 = vpack.c.bf16 %v1359, %v1358
      %v1594 = vpack.c.bf16 %v1360, %v1360
      %v1600 = vunpack.c.l.b16 %v1590
      %v1601 = vunpack.c.h.b16 %v1590
      %v1602 = vunpack.c.l.b16 %v1591
      %v1603 = vunpack.c.h.b16 %v1591
      %v1604 = vunpack.c.l.b16 %v1592
      %v1605 = vunpack.c.h.b16 %v1592
      %v1606 = vunpack.c.l.b16 %v1593
      %v1607 = vunpack.c.h.b16 %v1593
      %v1608 = vunpack.c.l.b16 %v1594
      %v1609 = vpack.c.b16 %v1600, %v1600
      %v1610 = vpack.c.b16 %v1601, %v1601
      %v1611 = vpack.c.b16 %v1602, %v1602
      %v1612 = vpack.c.b16 %v1603, %v1603
      %v1613 = vpack.c.b16 %v1604, %v1604
      %v1614 = vpack.c.b16 %v1605, %v1605
      %v1615 = vpack.c.b16 %v1606, %v1606
      %v1616 = vpack.c.b16 %v1607, %v1607
      %v1617 = vpack.c.b16 %v1608, %v1608
      %1627 = vst [vmem:[%s208] sm:$0xf] %v1609
      %1628 = vst [vmem:[%s208 + $0x4] sm:$0xf] %v1610
      %1629 = vst [vmem:[%s208 + $0x8] sm:$0xf] %v1611
      %1630 = vst [vmem:[%s208 + $0xc] sm:$0xf] %v1612
      %1631 = vst [vmem:[%s208 + $0x10] sm:$0xf] %v1613
      %1632 = vst [vmem:[%s208 + $0x14] sm:$0xf] %v1614
      %1633 = vst [vmem:[%s208 + $0x18] sm:$0xf] %v1615
      %1634 = vst [vmem:[%s208 + $0x1c] sm:$0xf] %v1616
      %1635 = vst [vmem:[%s208 + $0x20] sm:$0xf] %v1617
      %p1636 = scmp.lt.s32.totalorder %s16, 1
      %s1637 = scalar_select %p1636, %s16, 1
      %s1638 = smul.addr %s1637, 9
      %s1639 = smul.addr %s1638, 4
      %s1640 = scalar_lea.vmem %s2, %s1639
      %p1641 = scmp.lt.s32.totalorder %s16, 1
      %s1642 = scalar_select %p1641, %s16, 1
      %s1643 = scalar_lea.vmem %s3, %s1642
      %p1644 = scmp.lt.s32.totalorder %s16, 1
      %s1645 = scalar_select %p1644, %s16, 1
      %s1646 = scalar_lea.vmem %s4, %s1645
      // Predicated region
      $region29: #{discriminator_sec_forward.6} parent=27 // pred_check
        %p1647 = pneg %p81
      $region30: #{discriminator_sec_forward.6} parent=27 // pred_check_branch
        %1649 = sbr.rel (%p1647) target = $region32
      $region31: #{discriminator_sec_forward.6} parent=27 // pred_region
        _
      $region32: #{discriminator_sec_forward.6} parent=27 // pred_fallthru
        _
      // Predicated region
      $region33: #{discriminator_sec_forward.6} parent=27 // pred_check
        %p1650 = pneg %p107
      $region34: #{discriminator_sec_forward.6} parent=27 // pred_check_branch
        %1652 = sbr.rel (%p1650) target = $region36
      $region35: #{discriminator_sec_forward.6} parent=27 // pred_region
        _
      $region36: #{discriminator_sec_forward.6} parent=27 // pred_fallthru
        _
      // Predicated region
      $region37: #{discriminator_sec_forward.6} parent=27 // pred_check
        %p1653 = pneg %p133
      $region38: #{discriminator_sec_forward.6} parent=27 // pred_check_branch
        %1655 = sbr.rel (%p1653) target = $region40
      $region39: #{discriminator_sec_forward.6} parent=27 // pred_region
        _
      $region40: #{discriminator_sec_forward.6} parent=27 // pred_fallthru
        _
    $region28: #{discriminator_sec_forward.6} parent=5 // pred_fallthru
      _
    %p1656 = scmp.le.s32.totalorder 2, %s11
    // Predicated region
    $region41: #{discriminator_sec_forward.6} parent=5 // pred_check
      %p1657 = pneg %p1656
    $region42: #{discriminator_sec_forward.6} parent=5 // pred_check_branch
      %1659 = sbr.rel (%p1657) target = $region44
    $region43: #{discriminator_sec_forward.6} parent=5 // pred_region
      %s1660 = ssub.s32 %s11, 2
      // Predicated region
      $region45: #{discriminator_sec_forward.6} parent=43 // pred_check
        %p1661 = pneg %p87
      $region46: #{discriminator_sec_forward.6} parent=43 // pred_check_branch
        %1663 = sbr.rel (%p1661) target = $region48
      $region47: #{discriminator_sec_forward.6} parent=43 // pred_region
        %p1664 = scmp.lt.s32.totalorder %s17, 1
        %s1665 = scalar_select %p1664, %s17, 1
        %s1666 = smul.addr %s1665, 9
        %s1667 = smul.addr %s1666, 4
        %s1668 = scalar_lea.vmem %s2, %s1667
      $region48: #{discriminator_sec_forward.6} parent=43 // pred_fallthru
        _
      // Predicated region
      $region49: #{discriminator_sec_forward.6} parent=43 // pred_check
        %p1669 = pneg %p113
      $region50: #{discriminator_sec_forward.6} parent=43 // pred_check_branch
        %1671 = sbr.rel (%p1669) target = $region52
      $region51: #{discriminator_sec_forward.6} parent=43 // pred_region
        %p1672 = scmp.lt.s32.totalorder %s17, 1
        %s1673 = scalar_select %p1672, %s17, 1
        %s1674 = scalar_lea.vmem %s3, %s1673
      $region52: #{discriminator_sec_forward.6} parent=43 // pred_fallthru
        _
      // Predicated region
      $region53: #{discriminator_sec_forward.6} parent=43 // pred_check
        %p1675 = pneg %p139
      $region54: #{discriminator_sec_forward.6} parent=43 // pred_check_branch
        %1677 = sbr.rel (%p1675) target = $region56
      $region55: #{discriminator_sec_forward.6} parent=43 // pred_region
        %p1678 = scmp.lt.s32.totalorder %s17, 1
        %s1679 = scalar_select %p1678, %s17, 1
        %s1680 = scalar_lea.vmem %s4, %s1679
      $region56: #{discriminator_sec_forward.6} parent=43 // pred_fallthru
        _
    $region44: #{discriminator_sec_forward.6} parent=5 // pred_fallthru
      _
  $region6: #{discriminator_sec_forward.6} parent=0 // loop_footer
    %s15 = sadd.s32 1, %s11
  $region7: #{discriminator_sec_forward.6} parent=0 // loop_footer_branch
    %10 = sbr.rel target = $region3
  $region8: #{discriminator_sec_forward.6} parent=0 // loop_exit
    _

// kernel: discriminator_sec_forward.9
$region0: #{discriminator_sec_forward.9}
  #allocation0 [shape = 'u32[]', space=smem, size = 0x4, offset = 0x4, fixed_abs, tag = 'smem constant byte address 0x4 - core index']
  #allocation1 [shape = 'u32[144,128]{1,0:T(1,128)}', space=vmem, size = 0x12000, scoped, tag = 'internal scratch']
  %s0 = inlined_call_operand.vmem [shape: bf16[40,256], index: 0, kind: input, shape index: {}]
  %s1 = inlined_call_operand.vmem [shape: f32[1,256], index: 1, kind: input, shape index: {}]
  %s2 = inlined_call_operand.vmem [shape: f32[1,256], index: 2, kind: input, shape index: {}]
  %s3 = inlined_call_operand.vmem [shape: bf16[40,256], index: 3, kind: output, shape index: {}]
  %s4 = sld [smem:[#allocation0]]
  $region22: #{discriminator_sec_forward.9} parent=0
    _
  %s6 = ssub.s32 1, %s4
  %s7 = scalar_select 0, %s6, %s4
  // Predicated region
  $region2: #{discriminator_sec_forward.9} parent=0 // pred_check
    _
  $region3: #{discriminator_sec_forward.9} parent=0 // pred_check_branch
    %9 = sbr.rel (0) target = $region5
  $region4: #{discriminator_sec_forward.9} parent=0 // pred_region
    _
  $region5: #{discriminator_sec_forward.9} parent=0 // pred_fallthru
    _
  // Predicated region
  $region6: #{discriminator_sec_forward.9} parent=0 // pred_check
    _
  $region7: #{discriminator_sec_forward.9} parent=0 // pred_check_branch
    %11 = sbr.rel (0) target = $region9
  $region8: #{discriminator_sec_forward.9} parent=0 // pred_region
    _
  $region9: #{discriminator_sec_forward.9} parent=0 // pred_fallthru
    _
  // Predicated region
  $region10: #{discriminator_sec_forward.9} parent=0 // pred_check
    _
  $region11: #{discriminator_sec_forward.9} parent=0 // pred_check_branch
    %13 = sbr.rel (0) target = $region13
  $region12: #{discriminator_sec_forward.9} parent=0 // pred_region
    _
  $region13: #{discriminator_sec_forward.9} parent=0 // pred_fallthru
    _
  %v14 = vld [vmem:[%s0] sm:$0xff]
  %v15 = vld [vmem:[%s0 + $0x8] sm:$0xff]
  %v16 = vld [vmem:[%s0 + $0x10] sm:$0xff]
  %v17 = vld [vmem:[%s0 + $0x18] sm:$0xff]
  %v18 = vld [vmem:[%s0 + $0x20] sm:$0xff]
  %v19 = vunpack.c.l.bf16 %v14
  %v20 = vunpack.c.h.bf16 %v14
  %v21 = vunpack.c.l.bf16 %v15
  %v22 = vunpack.c.h.bf16 %v15
  %v23 = vunpack.c.l.bf16 %v16
  %v24 = vunpack.c.h.bf16 %v16
  %v25 = vunpack.c.l.bf16 %v17
  %v26 = vunpack.c.h.bf16 %v17
  %v27 = vunpack.c.l.bf16 %v18
  %v28 = vunpack.c.h.bf16 %v18
  %v29 = vld [vmem:[%s1] sm:$0x3]
  %v31 = vlaneseq
  %v32 = vshrl.u32 %v31, 7
  %v33 = vsub.s32 0, %v32
  %v34 = vrot.slane %v29, %v33
  %v35 = vlaneseq
  %v36 = vshrl.u32 %v35, 7
  %v37 = vsub.s32 1, %v36
  %v38 = vrot.slane %v29, %v37
  %v41 = vmul.f32 %v19, %v34
  %v42 = vmul.f32 %v20, %v38
  %v43 = vmul.f32 %v21, %v34
  %v44 = vmul.f32 %v22, %v38
  %v45 = vmul.f32 %v23, %v34
  %v46 = vmul.f32 %v24, %v38
  %v47 = vmul.f32 %v25, %v34
  %v48 = vmul.f32 %v26, %v38
  %v49 = vmul.f32 %v27, %v34
  %v50 = vmul.f32 %v28, %v38
  %v51 = vld [vmem:[%s2] sm:$0x3]
  %v53 = vlaneseq
  %v54 = vshrl.u32 %v53, 7
  %v55 = vsub.s32 0, %v54
  %v56 = vrot.slane %v51, %v55
  %v57 = vlaneseq
  %v58 = vshrl.u32 %v57, 7
  %v59 = vsub.s32 1, %v58
  %v60 = vrot.slane %v51, %v59
  %v63 = vadd.f32 %v41, %v56
  %v64 = vadd.f32 %v42, %v60
  %v65 = vadd.f32 %v43, %v56
  %v66 = vadd.f32 %v44, %v60
  %v67 = vadd.f32 %v45, %v56
  %v68 = vadd.f32 %v46, %v60
  %v69 = vadd.f32 %v47, %v56
  %v70 = vadd.f32 %v48, %v60
  %v71 = vadd.f32 %v49, %v56
  %v72 = vadd.f32 %v50, %v60
  %vm73 = vcmp.ge.f32.partialorder %v63, 0.0
  %vm74 = vcmp.ge.f32.partialorder %v64, 0.0
  %vm75 = vcmp.ge.f32.partialorder %v65, 0.0
  %vm76 = vcmp.ge.f32.partialorder %v66, 0.0
  %vm77 = vcmp.ge.f32.partialorder %v67, 0.0
  %vm78 = vcmp.ge.f32.partialorder %v68, 0.0
  %vm79 = vcmp.ge.f32.partialorder %v69, 0.0
  %vm80 = vcmp.ge.f32.partialorder %v70, 0.0
  %vm81 = vcmp.ge.f32.partialorder %v71, 0.0
  %vm82 = vcmp.ge.f32.partialorder %v72, 0.0
  %v83 = vmul.f32 %v63, 0.2
  %v84 = vmul.f32 %v64, 0.2
  %v85 = vmul.f32 %v65, 0.2
  %v86 = vmul.f32 %v66, 0.2
  %v87 = vmul.f32 %v67, 0.2
  %v88 = vmul.f32 %v68, 0.2
  %v89 = vmul.f32 %v69, 0.2
  %v90 = vmul.f32 %v70, 0.2
  %v91 = vmul.f32 %v71, 0.2
  %v92 = vmul.f32 %v72, 0.2
  %v93 = vsel %vm73, %v63, %v83
  %v94 = vsel %vm74, %v64, %v84
  %v95 = vsel %vm75, %v65, %v85
  %v96 = vsel %vm76, %v66, %v86
  %v97 = vsel %vm77, %v67, %v87
  %v98 = vsel %vm78, %v68, %v88
  %v99 = vsel %vm79, %v69, %v89
  %v100 = vsel %vm80, %v70, %v90
  %v101 = vsel %vm81, %v71, %v91
  %v102 = vsel %vm82, %v72, %v92
  %v103 = vpack.c.bf16 %v95, %v93
  %v104 = vpack.c.bf16 %v96, %v94
  %v105 = vpack.c.bf16 %v99, %v97
  %v106 = vpack.c.bf16 %v100, %v98
  %v107 = vpack.c.bf16 %v101, %v101
  %v108 = vpack.c.bf16 %v102, %v102
  %v115 = vunpack.c.l.b16 %v103
  %v116 = vunpack.c.l.b16 %v104
  %v117 = vunpack.c.h.b16 %v103
  %v118 = vunpack.c.h.b16 %v104
  %v119 = vunpack.c.l.b16 %v105
  %v120 = vunpack.c.l.b16 %v106
  %v121 = vunpack.c.h.b16 %v105
  %v122 = vunpack.c.h.b16 %v106
  %v123 = vunpack.c.l.b16 %v107
  %v124 = vunpack.c.l.b16 %v108
  %v125 = vpack.c.b16 %v116, %v115
  %v126 = vpack.c.b16 %v118, %v117
  %v127 = vpack.c.b16 %v120, %v119
  %v128 = vpack.c.b16 %v122, %v121
  %v129 = vpack.c.b16 %v124, %v123
  %135 = vst [vmem:[%s3] sm:$0xff] %v125
  %136 = vst [vmem:[%s3 + $0x8] sm:$0xff] %v126
  %137 = vst [vmem:[%s3 + $0x10] sm:$0xff] %v127
  %138 = vst [vmem:[%s3 + $0x18] sm:$0xff] %v128
  %139 = vst [vmem:[%s3 + $0x20] sm:$0xff] %v129
  // Predicated region
  $region14: #{discriminator_sec_forward.9} parent=0 // pred_check
    _
  $region15: #{discriminator_sec_forward.9} parent=0 // pred_check_branch
    %141 = sbr.rel (0) target = $region17
  $region16: #{discriminator_sec_forward.9} parent=0 // pred_region
    _
  $region17: #{discriminator_sec_forward.9} parent=0 // pred_fallthru
    _
  // Predicated region
  $region18: #{discriminator_sec_forward.9} parent=0 // pred_check
    _
  $region19: #{discriminator_sec_forward.9} parent=0 // pred_check_branch
    %143 = sbr.rel (0) target = $region21
  $region20: #{discriminator_sec_forward.9} parent=0 // pred_region
    _
  $region21: #{discriminator_sec_forward.9} parent=0 // pred_fallthru
    _

// kernel: discriminator_sec_forward.8
$region0: #{discriminator_sec_forward.8}
  #allocation0 [shape = 'u32[]', space=smem, size = 0x4, offset = 0x4, fixed_abs, tag = 'smem constant byte address 0x4 - core index']
  #allocation1 [shape = 'u32[144,128]{1,0:T(1,128)}', space=vmem, size = 0x12000, scoped, tag = 'internal scratch']
  %s0 = inlined_call_operand.vmem [shape: bf16[2,33,512], index: 0, kind: input, shape index: {}]
  %s1 = inlined_call_operand.vmem [shape: bf16[4,512,256], index: 1, kind: input, shape index: {}]
  %s2 = inlined_call_operand.vmem [shape: bf16[2,20,256], index: 2, kind: output, shape index: {0}]
  %s3 = inlined_call_operand.vmem [shape: f32[2,1,256], index: 3, kind: output, shape index: {1}]
  %s4 = inlined_call_operand.vmem [shape: f32[2,1,256], index: 4, kind: output, shape index: {2}]
  %5 = xla_tuple %s2, %s3, %s4
  %s6 = sld [smem:[#allocation0]]
  $region57: #{discriminator_sec_forward.8} parent=0
    _
  %s8 = ssub.s32 1, %s6
  %s9 = scalar_select 0, %s8, %s6
  loop: start=0, step=1, limit=4
  $region2: #{discriminator_sec_forward.8} parent=0 // loop_pre_header
    _
  $region3: #{discriminator_sec_forward.8} parent=0 // loop_header
    %s11 = sphi 0, %s15
    %p12 = scmp.ge.s32.totalorder %s11, 4
    %s21 = sphi 0, %s23
    %s24 = sphi 0, %s21
    %s25 = sphi 0, %s24
    %s41 = sphi 0, %s25
    %s45 = sphi 0, %s45
    %s47 = sphi 0, %s45
    %s48 = sphi 0, %s47
    %s62 = sphi 0, %s48
    %s68 = sphi 0, %s70
    %s71 = sphi 0, %s68
    %s72 = sphi 0, %s71
    %s88 = sphi 0, %s72
    %s94 = sphi 0, %s96
    %s97 = sphi 0, %s94
    %s98 = sphi 0, %s97
    %s114 = sphi 0, %s98
    %s120 = sphi 0, %s122
    %s123 = sphi 0, %s120
    %s124 = sphi 0, %s123
    %s140 = sphi 0, %s124
  $region4: #{discriminator_sec_forward.8} parent=0 // loop_header_branch
    %14 = sbr.rel (%p12) target = $region8
  $region5: #{discriminator_sec_forward.8} parent=0 // loop_body
    %s16 = ssub.s32 %s11, 1
    %s17 = ssub.s32 %s11, 2
    %s18 = sadd.s32 %s11, 1
    %s19 = ssub.s32 %s11, %s18
    %p20 = scmp.eq.s32.totalorder %s19, 0
    %s22 = sadd.s32 %s21, 1
    %s23 = scalar_select %p20, %s21, %s22
    %p26 = pneg %p20
    %p27 = scmp.eq.s32.totalorder %s11, 1
    %p28 = por %p26, %p27
    %p29 = scmp.ne.s32.totalorder %s21, %s24
    %p30 = scmp.eq.s32.totalorder %s11, 0
    %p31 = por %p29, %p30
    %p32 = scmp.ne.s32.totalorder %s21, %s24
    %p33 = scmp.eq.s32.totalorder %s16, 1
    %p34 = por %p32, %p33
    %p35 = scmp.ne.s32.totalorder %s24, %s25
    %p36 = scmp.eq.s32.totalorder %s16, 0
    %p37 = por %p35, %p36
    %p38 = scmp.ne.s32.totalorder %s24, %s25
    %p39 = scmp.eq.s32.totalorder %s17, 1
    %p40 = por %p38, %p39
    %p42 = scmp.ne.s32.totalorder %s25, %s41
    %p43 = scmp.eq.s32.totalorder %s17, 0
    %p44 = por %p42, %p43
    %s46 = sadd.s32 %s45, 1
    %p49 = scmp.eq.s32.totalorder %s11, 1
    %p50 = scmp.ne.s32.totalorder %s45, %s47
    %p51 = scmp.eq.s32.totalorder %s11, 0
    %p52 = por %p50, %p51
    %p53 = scmp.ne.s32.totalorder %s45, %s47
    %p54 = scmp.eq.s32.totalorder %s16, 1
    %p55 = por %p53, %p54
    %p56 = scmp.ne.s32.totalorder %s47, %s48
    %p57 = scmp.eq.s32.totalorder %s16, 0
    %p58 = por %p56, %p57
    %p59 = scmp.ne.s32.totalorder %s47, %s48
    %p60 = scmp.eq.s32.totalorder %s17, 1
    %p61 = por %p59, %p60
    %p63 = scmp.ne.s32.totalorder %s48, %s62
    %p64 = scmp.eq.s32.totalorder %s17, 0
    %p65 = por %p63, %p64
    %s66 = ssub.s32 %s11, %s18
    %p67 = scmp.eq.s32.totalorder %s66, 0
    %s69 = sadd.s32 %s68, 1
    %s70 = scalar_select %p67, %s68, %s69
    %p73 = pneg %p67
    %p74 = scmp.eq.s32.totalorder %s11, 1
    %p75 = por %p73, %p74
    %p76 = scmp.ne.s32.totalorder %s68, %s71
    %p77 = scmp.eq.s32.totalorder %s11, 0
    %p78 = por %p76, %p77
    %p79 = scmp.ne.s32.totalorder %s68, %s71
    %p80 = scmp.eq.s32.totalorder %s16, 1
    %p81 = por %p79, %p80
    %p82 = scmp.ne.s32.totalorder %s71, %s72
    %p83 = scmp.eq.s32.totalorder %s16, 0
    %p84 = por %p82, %p83
    %p85 = scmp.ne.s32.totalorder %s71, %s72
    %p86 = scmp.eq.s32.totalorder %s17, 1
    %p87 = por %p85, %p86
    %p89 = scmp.ne.s32.totalorder %s72, %s88
    %p90 = scmp.eq.s32.totalorder %s17, 0
    %p91 = por %p89, %p90
    %s92 = ssub.s32 %s11, %s18
    %p93 = scmp.eq.s32.totalorder %s92, 0
    %s95 = sadd.s32 %s94, 1
    %s96 = scalar_select %p93, %s94, %s95
    %p99 = pneg %p93
    %p100 = scmp.eq.s32.totalorder %s11, 1
    %p101 = por %p99, %p100
    %p102 = scmp.ne.s32.totalorder %s94, %s97
    %p103 = scmp.eq.s32.totalorder %s11, 0
    %p104 = por %p102, %p103
    %p105 = scmp.ne.s32.totalorder %s94, %s97
    %p106 = scmp.eq.s32.totalorder %s16, 1
    %p107 = por %p105, %p106
    %p108 = scmp.ne.s32.totalorder %s97, %s98
    %p109 = scmp.eq.s32.totalorder %s16, 0
    %p110 = por %p108, %p109
    %p111 = scmp.ne.s32.totalorder %s97, %s98
    %p112 = scmp.eq.s32.totalorder %s17, 1
    %p113 = por %p111, %p112
    %p115 = scmp.ne.s32.totalorder %s98, %s114
    %p116 = scmp.eq.s32.totalorder %s17, 0
    %p117 = por %p115, %p116
    %s118 = ssub.s32 %s11, %s18
    %p119 = scmp.eq.s32.totalorder %s118, 0
    %s121 = sadd.s32 %s120, 1
    %s122 = scalar_select %p119, %s120, %s121
    %p125 = pneg %p119
    %p126 = scmp.eq.s32.totalorder %s11, 1
    %p127 = por %p125, %p126
    %p128 = scmp.ne.s32.totalorder %s120, %s123
    %p129 = scmp.eq.s32.totalorder %s11, 0
    %p130 = por %p128, %p129
    %p131 = scmp.ne.s32.totalorder %s120, %s123
    %p132 = scmp.eq.s32.totalorder %s16, 1
    %p133 = por %p131, %p132
    %p134 = scmp.ne.s32.totalorder %s123, %s124
    %p135 = scmp.eq.s32.totalorder %s16, 0
    %p136 = por %p134, %p135
    %p137 = scmp.ne.s32.totalorder %s123, %s124
    %p138 = scmp.eq.s32.totalorder %s17, 1
    %p139 = por %p137, %p138
    %p141 = scmp.ne.s32.totalorder %s124, %s140
    %p142 = scmp.eq.s32.totalorder %s17, 0
    %p143 = por %p141, %p142
    %p144 = scmp.le.s32.totalorder 1, %s11
    %p145 = scmp.lt.s32.totalorder %s11, 3
    %p146 = pnand %p144, %p145
    %p147 = pneg %p146
    // Predicated region
    $region9: #{discriminator_sec_forward.8} parent=5 // pred_check
      _
    $region10: #{discriminator_sec_forward.8} parent=5 // pred_check_branch
      %149 = sbr.rel (%p146) target = $region12
    $region11: #{discriminator_sec_forward.8} parent=5 // pred_region
      %s150 = ssub.s32 %s11, 1
      // Predicated region
      $region13: #{discriminator_sec_forward.8} parent=11 // pred_check
        %p151 = pneg %p58
      $region14: #{discriminator_sec_forward.8} parent=11 // pred_check_branch
        %153 = sbr.rel (%p151) target = $region16
      $region15: #{discriminator_sec_forward.8} parent=11 // pred_region
        _
      $region16: #{discriminator_sec_forward.8} parent=11 // pred_fallthru
        _
    $region12: #{discriminator_sec_forward.8} parent=5 // pred_fallthru
      _
    %p154 = scmp.lt.s32.totalorder %s11, 2
    // Predicated region
    $region17: #{discriminator_sec_forward.8} parent=5 // pred_check
      %p155 = pneg %p154
    $region18: #{discriminator_sec_forward.8} parent=5 // pred_check_branch
      %157 = sbr.rel (%p155) target = $region20
    $region19: #{discriminator_sec_forward.8} parent=5 // pred_region
      // Predicated region
      $region21: #{discriminator_sec_forward.8} parent=19 // pred_check
        %p158 = pneg %p31
      $region22: #{discriminator_sec_forward.8} parent=19 // pred_check_branch
        %160 = sbr.rel (%p158) target = $region24
      $region23: #{discriminator_sec_forward.8} parent=19 // pred_region
        %p161 = scmp.lt.s32.totalorder %s11, 1
        %s162 = scalar_select %p161, %s11, 1
        %s163 = smul.addr %s162, 20
        %s164 = smul.addr %s163, 4
        %s165 = scalar_lea.vmem %s0, %s164
      $region24: #{discriminator_sec_forward.8} parent=19 // pred_fallthru
        _
    $region20: #{discriminator_sec_forward.8} parent=5 // pred_fallthru
      _
    %p166 = scmp.le.s32.totalorder 1, %s11
    %p167 = scmp.lt.s32.totalorder %s11, 3
    %p168 = pnand %p166, %p167
    %p169 = pneg %p168
    // Predicated region
    $region25: #{discriminator_sec_forward.8} parent=5 // pred_check
      _
    $region26: #{discriminator_sec_forward.8} parent=5 // pred_check_branch
      %171 = sbr.rel (%p168) target = $region28
    $region27: #{discriminator_sec_forward.8} parent=5 // pred_region
      %s172 = ssub.s32 %s11, 1
      %p173 = scmp.lt.s32.totalorder %s16, 1
      %s174 = scalar_select %p173, %s16, 1
      %s175 = smul.addr %s174, 20
      %s176 = smul.addr %s175, 4
      %s177 = scalar_lea.vmem %s0, %s176
      %p178 = pneg %p37
      %p179 = pneg %p34
      %p180 = pneg %p58
      %p181 = pneg %p55
      %p182 = pneg %p84
      %p183 = pneg %p81
      %p184 = scmp.lt.s32.totalorder %s16, 1
      %s185 = scalar_select %p184, %s16, 1
      %s186 = smul.addr %s185, 6
      %s187 = smul.addr %s186, 4
      %s188 = scalar_lea.vmem %s2, %s187
      %p189 = pneg %p110
      %p190 = pneg %p107
      %p191 = scmp.lt.s32.totalorder %s16, 1
      %s192 = scalar_select %p191, %s16, 1
      %s193 = smul.addr %s192, 2
      %s194 = scalar_lea.vmem %s3, %s193
      %p195 = pneg %p136
      %p196 = pneg %p133
      %p197 = scmp.lt.s32.totalorder %s16, 1
      %s198 = scalar_select %p197, %s16, 1
      %s199 = smul.addr %s198, 2
      %s200 = scalar_lea.vmem %s4, %s199
      %p201 = scmp.lt.s32.totalorder %s16, 1
      %s202 = scalar_select %p201, %s16, 1
      %s203 = smul.addr %s202, 20
      %s204 = smul.addr %s203, 4
      %s205 = scalar_lea.vmem %s0, %s204
      %p206 = scmp.lt.s32.totalorder %s16, 1
      %s207 = scalar_select %p206, %s16, 1
      %s208 = smul.addr %s207, 6
      %s209 = smul.addr %s208, 4
      %s210 = scalar_lea.vmem %s2, %s209
      %p211 = scmp.lt.s32.totalorder %s16, 1
      %s212 = scalar_select %p211, %s16, 1
      %s213 = smul.addr %s212, 2
      %s214 = scalar_lea.vmem %s3, %s213
      %p215 = scmp.lt.s32.totalorder %s16, 1
      %s216 = scalar_select %p215, %s16, 1
      %s217 = smul.addr %s216, 2
      %s218 = scalar_lea.vmem %s4, %s217
      %v219 = vld [vmem:[%s205] sm:$0xff]
      %v220 = vld [vmem:[%s205 + $0x8] sm:$0xff]
      %v221 = vld [vmem:[%s205 + $0x10] sm:$0xff]
      %v222 = vld [vmem:[%s205 + $0x18] sm:$0xff]
      %v223 = vld [vmem:[%s205 + $0x20] sm:$0x33]
      %v224 = vld [vmem:[%s205 + $0x28] sm:$0x33]
      %v225 = vld [vmem:[%s1] sm:$0xff]
      %v226 = vld [vmem:[%s1 + $0x8] sm:$0xff]
      %v227 = vld [vmem:[%s1 + $0x10] sm:$0xff]
      %v228 = vld [vmem:[%s1 + $0x18] sm:$0xff]
      %v229 = vld [vmem:[%s1 + $0x20] sm:$0xff]
      %v230 = vld [vmem:[%s1 + $0x28] sm:$0xff]
      %v231 = vld [vmem:[%s1 + $0x30] sm:$0xff]
      %v232 = vld [vmem:[%s1 + $0x38] sm:$0xff]
      %v233 = vld [vmem:[%s1 + $0x40] sm:$0xff]
      %v234 = vld [vmem:[%s1 + $0x48] sm:$0xff]
      %v235 = vld [vmem:[%s1 + $0x50] sm:$0xff]
      %v236 = vld [vmem:[%s1 + $0x58] sm:$0xff]
      %v237 = vld [vmem:[%s1 + $0x60] sm:$0xff]
      %v238 = vld [vmem:[%s1 + $0x68] sm:$0xff]
      %v239 = vld [vmem:[%s1 + $0x70] sm:$0xff]
      %v240 = vld [vmem:[%s1 + $0x78] sm:$0xff]
      %v241 = vld [vmem:[%s1 + $0x80] sm:$0xff]
      %v242 = vld [vmem:[%s1 + $0x88] sm:$0xff]
      %v243 = vld [vmem:[%s1 + $0x90] sm:$0xff]
      %v244 = vld [vmem:[%s1 + $0x98] sm:$0xff]
      %v245 = vld [vmem:[%s1 + $0xa0] sm:$0xff]
      %v246 = vld [vmem:[%s1 + $0xa8] sm:$0xff]
      %v247 = vld [vmem:[%s1 + $0xb0] sm:$0xff]
      %v248 = vld [vmem:[%s1 + $0xb8] sm:$0xff]
      %v249 = vld [vmem:[%s1 + $0xc0] sm:$0xff]
      %v250 = vld [vmem:[%s1 + $0xc8] sm:$0xff]
      %v251 = vld [vmem:[%s1 + $0xd0] sm:$0xff]
      %v252 = vld [vmem:[%s1 + $0xd8] sm:$0xff]
      %v253 = vld [vmem:[%s1 + $0xe0] sm:$0xff]
      %v254 = vld [vmem:[%s1 + $0xe8] sm:$0xff]
      %v255 = vld [vmem:[%s1 + $0xf0] sm:$0xff]
      %v256 = vld [vmem:[%s1 + $0xf8] sm:$0xff]
      %v257 = vld [vmem:[%s1 + $0x100] sm:$0xff]
      %v258 = vld [vmem:[%s1 + $0x108] sm:$0xff]
      %v259 = vld [vmem:[%s1 + $0x110] sm:$0xff]
      %v260 = vld [vmem:[%s1 + $0x118] sm:$0xff]
      %v261 = vld [vmem:[%s1 + $0x120] sm:$0xff]
      %v262 = vld [vmem:[%s1 + $0x128] sm:$0xff]
      %v263 = vld [vmem:[%s1 + $0x130] sm:$0xff]
      %v264 = vld [vmem:[%s1 + $0x138] sm:$0xff]
      %v265 = vld [vmem:[%s1 + $0x140] sm:$0xff]
      %v266 = vld [vmem:[%s1 + $0x148] sm:$0xff]
      %v267 = vld [vmem:[%s1 + $0x150] sm:$0xff]
      %v268 = vld [vmem:[%s1 + $0x158] sm:$0xff]
      %v269 = vld [vmem:[%s1 + $0x160] sm:$0xff]
      %v270 = vld [vmem:[%s1 + $0x168] sm:$0xff]
      %v271 = vld [vmem:[%s1 + $0x170] sm:$0xff]
      %v272 = vld [vmem:[%s1 + $0x178] sm:$0xff]
      %v273 = vld [vmem:[%s1 + $0x180] sm:$0xff]
      %v274 = vld [vmem:[%s1 + $0x188] sm:$0xff]
      %v275 = vld [vmem:[%s1 + $0x190] sm:$0xff]
      %v276 = vld [vmem:[%s1 + $0x198] sm:$0xff]
      %v277 = vld [vmem:[%s1 + $0x1a0] sm:$0xff]
      %v278 = vld [vmem:[%s1 + $0x1a8] sm:$0xff]
      %v279 = vld [vmem:[%s1 + $0x1b0] sm:$0xff]
      %v280 = vld [vmem:[%s1 + $0x1b8] sm:$0xff]
      %v281 = vld [vmem:[%s1 + $0x1c0] sm:$0xff]
      %v282 = vld [vmem:[%s1 + $0x1c8] sm:$0xff]
      %v283 = vld [vmem:[%s1 + $0x1d0] sm:$0xff]
      %v284 = vld [vmem:[%s1 + $0x1d8] sm:$0xff]
      %v285 = vld [vmem:[%s1 + $0x1e0] sm:$0xff]
      %v286 = vld [vmem:[%s1 + $0x1e8] sm:$0xff]
      %v287 = vld [vmem:[%s1 + $0x1f0] sm:$0xff]
      %v288 = vld [vmem:[%s1 + $0x1f8] sm:$0xff]
      %v289 = vld [vmem:[%s205 + $0x20] sm:$0x77]
      %v290 = vld [vmem:[%s205 + $0x28] sm:$0x77]
      %s291 = scalar_lea.vmem %s1, 512
      %v292 = vld [vmem:[%s291] sm:$0xff]
      %v293 = vld [vmem:[%s291 + $0x8] sm:$0xff]
      %v294 = vld [vmem:[%s291 + $0x10] sm:$0xff]
      %v295 = vld [vmem:[%s291 + $0x18] sm:$0xff]
      %v296 = vld [vmem:[%s291 + $0x20] sm:$0xff]
      %v297 = vld [vmem:[%s291 + $0x28] sm:$0xff]
      %v298 = vld [vmem:[%s291 + $0x30] sm:$0xff]
      %v299 = vld [vmem:[%s291 + $0x38] sm:$0xff]
      %v300 = vld [vmem:[%s291 + $0x40] sm:$0xff]
      %v301 = vld [vmem:[%s291 + $0x48] sm:$0xff]
      %v302 = vld [vmem:[%s291 + $0x50] sm:$0xff]
      %v303 = vld [vmem:[%s291 + $0x58] sm:$0xff]
      %v304 = vld [vmem:[%s291 + $0x60] sm:$0xff]
      %v305 = vld [vmem:[%s291 + $0x68] sm:$0xff]
      %v306 = vld [vmem:[%s291 + $0x70] sm:$0xff]
      %v307 = vld [vmem:[%s291 + $0x78] sm:$0xff]
      %v308 = vld [vmem:[%s291 + $0x80] sm:$0xff]
      %v309 = vld [vmem:[%s291 + $0x88] sm:$0xff]
      %v310 = vld [vmem:[%s291 + $0x90] sm:$0xff]
      %v311 = vld [vmem:[%s291 + $0x98] sm:$0xff]
      %v312 = vld [vmem:[%s291 + $0xa0] sm:$0xff]
      %v313 = vld [vmem:[%s291 + $0xa8] sm:$0xff]
      %v314 = vld [vmem:[%s291 + $0xb0] sm:$0xff]
      %v315 = vld [vmem:[%s291 + $0xb8] sm:$0xff]
      %v316 = vld [vmem:[%s291 + $0xc0] sm:$0xff]
      %v317 = vld [vmem:[%s291 + $0xc8] sm:$0xff]
      %v318 = vld [vmem:[%s291 + $0xd0] sm:$0xff]
      %v319 = vld [vmem:[%s291 + $0xd8] sm:$0xff]
      %v320 = vld [vmem:[%s291 + $0xe0] sm:$0xff]
      %v321 = vld [vmem:[%s291 + $0xe8] sm:$0xff]
      %v322 = vld [vmem:[%s291 + $0xf0] sm:$0xff]
      %v323 = vld [vmem:[%s291 + $0xf8] sm:$0xff]
      %v324 = vld [vmem:[%s291 + $0x100] sm:$0xff]
      %v325 = vld [vmem:[%s291 + $0x108] sm:$0xff]
      %v326 = vld [vmem:[%s291 + $0x110] sm:$0xff]
      %v327 = vld [vmem:[%s291 + $0x118] sm:$0xff]
      %v328 = vld [vmem:[%s291 + $0x120] sm:$0xff]
      %v329 = vld [vmem:[%s291 + $0x128] sm:$0xff]
      %v330 = vld [vmem:[%s291 + $0x130] sm:$0xff]
      %v331 = vld [vmem:[%s291 + $0x138] sm:$0xff]
      %v332 = vld [vmem:[%s291 + $0x140] sm:$0xff]
      %v333 = vld [vmem:[%s291 + $0x148] sm:$0xff]
      %v334 = vld [vmem:[%s291 + $0x150] sm:$0xff]
      %v335 = vld [vmem:[%s291 + $0x158] sm:$0xff]
      %v336 = vld [vmem:[%s291 + $0x160] sm:$0xff]
      %v337 = vld [vmem:[%s291 + $0x168] sm:$0xff]
      %v338 = vld [vmem:[%s291 + $0x170] sm:$0xff]
      %v339 = vld [vmem:[%s291 + $0x178] sm:$0xff]
      %v340 = vld [vmem:[%s291 + $0x180] sm:$0xff]
      %v341 = vld [vmem:[%s291 + $0x188] sm:$0xff]
      %v342 = vld [vmem:[%s291 + $0x190] sm:$0xff]
      %v343 = vld [vmem:[%s291 + $0x198] sm:$0xff]
      %v344 = vld [vmem:[%s291 + $0x1a0] sm:$0xff]
      %v345 = vld [vmem:[%s291 + $0x1a8] sm:$0xff]
      %v346 = vld [vmem:[%s291 + $0x1b0] sm:$0xff]
      %v347 = vld [vmem:[%s291 + $0x1b8] sm:$0xff]
      %v348 = vld [vmem:[%s291 + $0x1c0] sm:$0xff]
      %v349 = vld [vmem:[%s291 + $0x1c8] sm:$0xff]
      %v350 = vld [vmem:[%s291 + $0x1d0] sm:$0xff]
      %v351 = vld [vmem:[%s291 + $0x1d8] sm:$0xff]
      %v352 = vld [vmem:[%s291 + $0x1e0] sm:$0xff]
      %v353 = vld [vmem:[%s291 + $0x1e8] sm:$0xff]
      %v354 = vld [vmem:[%s291 + $0x1f0] sm:$0xff]
      %v355 = vld [vmem:[%s291 + $0x1f8] sm:$0xff]
      %v362 = vunpack.c.l.b16 %v219
      %v363 = vunpack.c.h.b16 %v219
      %v364 = vunpack.c.l.b16 %v220
      %v365 = vunpack.c.h.b16 %v220
      %v366 = vunpack.c.l.b16 %v221
      %v367 = vunpack.c.h.b16 %v221
      %v368 = vunpack.c.l.b16 %v222
      %v369 = vunpack.c.h.b16 %v222
      %v370 = vunpack.c.l.b16 %v289
      %v371 = vunpack.c.h.b16 %v289
      %v372 = vunpack.c.l.b16 %v290
      %v373 = vunpack.c.h.b16 %v290
      %v374 = vpack.c.b16 %v366, %v362
      %v375 = vpack.c.b16 %v367, %v363
      %v376 = vpack.c.b16 %v368, %v364
      %v377 = vpack.c.b16 %v369, %v365
      %v378 = vpack.c.b16 %v370, %v370
      %v379 = vpack.c.b16 %v371, %v371
      %v380 = vpack.c.b16 %v372, %v372
      %v381 = vpack.c.b16 %v373, %v373
      %vm382 = vsmask.f32 7424
      %v384 = vshrl.u32 %v374, 16
      %v386 = vshll.u32 %v374, 16
      %v388 = vrot.slane %v386, 1
      %v389 = vor.u32 %v384, %v388
      %v391 = vshll.u32 %v378, 16
      %v393 = vrot.slane %v391, 1
      %v394 = vsel %vm382, %v389, %v393
      %v396 = vshrl.u32 %v375, 16
      %v398 = vshll.u32 %v375, 16
      %v400 = vrot.slane %v398, 1
      %v401 = vor.u32 %v396, %v400
      %v403 = vshll.u32 %v379, 16
      %v405 = vrot.slane %v403, 1
      %v406 = vsel %vm382, %v401, %v405
      %v408 = vshrl.u32 %v376, 16
      %v410 = vshll.u32 %v376, 16
      %v412 = vrot.slane %v410, 1
      %v413 = vor.u32 %v408, %v412
      %v415 = vshll.u32 %v380, 16
      %v417 = vrot.slane %v415, 1
      %v418 = vsel %vm382, %v413, %v417
      %v420 = vshrl.u32 %v377, 16
      %v422 = vshll.u32 %v377, 16
      %v424 = vrot.slane %v422, 1
      %v425 = vor.u32 %v420, %v424
      %v427 = vshll.u32 %v381, 16
      %v429 = vrot.slane %v427, 1
      %v430 = vsel %vm382, %v425, %v429
      %v431 = vshrl.u32 %v378, 16
      %v433 = vor.u32 %v431, %v393
      %v434 = vshrl.u32 %v379, 16
      %v436 = vor.u32 %v434, %v405
      %v437 = vshrl.u32 %v380, 16
      %v439 = vor.u32 %v437, %v417
      %v440 = vshrl.u32 %v381, 16
      %v442 = vor.u32 %v440, %v429
      %v515 = vunpack.c.l.b16 %v292
      %v516 = vunpack.c.h.b16 %v292
      %v517 = vunpack.c.l.b16 %v293
      %v518 = vunpack.c.h.b16 %v293
      %v519 = vunpack.c.l.b16 %v294
      %v520 = vunpack.c.h.b16 %v294
      %v521 = vunpack.c.l.b16 %v295
      %v522 = vunpack.c.h.b16 %v295
      %v523 = vunpack.c.l.b16 %v296
      %v524 = vunpack.c.h.b16 %v296
      %v525 = vunpack.c.l.b16 %v297
      %v526 = vunpack.c.h.b16 %v297
      %v527 = vunpack.c.l.b16 %v298
      %v528 = vunpack.c.h.b16 %v298
      %v529 = vunpack.c.l.b16 %v299
      %v530 = vunpack.c.h.b16 %v299
      %v531 = vunpack.c.l.b16 %v300
      %v532 = vunpack.c.h.b16 %v300
      %v533 = vunpack.c.l.b16 %v301
      %v534 = vunpack.c.h.b16 %v301
      %v535 = vunpack.c.l.b16 %v302
      %v536 = vunpack.c.h.b16 %v302
      %v537 = vunpack.c.l.b16 %v303
      %v538 = vunpack.c.h.b16 %v303
      %v539 = vunpack.c.l.b16 %v304
      %v540 = vunpack.c.h.b16 %v304
      %v541 = vunpack.c.l.b16 %v305
      %v542 = vunpack.c.h.b16 %v305
      %v543 = vunpack.c.l.b16 %v306
      %v544 = vunpack.c.h.b16 %v306
      %v545 = vunpack.c.l.b16 %v307
      %v546 = vunpack.c.h.b16 %v307
      %v547 = vunpack.c.l.b16 %v308
      %v548 = vunpack.c.h.b16 %v308
      %v549 = vunpack.c.l.b16 %v309
      %v550 = vunpack.c.h.b16 %v309
      %v551 = vunpack.c.l.b16 %v310
      %v552 = vunpack.c.h.b16 %v310
      %v553 = vunpack.c.l.b16 %v311
      %v554 = vunpack.c.h.b16 %v311
      %v555 = vunpack.c.l.b16 %v312
      %v556 = vunpack.c.h.b16 %v312
      %v557 = vunpack.c.l.b16 %v313
      %v558 = vunpack.c.h.b16 %v313
      %v559 = vunpack.c.l.b16 %v314
      %v560 = vunpack.c.h.b16 %v314
      %v561 = vunpack.c.l.b16 %v315
      %v562 = vunpack.c.h.b16 %v315
      %v563 = vunpack.c.l.b16 %v316
      %v564 = vunpack.c.h.b16 %v316
      %v565 = vunpack.c.l.b16 %v317
      %v566 = vunpack.c.h.b16 %v317
      %v567 = vunpack.c.l.b16 %v318
      %v568 = vunpack.c.h.b16 %v318
      %v569 = vunpack.c.l.b16 %v319
      %v570 = vunpack.c.h.b16 %v319
      %v571 = vunpack.c.l.b16 %v320
      %v572 = vunpack.c.h.b16 %v320
      %v573 = vunpack.c.l.b16 %v321
      %v574 = vunpack.c.h.b16 %v321
      %v575 = vunpack.c.l.b16 %v322
      %v576 = vunpack.c.h.b16 %v322
      %v577 = vunpack.c.l.b16 %v323
      %v578 = vunpack.c.h.b16 %v323
      %v579 = vunpack.c.l.b16 %v324
      %v580 = vunpack.c.h.b16 %v324
      %v581 = vunpack.c.l.b16 %v325
      %v582 = vunpack.c.h.b16 %v325
      %v583 = vunpack.c.l.b16 %v326
      %v584 = vunpack.c.h.b16 %v326
      %v585 = vunpack.c.l.b16 %v327
      %v586 = vunpack.c.h.b16 %v327
      %v587 = vunpack.c.l.b16 %v328
      %v588 = vunpack.c.h.b16 %v328
      %v589 = vunpack.c.l.b16 %v329
      %v590 = vunpack.c.h.b16 %v329
      %v591 = vunpack.c.l.b16 %v330
      %v592 = vunpack.c.h.b16 %v330
      %v593 = vunpack.c.l.b16 %v331
      %v594 = vunpack.c.h.b16 %v331
      %v595 = vunpack.c.l.b16 %v332
      %v596 = vunpack.c.h.b16 %v332
      %v597 = vunpack.c.l.b16 %v333
      %v598 = vunpack.c.h.b16 %v333
      %v599 = vunpack.c.l.b16 %v334
      %v600 = vunpack.c.h.b16 %v334
      %v601 = vunpack.c.l.b16 %v335
      %v602 = vunpack.c.h.b16 %v335
      %v603 = vunpack.c.l.b16 %v336
      %v604 = vunpack.c.h.b16 %v336
      %v605 = vunpack.c.l.b16 %v337
      %v606 = vunpack.c.h.b16 %v337
      %v607 = vunpack.c.l.b16 %v338
      %v608 = vunpack.c.h.b16 %v338
      %v609 = vunpack.c.l.b16 %v339
      %v610 = vunpack.c.h.b16 %v339
      %v611 = vunpack.c.l.b16 %v340
      %v612 = vunpack.c.h.b16 %v340
      %v613 = vunpack.c.l.b16 %v341
      %v614 = vunpack.c.h.b16 %v341
      %v615 = vunpack.c.l.b16 %v342
      %v616 = vunpack.c.h.b16 %v342
      %v617 = vunpack.c.l.b16 %v343
      %v618 = vunpack.c.h.b16 %v343
      %v619 = vunpack.c.l.b16 %v344
      %v620 = vunpack.c.h.b16 %v344
      %v621 = vunpack.c.l.b16 %v345
      %v622 = vunpack.c.h.b16 %v345
      %v623 = vunpack.c.l.b16 %v346
      %v624 = vunpack.c.h.b16 %v346
      %v625 = vunpack.c.l.b16 %v347
      %v626 = vunpack.c.h.b16 %v347
      %v627 = vunpack.c.l.b16 %v348
      %v628 = vunpack.c.h.b16 %v348
      %v629 = vunpack.c.l.b16 %v349
      %v630 = vunpack.c.h.b16 %v349
      %v631 = vunpack.c.l.b16 %v350
      %v632 = vunpack.c.h.b16 %v350
      %v633 = vunpack.c.l.b16 %v351
      %v634 = vunpack.c.h.b16 %v351
      %v635 = vunpack.c.l.b16 %v352
      %v636 = vunpack.c.h.b16 %v352
      %v637 = vunpack.c.l.b16 %v353
      %v638 = vunpack.c.h.b16 %v353
      %v639 = vunpack.c.l.b16 %v354
      %v640 = vunpack.c.h.b16 %v354
      %v641 = vunpack.c.l.b16 %v355
      %v642 = vunpack.c.h.b16 %v355
      %v643 = vpack.c.b16 %v517, %v515
      %v644 = vpack.c.b16 %v518, %v516
      %v645 = vpack.c.b16 %v521, %v519
      %v646 = vpack.c.b16 %v522, %v520
      %v647 = vpack.c.b16 %v525, %v523
      %v648 = vpack.c.b16 %v526, %v524
      %v649 = vpack.c.b16 %v529, %v527
      %v650 = vpack.c.b16 %v530, %v528
      %v651 = vpack.c.b16 %v533, %v531
      %v652 = vpack.c.b16 %v534, %v532
      %v653 = vpack.c.b16 %v537, %v535
      %v654 = vpack.c.b16 %v538, %v536
      %v655 = vpack.c.b16 %v541, %v539
      %v656 = vpack.c.b16 %v542, %v540
      %v657 = vpack.c.b16 %v545, %v543
      %v658 = vpack.c.b16 %v546, %v544
      %v659 = vpack.c.b16 %v549, %v547
      %v660 = vpack.c.b16 %v550, %v548
      %v661 = vpack.c.b16 %v553, %v551
      %v662 = vpack.c.b16 %v554, %v552
      %v663 = vpack.c.b16 %v557, %v555
      %v664 = vpack.c.b16 %v558, %v556
      %v665 = vpack.c.b16 %v561, %v559
      %v666 = vpack.c.b16 %v562, %v560
      %v667 = vpack.c.b16 %v565, %v563
      %v668 = vpack.c.b16 %v566, %v564
      %v669 = vpack.c.b16 %v569, %v567
      %v670 = vpack.c.b16 %v570, %v568
      %v671 = vpack.c.b16 %v573, %v571
      %v672 = vpack.c.b16 %v574, %v572
      %v673 = vpack.c.b16 %v577, %v575
      %v674 = vpack.c.b16 %v578, %v576
      %v675 = vpack.c.b16 %v581, %v579
      %v676 = vpack.c.b16 %v582, %v580
      %v677 = vpack.c.b16 %v585, %v583
      %v678 = vpack.c.b16 %v586, %v584
      %v679 = vpack.c.b16 %v589, %v587
      %v680 = vpack.c.b16 %v590, %v588
      %v681 = vpack.c.b16 %v593, %v591
      %v682 = vpack.c.b16 %v594, %v592
      %v683 = vpack.c.b16 %v597, %v595
      %v684 = vpack.c.b16 %v598, %v596
      %v685 = vpack.c.b16 %v601, %v599
      %v686 = vpack.c.b16 %v602, %v600
      %v687 = vpack.c.b16 %v605, %v603
      %v688 = vpack.c.b16 %v606, %v604
      %v689 = vpack.c.b16 %v609, %v607
      %v690 = vpack.c.b16 %v610, %v608
      %v691 = vpack.c.b16 %v613, %v611
      %v692 = vpack.c.b16 %v614, %v612
      %v693 = vpack.c.b16 %v617, %v615
      %v694 = vpack.c.b16 %v618, %v616
      %v695 = vpack.c.b16 %v621, %v619
      %v696 = vpack.c.b16 %v622, %v620
      %v697 = vpack.c.b16 %v625, %v623
      %v698 = vpack.c.b16 %v626, %v624
      %v699 = vpack.c.b16 %v629, %v627
      %v700 = vpack.c.b16 %v630, %v628
      %v701 = vpack.c.b16 %v633, %v631
      %v702 = vpack.c.b16 %v634, %v632
      %v703 = vpack.c.b16 %v637, %v635
      %v704 = vpack.c.b16 %v638, %v636
      %v705 = vpack.c.b16 %v641, %v639
      %v706 = vpack.c.b16 %v642, %v640
      %771 = vmatprep.subr.bf16.mxu0 %v644
      %772 = vmatpush1.bf16.msra.mxu0 %v643
      %773 = vmatprep.subr.bf16.mxu0 %v646
      %774 = vmatpush1.bf16.msra.mxu0 %v645
      %775 = vmatprep.subr.bf16.mxu0 %v648
      %776 = vmatpush1.bf16.msra.mxu0 %v647
      %777 = vmatprep.subr.bf16.mxu0 %v650
      %778 = vmatpush1.bf16.msra.mxu0 %v649
      %779 = vmatprep.subr.bf16.mxu0 %v652
      %780 = vmatpush1.bf16.msra.mxu0 %v651
      %781 = vmatprep.subr.bf16.mxu0 %v654
      %782 = vmatpush1.bf16.msra.mxu0 %v653
      %783 = vmatprep.subr.bf16.mxu0 %v656
      %784 = vmatpush1.bf16.msra.mxu0 %v655
      %785 = vmatprep.subr.bf16.mxu0 %v658
      %786 = vmatpush1.bf16.msra.mxu0 %v657
      %787 = vmatprep.subr.bf16.mxu0 %v660
      %788 = vmatpush1.bf16.msra.mxu0 %v659
      %789 = vmatprep.subr.bf16.mxu0 %v662
      %790 = vmatpush1.bf16.msra.mxu0 %v661
      %791 = vmatprep.subr.bf16.mxu0 %v664
      %792 = vmatpush1.bf16.msra.mxu0 %v663
      %793 = vmatprep.subr.bf16.mxu0 %v666
      %794 = vmatpush1.bf16.msra.mxu0 %v665
      %795 = vmatprep.subr.bf16.mxu0 %v668
      %796 = vmatpush1.bf16.msra.mxu0 %v667
      %797 = vmatprep.subr.bf16.mxu0 %v670
      %798 = vmatpush1.bf16.msra.mxu0 %v669
      %799 = vmatprep.subr.bf16.mxu0 %v672
      %800 = vmatpush1.bf16.msra.mxu0 %v671
      %801 = vmatprep.subr.bf16.mxu0 %v674
      %802 = vmatpush1.bf16.msra.mxu0 %v673
      %803 = vmatprep.mubr.bf16.mxu0 %v406
      %804 = vmatmul.mubr.bf16.gmra.mrb[0].mxu0 %v394
      %v805 = vpop.f32.mrb[0].mxu0
      %v806 = vadd.f32 0.0, %v805
      %v807 = vpop.f32.mrb[0].mxu0
      %v808 = vadd.f32 0.0, %v807
      %v809 = vpop.f32.mrb[0].mxu0
      %v810 = vadd.f32 0.0, %v809
      %v811 = vpop.f32.mrb[0].mxu0
      %v812 = vadd.f32 0.0, %v811
      %813 = vmatprep.mubr.bf16.mxu0 %v436
      %814 = vmatmul.mubr.bf16.gmra.mrb[0].mxu0 %v433
      %v815 = vpop.f32.mrb[0].mxu0
      %v816 = vadd.f32 0.0, %v815
      %v817 = vpop.f32.mrb[0].mxu0
      %v818 = vadd.f32 0.0, %v817
      %v819 = vpop.f32.mrb[0].mxu0
      %v820 = vpop.f32.mrb[0].mxu0
      %821 = vdwg.mxu0
      %822 = vmatprep.subr.bf16.mxu0 %v676
      %823 = vmatpush1.bf16.msra.mxu0 %v675
      %824 = vmatprep.subr.bf16.mxu0 %v678
      %825 = vmatpush1.bf16.msra.mxu0 %v677
      %826 = vmatprep.subr.bf16.mxu0 %v680
      %827 = vmatpush1.bf16.msra.mxu0 %v679
      %828 = vmatprep.subr.bf16.mxu0 %v682
      %829 = vmatpush1.bf16.msra.mxu0 %v681
      %830 = vmatprep.subr.bf16.mxu0 %v684
      %831 = vmatpush1.bf16.msra.mxu0 %v683
      %832 = vmatprep.subr.bf16.mxu0 %v686
      %833 = vmatpush1.bf16.msra.mxu0 %v685
      %834 = vmatprep.subr.bf16.mxu0 %v688
      %835 = vmatpush1.bf16.msra.mxu0 %v687
      %836 = vmatprep.subr.bf16.mxu0 %v690
      %837 = vmatpush1.bf16.msra.mxu0 %v689
      %838 = vmatprep.subr.bf16.mxu0 %v692
      %839 = vmatpush1.bf16.msra.mxu0 %v691
      %840 = vmatprep.subr.bf16.mxu0 %v694
      %841 = vmatpush1.bf16.msra.mxu0 %v693
      %842 = vmatprep.subr.bf16.mxu0 %v696
      %843 = vmatpush1.bf16.msra.mxu0 %v695
      %844 = vmatprep.subr.bf16.mxu0 %v698
      %845 = vmatpush1.bf16.msra.mxu0 %v697
      %846 = vmatprep.subr.bf16.mxu0 %v700
      %847 = vmatpush1.bf16.msra.mxu0 %v699
      %848 = vmatprep.subr.bf16.mxu0 %v702
      %849 = vmatpush1.bf16.msra.mxu0 %v701
      %850 = vmatprep.subr.bf16.mxu0 %v704
      %851 = vmatpush1.bf16.msra.mxu0 %v703
      %852 = vmatprep.subr.bf16.mxu0 %v706
      %853 = vmatpush1.bf16.msra.mxu0 %v705
      %854 = vmatprep.mubr.bf16.mxu0 %v430
      %855 = vmatmul.mubr.bf16.gmra.mrb[0].mxu0 %v418
      %v856 = vpop.f32.mrb[0].mxu0
      %v857 = vadd.f32 %v806, %v856
      %v858 = vpop.f32.mrb[0].mxu0
      %v859 = vadd.f32 %v808, %v858
      %v860 = vpop.f32.mrb[0].mxu0
      %v861 = vadd.f32 %v810, %v860
      %v862 = vpop.f32.mrb[0].mxu0
      %v863 = vadd.f32 %v812, %v862
      %864 = vmatprep.mubr.bf16.mxu0 %v442
      %865 = vmatmul.mubr.bf16.gmra.mrb[0].mxu0 %v439
      %v866 = vpop.f32.mrb[0].mxu0
      %v867 = vadd.f32 %v816, %v866
      %v868 = vpop.f32.mrb[0].mxu0
      %v869 = vadd.f32 %v818, %v868
      %v870 = vpop.f32.mrb[0].mxu0
      %v871 = vpop.f32.mrb[0].mxu0
      %872 = vdwg.mxu0
      %v875 = vunpack.c.l.b16 %v223
      %v876 = vunpack.c.h.b16 %v223
      %v877 = vunpack.c.l.b16 %v224
      %v878 = vunpack.c.h.b16 %v224
      %v879 = vpack.c.b16 %v875, %v875
      %v880 = vpack.c.b16 %v876, %v876
      %v881 = vpack.c.b16 %v877, %v877
      %v882 = vpack.c.b16 %v878, %v878
      %v955 = vunpack.c.l.b16 %v225
      %v956 = vunpack.c.h.b16 %v225
      %v957 = vunpack.c.l.b16 %v226
      %v958 = vunpack.c.h.b16 %v226
      %v959 = vunpack.c.l.b16 %v227
      %v960 = vunpack.c.h.b16 %v227
      %v961 = vunpack.c.l.b16 %v228
      %v962 = vunpack.c.h.b16 %v228
      %v963 = vunpack.c.l.b16 %v229
      %v964 = vunpack.c.h.b16 %v229
      %v965 = vunpack.c.l.b16 %v230
      %v966 = vunpack.c.h.b16 %v230
      %v967 = vunpack.c.l.b16 %v231
      %v968 = vunpack.c.h.b16 %v231
      %v969 = vunpack.c.l.b16 %v232
      %v970 = vunpack.c.h.b16 %v232
      %v971 = vunpack.c.l.b16 %v233
      %v972 = vunpack.c.h.b16 %v233
      %v973 = vunpack.c.l.b16 %v234
      %v974 = vunpack.c.h.b16 %v234
      %v975 = vunpack.c.l.b16 %v235
      %v976 = vunpack.c.h.b16 %v235
      %v977 = vunpack.c.l.b16 %v236
      %v978 = vunpack.c.h.b16 %v236
      %v979 = vunpack.c.l.b16 %v237
      %v980 = vunpack.c.h.b16 %v237
      %v981 = vunpack.c.l.b16 %v238
      %v982 = vunpack.c.h.b16 %v238
      %v983 = vunpack.c.l.b16 %v239
      %v984 = vunpack.c.h.b16 %v239
      %v985 = vunpack.c.l.b16 %v240
      %v986 = vunpack.c.h.b16 %v240
      %v987 = vunpack.c.l.b16 %v241
      %v988 = vunpack.c.h.b16 %v241
      %v989 = vunpack.c.l.b16 %v242
      %v990 = vunpack.c.h.b16 %v242
      %v991 = vunpack.c.l.b16 %v243
      %v992 = vunpack.c.h.b16 %v243
      %v993 = vunpack.c.l.b16 %v244
      %v994 = vunpack.c.h.b16 %v244
      %v995 = vunpack.c.l.b16 %v245
      %v996 = vunpack.c.h.b16 %v245
      %v997 = vunpack.c.l.b16 %v246
      %v998 = vunpack.c.h.b16 %v246
      %v999 = vunpack.c.l.b16 %v247
      %v1000 = vunpack.c.h.b16 %v247
      %v1001 = vunpack.c.l.b16 %v248
      %v1002 = vunpack.c.h.b16 %v248
      %v1003 = vunpack.c.l.b16 %v249
      %v1004 = vunpack.c.h.b16 %v249
      %v1005 = vunpack.c.l.b16 %v250
      %v1006 = vunpack.c.h.b16 %v250
      %v1007 = vunpack.c.l.b16 %v251
      %v1008 = vunpack.c.h.b16 %v251
      %v1009 = vunpack.c.l.b16 %v252
      %v1010 = vunpack.c.h.b16 %v252
      %v1011 = vunpack.c.l.b16 %v253
      %v1012 = vunpack.c.h.b16 %v253
      %v1013 = vunpack.c.l.b16 %v254
      %v1014 = vunpack.c.h.b16 %v254
      %v1015 = vunpack.c.l.b16 %v255
      %v1016 = vunpack.c.h.b16 %v255
      %v1017 = vunpack.c.l.b16 %v256
      %v1018 = vunpack.c.h.b16 %v256
      %v1019 = vunpack.c.l.b16 %v257
      %v1020 = vunpack.c.h.b16 %v257
      %v1021 = vunpack.c.l.b16 %v258
      %v1022 = vunpack.c.h.b16 %v258
      %v1023 = vunpack.c.l.b16 %v259
      %v1024 = vunpack.c.h.b16 %v259
      %v1025 = vunpack.c.l.b16 %v260
      %v1026 = vunpack.c.h.b16 %v260
      %v1027 = vunpack.c.l.b16 %v261
      %v1028 = vunpack.c.h.b16 %v261
      %v1029 = vunpack.c.l.b16 %v262
      %v1030 = vunpack.c.h.b16 %v262
      %v1031 = vunpack.c.l.b16 %v263
      %v1032 = vunpack.c.h.b16 %v263
      %v1033 = vunpack.c.l.b16 %v264
      %v1034 = vunpack.c.h.b16 %v264
      %v1035 = vunpack.c.l.b16 %v265
      %v1036 = vunpack.c.h.b16 %v265
      %v1037 = vunpack.c.l.b16 %v266
      %v1038 = vunpack.c.h.b16 %v266
      %v1039 = vunpack.c.l.b16 %v267
      %v1040 = vunpack.c.h.b16 %v267
      %v1041 = vunpack.c.l.b16 %v268
      %v1042 = vunpack.c.h.b16 %v268
      %v1043 = vunpack.c.l.b16 %v269
      %v1044 = vunpack.c.h.b16 %v269
      %v1045 = vunpack.c.l.b16 %v270
      %v1046 = vunpack.c.h.b16 %v270
      %v1047 = vunpack.c.l.b16 %v271
      %v1048 = vunpack.c.h.b16 %v271
      %v1049 = vunpack.c.l.b16 %v272
      %v1050 = vunpack.c.h.b16 %v272
      %v1051 = vunpack.c.l.b16 %v273
      %v1052 = vunpack.c.h.b16 %v273
      %v1053 = vunpack.c.l.b16 %v274
      %v1054 = vunpack.c.h.b16 %v274
      %v1055 = vunpack.c.l.b16 %v275
      %v1056 = vunpack.c.h.b16 %v275
      %v1057 = vunpack.c.l.b16 %v276
      %v1058 = vunpack.c.h.b16 %v276
      %v1059 = vunpack.c.l.b16 %v277
      %v1060 = vunpack.c.h.b16 %v277
      %v1061 = vunpack.c.l.b16 %v278
      %v1062 = vunpack.c.h.b16 %v278
      %v1063 = vunpack.c.l.b16 %v279
      %v1064 = vunpack.c.h.b16 %v279
      %v1065 = vunpack.c.l.b16 %v280
      %v1066 = vunpack.c.h.b16 %v280
      %v1067 = vunpack.c.l.b16 %v281
      %v1068 = vunpack.c.h.b16 %v281
      %v1069 = vunpack.c.l.b16 %v282
      %v1070 = vunpack.c.h.b16 %v282
      %v1071 = vunpack.c.l.b16 %v283
      %v1072 = vunpack.c.h.b16 %v283
      %v1073 = vunpack.c.l.b16 %v284
      %v1074 = vunpack.c.h.b16 %v284
      %v1075 = vunpack.c.l.b16 %v285
      %v1076 = vunpack.c.h.b16 %v285
      %v1077 = vunpack.c.l.b16 %v286
      %v1078 = vunpack.c.h.b16 %v286
      %v1079 = vunpack.c.l.b16 %v287
      %v1080 = vunpack.c.h.b16 %v287
      %v1081 = vunpack.c.l.b16 %v288
      %v1082 = vunpack.c.h.b16 %v288
      %v1083 = vpack.c.b16 %v957, %v955
      %v1084 = vpack.c.b16 %v958, %v956
      %v1085 = vpack.c.b16 %v961, %v959
      %v1086 = vpack.c.b16 %v962, %v960
      %v1087 = vpack.c.b16 %v965, %v963
      %v1088 = vpack.c.b16 %v966, %v964
      %v1089 = vpack.c.b16 %v969, %v967
      %v1090 = vpack.c.b16 %v970, %v968
      %v1091 = vpack.c.b16 %v973, %v971
      %v1092 = vpack.c.b16 %v974, %v972
      %v1093 = vpack.c.b16 %v977, %v975
      %v1094 = vpack.c.b16 %v978, %v976
      %v1095 = vpack.c.b16 %v981, %v979
      %v1096 = vpack.c.b16 %v982, %v980
      %v1097 = vpack.c.b16 %v985, %v983
      %v1098 = vpack.c.b16 %v986, %v984
      %v1099 = vpack.c.b16 %v989, %v987
      %v1100 = vpack.c.b16 %v990, %v988
      %v1101 = vpack.c.b16 %v993, %v991
      %v1102 = vpack.c.b16 %v994, %v992
      %v1103 = vpack.c.b16 %v997, %v995
      %v1104 = vpack.c.b16 %v998, %v996
      %v1105 = vpack.c.b16 %v1001, %v999
      %v1106 = vpack.c.b16 %v1002, %v1000
      %v1107 = vpack.c.b16 %v1005, %v1003
      %v1108 = vpack.c.b16 %v1006, %v1004
      %v1109 = vpack.c.b16 %v1009, %v1007
      %v1110 = vpack.c.b16 %v1010, %v1008
      %v1111 = vpack.c.b16 %v1013, %v1011
      %v1112 = vpack.c.b16 %v1014, %v1012
      %v1113 = vpack.c.b16 %v1017, %v1015
      %v1114 = vpack.c.b16 %v1018, %v1016
      %v1115 = vpack.c.b16 %v1021, %v1019
      %v1116 = vpack.c.b16 %v1022, %v1020
      %v1117 = vpack.c.b16 %v1025, %v1023
      %v1118 = vpack.c.b16 %v1026, %v1024
      %v1119 = vpack.c.b16 %v1029, %v1027
      %v1120 = vpack.c.b16 %v1030, %v1028
      %v1121 = vpack.c.b16 %v1033, %v1031
      %v1122 = vpack.c.b16 %v1034, %v1032
      %v1123 = vpack.c.b16 %v1037, %v1035
      %v1124 = vpack.c.b16 %v1038, %v1036
      %v1125 = vpack.c.b16 %v1041, %v1039
      %v1126 = vpack.c.b16 %v1042, %v1040
      %v1127 = vpack.c.b16 %v1045, %v1043
      %v1128 = vpack.c.b16 %v1046, %v1044
      %v1129 = vpack.c.b16 %v1049, %v1047
      %v1130 = vpack.c.b16 %v1050, %v1048
      %v1131 = vpack.c.b16 %v1053, %v1051
      %v1132 = vpack.c.b16 %v1054, %v1052
      %v1133 = vpack.c.b16 %v1057, %v1055
      %v1134 = vpack.c.b16 %v1058, %v1056
      %v1135 = vpack.c.b16 %v1061, %v1059
      %v1136 = vpack.c.b16 %v1062, %v1060
      %v1137 = vpack.c.b16 %v1065, %v1063
      %v1138 = vpack.c.b16 %v1066, %v1064
      %v1139 = vpack.c.b16 %v1069, %v1067
      %v1140 = vpack.c.b16 %v1070, %v1068
      %v1141 = vpack.c.b16 %v1073, %v1071
      %v1142 = vpack.c.b16 %v1074, %v1072
      %v1143 = vpack.c.b16 %v1077, %v1075
      %v1144 = vpack.c.b16 %v1078, %v1076
      %v1145 = vpack.c.b16 %v1081, %v1079
      %v1146 = vpack.c.b16 %v1082, %v1080
      %1211 = vmatprep.subr.bf16.mxu0 %v1084
      %1212 = vmatpush1.bf16.msra.mxu0 %v1083
      %1213 = vmatprep.subr.bf16.mxu0 %v1086
      %1214 = vmatpush1.bf16.msra.mxu0 %v1085
      %1215 = vmatprep.subr.bf16.mxu0 %v1088
      %1216 = vmatpush1.bf16.msra.mxu0 %v1087
      %1217 = vmatprep.subr.bf16.mxu0 %v1090
      %1218 = vmatpush1.bf16.msra.mxu0 %v1089
      %1219 = vmatprep.subr.bf16.mxu0 %v1092
      %1220 = vmatpush1.bf16.msra.mxu0 %v1091
      %1221 = vmatprep.subr.bf16.mxu0 %v1094
      %1222 = vmatpush1.bf16.msra.mxu0 %v1093
      %1223 = vmatprep.subr.bf16.mxu0 %v1096
      %1224 = vmatpush1.bf16.msra.mxu0 %v1095
      %1225 = vmatprep.subr.bf16.mxu0 %v1098
      %1226 = vmatpush1.bf16.msra.mxu0 %v1097
      %1227 = vmatprep.subr.bf16.mxu0 %v1100
      %1228 = vmatpush1.bf16.msra.mxu0 %v1099
      %1229 = vmatprep.subr.bf16.mxu0 %v1102
      %1230 = vmatpush1.bf16.msra.mxu0 %v1101
      %1231 = vmatprep.subr.bf16.mxu0 %v1104
      %1232 = vmatpush1.bf16.msra.mxu0 %v1103
      %1233 = vmatprep.subr.bf16.mxu0 %v1106
      %1234 = vmatpush1.bf16.msra.mxu0 %v1105
      %1235 = vmatprep.subr.bf16.mxu0 %v1108
      %1236 = vmatpush1.bf16.msra.mxu0 %v1107
      %1237 = vmatprep.subr.bf16.mxu0 %v1110
      %1238 = vmatpush1.bf16.msra.mxu0 %v1109
      %1239 = vmatprep.subr.bf16.mxu0 %v1112
      %1240 = vmatpush1.bf16.msra.mxu0 %v1111
      %1241 = vmatprep.subr.bf16.mxu0 %v1114
      %1242 = vmatpush1.bf16.msra.mxu0 %v1113
      %1243 = vmatprep.mubr.bf16.mxu0 %v375
      %1244 = vmatmul.mubr.bf16.gmra.mrb[0].mxu0 %v374
      %v1245 = vpop.f32.mrb[0].mxu0
      %v1246 = vadd.f32 %v857, %v1245
      %v1247 = vpop.f32.mrb[0].mxu0
      %v1248 = vadd.f32 %v859, %v1247
      %v1249 = vpop.f32.mrb[0].mxu0
      %v1250 = vadd.f32 %v861, %v1249
      %v1251 = vpop.f32.mrb[0].mxu0
      %v1252 = vadd.f32 %v863, %v1251
      %1253 = vmatprep.mubr.bf16.mxu0 %v880
      %1254 = vmatmul.mubr.bf16.gmra.mrb[0].mxu0 %v879
      %v1255 = vpop.f32.mrb[0].mxu0
      %v1256 = vadd.f32 %v867, %v1255
      %v1257 = vpop.f32.mrb[0].mxu0
      %v1258 = vadd.f32 %v869, %v1257
      %v1259 = vpop.f32.mrb[0].mxu0
      %v1260 = vpop.f32.mrb[0].mxu0
      %1261 = vdwg.mxu0
      %1262 = vmatprep.subr.bf16.mxu0 %v1116
      %1263 = vmatpush1.bf16.msra.mxu0 %v1115
      %1264 = vmatprep.subr.bf16.mxu0 %v1118
      %1265 = vmatpush1.bf16.msra.mxu0 %v1117
      %1266 = vmatprep.subr.bf16.mxu0 %v1120
      %1267 = vmatpush1.bf16.msra.mxu0 %v1119
      %1268 = vmatprep.subr.bf16.mxu0 %v1122
      %1269 = vmatpush1.bf16.msra.mxu0 %v1121
      %1270 = vmatprep.subr.bf16.mxu0 %v1124
      %1271 = vmatpush1.bf16.msra.mxu0 %v1123
      %1272 = vmatprep.subr.bf16.mxu0 %v1126
      %1273 = vmatpush1.bf16.msra.mxu0 %v1125
      %1274 = vmatprep.subr.bf16.mxu0 %v1128
      %1275 = vmatpush1.bf16.msra.mxu0 %v1127
      %1276 = vmatprep.subr.bf16.mxu0 %v1130
      %1277 = vmatpush1.bf16.msra.mxu0 %v1129
      %1278 = vmatprep.subr.bf16.mxu0 %v1132
      %1279 = vmatpush1.bf16.msra.mxu0 %v1131
      %1280 = vmatprep.subr.bf16.mxu0 %v1134
      %1281 = vmatpush1.bf16.msra.mxu0 %v1133
      %1282 = vmatprep.subr.bf16.mxu0 %v1136
      %1283 = vmatpush1.bf16.msra.mxu0 %v1135
      %1284 = vmatprep.subr.bf16.mxu0 %v1138
      %1285 = vmatpush1.bf16.msra.mxu0 %v1137
      %1286 = vmatprep.subr.bf16.mxu0 %v1140
      %1287 = vmatpush1.bf16.msra.mxu0 %v1139
      %1288 = vmatprep.subr.bf16.mxu0 %v1142
      %1289 = vmatpush1.bf16.msra.mxu0 %v1141
      %1290 = vmatprep.subr.bf16.mxu0 %v1144
      %1291 = vmatpush1.bf16.msra.mxu0 %v1143
      %1292 = vmatprep.subr.bf16.mxu0 %v1146
      %1293 = vmatpush1.bf16.msra.mxu0 %v1145
      %1294 = vmatprep.mubr.bf16.mxu0 %v377
      %1295 = vmatmul.mubr.bf16.gmra.mrb[0].mxu0 %v376
      %v1296 = vpop.f32.mrb[0].mxu0
      %v1297 = vadd.f32 %v1246, %v1296
      %v1298 = vpop.f32.mrb[0].mxu0
      %v1299 = vadd.f32 %v1248, %v1298
      %v1300 = vpop.f32.mrb[0].mxu0
      %v1301 = vadd.f32 %v1250, %v1300
      %v1302 = vpop.f32.mrb[0].mxu0
      %v1303 = vadd.f32 %v1252, %v1302
      %1304 = vmatprep.mubr.bf16.mxu0 %v882
      %1305 = vmatmul.mubr.bf16.gmra.mrb[0].mxu0 %v881
      %v1306 = vpop.f32.mrb[0].mxu0
      %v1307 = vadd.f32 %v1256, %v1306
      %v1308 = vpop.f32.mrb[0].mxu0
      %v1309 = vadd.f32 %v1258, %v1308
      %v1310 = vpop.f32.mrb[0].mxu0
      %v1311 = vpop.f32.mrb[0].mxu0
      %1312 = vdwg.mxu0
      %v1313 = vld [vmem:[%s205] sm:$0xcc]
      %v1314 = vld [vmem:[%s205 + $0x8] sm:$0xcc]
      %v1315 = vld [vmem:[%s205 + $0x10] sm:$0xff]
      %v1316 = vld [vmem:[%s205 + $0x18] sm:$0xff]
      %v1317 = vld [vmem:[%s205 + $0x20] sm:$0xff]
      %v1318 = vld [vmem:[%s205 + $0x28] sm:$0xff]
      %v1319 = vld [vmem:[%s205 + $0x30] sm:$0x11]
      %v1320 = vld [vmem:[%s205 + $0x38] sm:$0x11]
      %s1321 = scalar_lea.vmem %s1, 1024
      %v1322 = vld [vmem:[%s1321] sm:$0xff]
      %v1323 = vld [vmem:[%s1321 + $0x8] sm:$0xff]
      %v1324 = vld [vmem:[%s1321 + $0x10] sm:$0xff]
      %v1325 = vld [vmem:[%s1321 + $0x18] sm:$0xff]
      %v1326 = vld [vmem:[%s1321 + $0x20] sm:$0xff]
      %v1327 = vld [vmem:[%s1321 + $0x28] sm:$0xff]
      %v1328 = vld [vmem:[%s1321 + $0x30] sm:$0xff]
      %v1329 = vld [vmem:[%s1321 + $0x38] sm:$0xff]
      %v1330 = vld [vmem:[%s1321 + $0x40] sm:$0xff]
      %v1331 = vld [vmem:[%s1321 + $0x48] sm:$0xff]
      %v1332 = vld [vmem:[%s1321 + $0x50] sm:$0xff]
      %v1333 = vld [vmem:[%s1321 + $0x58] sm:$0xff]
      %v1334 = vld [vmem:[%s1321 + $0x60] sm:$0xff]
      %v1335 = vld [vmem:[%s1321 + $0x68] sm:$0xff]
      %v1336 = vld [vmem:[%s1321 + $0x70] sm:$0xff]
      %v1337 = vld [vmem:[%s1321 + $0x78] sm:$0xff]
      %v1338 = vld [vmem:[%s1321 + $0x80] sm:$0xff]
      %v1339 = vld [vmem:[%s1321 + $0x88] sm:$0xff]
      %v1340 = vld [vmem:[%s1321 + $0x90] sm:$0xff]
      %v1341 = vld [vmem:[%s1321 + $0x98] sm:$0xff]
      %v1342 = vld [vmem:[%s1321 + $0xa0] sm:$0xff]
      %v1343 = vld [vmem:[%s1321 + $0xa8] sm:$0xff]
      %v1344 = vld [vmem:[%s1321 + $0xb0] sm:$0xff]
      %v1345 = vld [vmem:[%s1321 + $0xb8] sm:$0xff]
      %v1346 = vld [vmem:[%s1321 + $0xc0] sm:$0xff]
      %v1347 = vld [vmem:[%s1321 + $0xc8] sm:$0xff]
      %v1348 = vld [vmem:[%s1321 + $0xd0] sm:$0xff]
      %v1349 = vld [vmem:[%s1321 + $0xd8] sm:$0xff]
      %v1350 = vld [vmem:[%s1321 + $0xe0] sm:$0xff]
      %v1351 = vld [vmem:[%s1321 + $0xe8] sm:$0xff]
      %v1352 = vld [vmem:[%s1321 + $0xf0] sm:$0xff]
      %v1353 = vld [vmem:[%s1321 + $0xf8] sm:$0xff]
      %v1354 = vld [vmem:[%s1321 + $0x100] sm:$0xff]
      %v1355 = vld [vmem:[%s1321 + $0x108] sm:$0xff]
      %v1356 = vld [vmem:[%s1321 + $0x110] sm:$0xff]
      %v1357 = vld [vmem:[%s1321 + $0x118] sm:$0xff]
      %v1358 = vld [vmem:[%s1321 + $0x120] sm:$0xff]
      %v1359 = vld [vmem:[%s1321 + $0x128] sm:$0xff]
      %v1360 = vld [vmem:[%s1321 + $0x130] sm:$0xff]
      %v1361 = vld [vmem:[%s1321 + $0x138] sm:$0xff]
      %v1362 = vld [vmem:[%s1321 + $0x140] sm:$0xff]
      %v1363 = vld [vmem:[%s1321 + $0x148] sm:$0xff]
      %v1364 = vld [vmem:[%s1321 + $0x150] sm:$0xff]
      %v1365 = vld [vmem:[%s1321 + $0x158] sm:$0xff]
      %v1366 = vld [vmem:[%s1321 + $0x160] sm:$0xff]
      %v1367 = vld [vmem:[%s1321 + $0x168] sm:$0xff]
      %v1368 = vld [vmem:[%s1321 + $0x170] sm:$0xff]
      %v1369 = vld [vmem:[%s1321 + $0x178] sm:$0xff]
      %v1370 = vld [vmem:[%s1321 + $0x180] sm:$0xff]
      %v1371 = vld [vmem:[%s1321 + $0x188] sm:$0xff]
      %v1372 = vld [vmem:[%s1321 + $0x190] sm:$0xff]
      %v1373 = vld [vmem:[%s1321 + $0x198] sm:$0xff]
      %v1374 = vld [vmem:[%s1321 + $0x1a0] sm:$0xff]
      %v1375 = vld [vmem:[%s1321 + $0x1a8] sm:$0xff]
      %v1376 = vld [vmem:[%s1321 + $0x1b0] sm:$0xff]
      %v1377 = vld [vmem:[%s1321 + $0x1b8] sm:$0xff]
      %v1378 = vld [vmem:[%s1321 + $0x1c0] sm:$0xff]
      %v1379 = vld [vmem:[%s1321 + $0x1c8] sm:$0xff]
      %v1380 = vld [vmem:[%s1321 + $0x1d0] sm:$0xff]
      %v1381 = vld [vmem:[%s1321 + $0x1d8] sm:$0xff]
      %v1382 = vld [vmem:[%s1321 + $0x1e0] sm:$0xff]
      %v1383 = vld [vmem:[%s1321 + $0x1e8] sm:$0xff]
      %v1384 = vld [vmem:[%s1321 + $0x1f0] sm:$0xff]
      %v1385 = vld [vmem:[%s1321 + $0x1f8] sm:$0xff]
      %v1394 = vunpack.c.l.b16 %v1313
      %v1395 = vunpack.c.h.b16 %v1313
      %v1396 = vunpack.c.l.b16 %v1314
      %v1397 = vunpack.c.h.b16 %v1314
      %v1398 = vunpack.c.l.b16 %v1315
      %v1399 = vunpack.c.h.b16 %v1315
      %v1400 = vunpack.c.l.b16 %v1316
      %v1401 = vunpack.c.h.b16 %v1316
      %v1402 = vunpack.c.l.b16 %v1317
      %v1403 = vunpack.c.h.b16 %v1317
      %v1404 = vunpack.c.l.b16 %v1318
      %v1405 = vunpack.c.h.b16 %v1318
      %v1406 = vunpack.c.l.b16 %v1319
      %v1407 = vunpack.c.h.b16 %v1319
      %v1408 = vunpack.c.l.b16 %v1320
      %v1409 = vunpack.c.h.b16 %v1320
      %v1410 = vpack.c.b16 %v1398, %v1394
      %v1411 = vpack.c.b16 %v1399, %v1395
      %v1412 = vpack.c.b16 %v1400, %v1396
      %v1413 = vpack.c.b16 %v1401, %v1397
      %v1414 = vpack.c.b16 %v1406, %v1402
      %v1415 = vpack.c.b16 %v1407, %v1403
      %v1416 = vpack.c.b16 %v1408, %v1404
      %v1417 = vpack.c.b16 %v1409, %v1405
      %vm1418 = vsmask.f32 5376
      %v1420 = vshrl.u32 %v1410, 16
      %v1422 = vrot.slane %v1420, 2
      %v1423 = vshll.u32 %v1410, 16
      %v1425 = vrot.slane %v1423, 3
      %v1426 = vor.u32 %v1422, %v1425
      %v1428 = vshrl.u32 %v1414, 16
      %v1430 = vrot.slane %v1428, 2
      %v1431 = vshll.u32 %v1414, 16
      %v1433 = vrot.slane %v1431, 3
      %v1434 = vor.u32 %v1430, %v1433
      %v1435 = vsel %vm1418, %v1426, %v1434
      %v1437 = vshrl.u32 %v1411, 16
      %v1439 = vrot.slane %v1437, 2
      %v1440 = vshll.u32 %v1411, 16
      %v1442 = vrot.slane %v1440, 3
      %v1443 = vor.u32 %v1439, %v1442
      %v1445 = vshrl.u32 %v1415, 16
      %v1447 = vrot.slane %v1445, 2
      %v1448 = vshll.u32 %v1415, 16
      %v1450 = vrot.slane %v1448, 3
      %v1451 = vor.u32 %v1447, %v1450
      %v1452 = vsel %vm1418, %v1443, %v1451
      %v1454 = vshrl.u32 %v1412, 16
      %v1456 = vrot.slane %v1454, 2
      %v1457 = vshll.u32 %v1412, 16
      %v1459 = vrot.slane %v1457, 3
      %v1460 = vor.u32 %v1456, %v1459
      %v1462 = vshrl.u32 %v1416, 16
      %v1464 = vrot.slane %v1462, 2
      %v1465 = vshll.u32 %v1416, 16
      %v1467 = vrot.slane %v1465, 3
      %v1468 = vor.u32 %v1464, %v1467
      %v1469 = vsel %vm1418, %v1460, %v1468
      %v1471 = vshrl.u32 %v1413, 16
      %v1473 = vrot.slane %v1471, 2
      %v1474 = vshll.u32 %v1413, 16
      %v1476 = vrot.slane %v1474, 3
      %v1477 = vor.u32 %v1473, %v1476
      %v1479 = vshrl.u32 %v1417, 16
      %v1481 = vrot.slane %v1479, 2
      %v1482 = vshll.u32 %v1417, 16
      %v1484 = vrot.slane %v1482, 3
      %v1485 = vor.u32 %v1481, %v1484
      %v1486 = vsel %vm1418, %v1477, %v1485
      %v1559 = vunpack.c.l.b16 %v1322
      %v1560 = vunpack.c.h.b16 %v1322
      %v1561 = vunpack.c.l.b16 %v1323
      %v1562 = vunpack.c.h.b16 %v1323
      %v1563 = vunpack.c.l.b16 %v1324
      %v1564 = vunpack.c.h.b16 %v1324
      %v1565 = vunpack.c.l.b16 %v1325
      %v1566 = vunpack.c.h.b16 %v1325
      %v1567 = vunpack.c.l.b16 %v1326
      %v1568 = vunpack.c.h.b16 %v1326
      %v1569 = vunpack.c.l.b16 %v1327
      %v1570 = vunpack.c.h.b16 %v1327
      %v1571 = vunpack.c.l.b16 %v1328
      %v1572 = vunpack.c.h.b16 %v1328
      %v1573 = vunpack.c.l.b16 %v1329
      %v1574 = vunpack.c.h.b16 %v1329
      %v1575 = vunpack.c.l.b16 %v1330
      %v1576 = vunpack.c.h.b16 %v1330
      %v1577 = vunpack.c.l.b16 %v1331
      %v1578 = vunpack.c.h.b16 %v1331
      %v1579 = vunpack.c.l.b16 %v1332
      %v1580 = vunpack.c.h.b16 %v1332
      %v1581 = vunpack.c.l.b16 %v1333
      %v1582 = vunpack.c.h.b16 %v1333
      %v1583 = vunpack.c.l.b16 %v1334
      %v1584 = vunpack.c.h.b16 %v1334
      %v1585 = vunpack.c.l.b16 %v1335
      %v1586 = vunpack.c.h.b16 %v1335
      %v1587 = vunpack.c.l.b16 %v1336
      %v1588 = vunpack.c.h.b16 %v1336
      %v1589 = vunpack.c.l.b16 %v1337
      %v1590 = vunpack.c.h.b16 %v1337
      %v1591 = vunpack.c.l.b16 %v1338
      %v1592 = vunpack.c.h.b16 %v1338
      %v1593 = vunpack.c.l.b16 %v1339
      %v1594 = vunpack.c.h.b16 %v1339
      %v1595 = vunpack.c.l.b16 %v1340
      %v1596 = vunpack.c.h.b16 %v1340
      %v1597 = vunpack.c.l.b16 %v1341
      %v1598 = vunpack.c.h.b16 %v1341
      %v1599 = vunpack.c.l.b16 %v1342
      %v1600 = vunpack.c.h.b16 %v1342
      %v1601 = vunpack.c.l.b16 %v1343
      %v1602 = vunpack.c.h.b16 %v1343
      %v1603 = vunpack.c.l.b16 %v1344
      %v1604 = vunpack.c.h.b16 %v1344
      %v1605 = vunpack.c.l.b16 %v1345
      %v1606 = vunpack.c.h.b16 %v1345
      %v1607 = vunpack.c.l.b16 %v1346
      %v1608 = vunpack.c.h.b16 %v1346
      %v1609 = vunpack.c.l.b16 %v1347
      %v1610 = vunpack.c.h.b16 %v1347
      %v1611 = vunpack.c.l.b16 %v1348
      %v1612 = vunpack.c.h.b16 %v1348
      %v1613 = vunpack.c.l.b16 %v1349
      %v1614 = vunpack.c.h.b16 %v1349
      %v1615 = vunpack.c.l.b16 %v1350
      %v1616 = vunpack.c.h.b16 %v1350
      %v1617 = vunpack.c.l.b16 %v1351
      %v1618 = vunpack.c.h.b16 %v1351
      %v1619 = vunpack.c.l.b16 %v1352
      %v1620 = vunpack.c.h.b16 %v1352
      %v1621 = vunpack.c.l.b16 %v1353
      %v1622 = vunpack.c.h.b16 %v1353
      %v1623 = vunpack.c.l.b16 %v1354
      %v1624 = vunpack.c.h.b16 %v1354
      %v1625 = vunpack.c.l.b16 %v1355
      %v1626 = vunpack.c.h.b16 %v1355
      %v1627 = vunpack.c.l.b16 %v1356
      %v1628 = vunpack.c.h.b16 %v1356
      %v1629 = vunpack.c.l.b16 %v1357
      %v1630 = vunpack.c.h.b16 %v1357
      %v1631 = vunpack.c.l.b16 %v1358
      %v1632 = vunpack.c.h.b16 %v1358
      %v1633 = vunpack.c.l.b16 %v1359
      %v1634 = vunpack.c.h.b16 %v1359
      %v1635 = vunpack.c.l.b16 %v1360
      %v1636 = vunpack.c.h.b16 %v1360
      %v1637 = vunpack.c.l.b16 %v1361
      %v1638 = vunpack.c.h.b16 %v1361
      %v1639 = vunpack.c.l.b16 %v1362
      %v1640 = vunpack.c.h.b16 %v1362
      %v1641 = vunpack.c.l.b16 %v1363
      %v1642 = vunpack.c.h.b16 %v1363
      %v1643 = vunpack.c.l.b16 %v1364
      %v1644 = vunpack.c.h.b16 %v1364
      %v1645 = vunpack.c.l.b16 %v1365
      %v1646 = vunpack.c.h.b16 %v1365
      %v1647 = vunpack.c.l.b16 %v1366
      %v1648 = vunpack.c.h.b16 %v1366
      %v1649 = vunpack.c.l.b16 %v1367
      %v1650 = vunpack.c.h.b16 %v1367
      %v1651 = vunpack.c.l.b16 %v1368
      %v1652 = vunpack.c.h.b16 %v1368
      %v1653 = vunpack.c.l.b16 %v1369
      %v1654 = vunpack.c.h.b16 %v1369
      %v1655 = vunpack.c.l.b16 %v1370
      %v1656 = vunpack.c.h.b16 %v1370
      %v1657 = vunpack.c.l.b16 %v1371
      %v1658 = vunpack.c.h.b16 %v1371
      %v1659 = vunpack.c.l.b16 %v1372
      %v1660 = vunpack.c.h.b16 %v1372
      %v1661 = vunpack.c.l.b16 %v1373
      %v1662 = vunpack.c.h.b16 %v1373
      %v1663 = vunpack.c.l.b16 %v1374
      %v1664 = vunpack.c.h.b16 %v1374
      %v1665 = vunpack.c.l.b16 %v1375
      %v1666 = vunpack.c.h.b16 %v1375
      %v1667 = vunpack.c.l.b16 %v1376
      %v1668 = vunpack.c.h.b16 %v1376
      %v1669 = vunpack.c.l.b16 %v1377
      %v1670 = vunpack.c.h.b16 %v1377
      %v1671 = vunpack.c.l.b16 %v1378
      %v1672 = vunpack.c.h.b16 %v1378
      %v1673 = vunpack.c.l.b16 %v1379
      %v1674 = vunpack.c.h.b16 %v1379
      %v1675 = vunpack.c.l.b16 %v1380
      %v1676 = vunpack.c.h.b16 %v1380
      %v1677 = vunpack.c.l.b16 %v1381
      %v1678 = vunpack.c.h.b16 %v1381
      %v1679 = vunpack.c.l.b16 %v1382
      %v1680 = vunpack.c.h.b16 %v1382
      %v1681 = vunpack.c.l.b16 %v1383
      %v1682 = vunpack.c.h.b16 %v1383
      %v1683 = vunpack.c.l.b16 %v1384
      %v1684 = vunpack.c.h.b16 %v1384
      %v1685 = vunpack.c.l.b16 %v1385
      %v1686 = vunpack.c.h.b16 %v1385
      %v1687 = vpack.c.b16 %v1561, %v1559
      %v1688 = vpack.c.b16 %v1562, %v1560
      %v1689 = vpack.c.b16 %v1565, %v1563
      %v1690 = vpack.c.b16 %v1566, %v1564
      %v1691 = vpack.c.b16 %v1569, %v1567
      %v1692 = vpack.c.b16 %v1570, %v1568
      %v1693 = vpack.c.b16 %v1573, %v1571
      %v1694 = vpack.c.b16 %v1574, %v1572
      %v1695 = vpack.c.b16 %v1577, %v1575
      %v1696 = vpack.c.b16 %v1578, %v1576
      %v1697 = vpack.c.b16 %v1581, %v1579
      %v1698 = vpack.c.b16 %v1582, %v1580
      %v1699 = vpack.c.b16 %v1585, %v1583
      %v1700 = vpack.c.b16 %v1586, %v1584
      %v1701 = vpack.c.b16 %v1589, %v1587
      %v1702 = vpack.c.b16 %v1590, %v1588
      %v1703 = vpack.c.b16 %v1593, %v1591
      %v1704 = vpack.c.b16 %v1594, %v1592
      %v1705 = vpack.c.b16 %v1597, %v1595
      %v1706 = vpack.c.b16 %v1598, %v1596
      %v1707 = vpack.c.b16 %v1601, %v1599
      %v1708 = vpack.c.b16 %v1602, %v1600
      %v1709 = vpack.c.b16 %v1605, %v1603
      %v1710 = vpack.c.b16 %v1606, %v1604
      %v1711 = vpack.c.b16 %v1609, %v1607
      %v1712 = vpack.c.b16 %v1610, %v1608
      %v1713 = vpack.c.b16 %v1613, %v1611
      %v1714 = vpack.c.b16 %v1614, %v1612
      %v1715 = vpack.c.b16 %v1617, %v1615
      %v1716 = vpack.c.b16 %v1618, %v1616
      %v1717 = vpack.c.b16 %v1621, %v1619
      %v1718 = vpack.c.b16 %v1622, %v1620
      %v1719 = vpack.c.b16 %v1625, %v1623
      %v1720 = vpack.c.b16 %v1626, %v1624
      %v1721 = vpack.c.b16 %v1629, %v1627
      %v1722 = vpack.c.b16 %v1630, %v1628
      %v1723 = vpack.c.b16 %v1633, %v1631
      %v1724 = vpack.c.b16 %v1634, %v1632
      %v1725 = vpack.c.b16 %v1637, %v1635
      %v1726 = vpack.c.b16 %v1638, %v1636
      %v1727 = vpack.c.b16 %v1641, %v1639
      %v1728 = vpack.c.b16 %v1642, %v1640
      %v1729 = vpack.c.b16 %v1645, %v1643
      %v1730 = vpack.c.b16 %v1646, %v1644
      %v1731 = vpack.c.b16 %v1649, %v1647
      %v1732 = vpack.c.b16 %v1650, %v1648
      %v1733 = vpack.c.b16 %v1653, %v1651
      %v1734 = vpack.c.b16 %v1654, %v1652
      %v1735 = vpack.c.b16 %v1657, %v1655
      %v1736 = vpack.c.b16 %v1658, %v1656
      %v1737 = vpack.c.b16 %v1661, %v1659
      %v1738 = vpack.c.b16 %v1662, %v1660
      %v1739 = vpack.c.b16 %v1665, %v1663
      %v1740 = vpack.c.b16 %v1666, %v1664
      %v1741 = vpack.c.b16 %v1669, %v1667
      %v1742 = vpack.c.b16 %v1670, %v1668
      %v1743 = vpack.c.b16 %v1673, %v1671
      %v1744 = vpack.c.b16 %v1674, %v1672
      %v1745 = vpack.c.b16 %v1677, %v1675
      %v1746 = vpack.c.b16 %v1678, %v1676
      %v1747 = vpack.c.b16 %v1681, %v1679
      %v1748 = vpack.c.b16 %v1682, %v1680
      %v1749 = vpack.c.b16 %v1685, %v1683
      %v1750 = vpack.c.b16 %v1686, %v1684
      %1815 = vmatprep.subr.bf16.mxu0 %v1688
      %1816 = vmatpush1.bf16.msra.mxu0 %v1687
      %1817 = vmatprep.subr.bf16.mxu0 %v1690
      %1818 = vmatpush1.bf16.msra.mxu0 %v1689
      %1819 = vmatprep.subr.bf16.mxu0 %v1692
      %1820 = vmatpush1.bf16.msra.mxu0 %v1691
      %1821 = vmatprep.subr.bf16.mxu0 %v1694
      %1822 = vmatpush1.bf16.msra.mxu0 %v1693
      %1823 = vmatprep.subr.bf16.mxu0 %v1696
      %1824 = vmatpush1.bf16.msra.mxu0 %v1695
      %1825 = vmatprep.subr.bf16.mxu0 %v1698
      %1826 = vmatpush1.bf16.msra.mxu0 %v1697
      %1827 = vmatprep.subr.bf16.mxu0 %v1700
      %1828 = vmatpush1.bf16.msra.mxu0 %v1699
      %1829 = vmatprep.subr.bf16.mxu0 %v1702
      %1830 = vmatpush1.bf16.msra.mxu0 %v1701
      %1831 = vmatprep.subr.bf16.mxu0 %v1704
      %1832 = vmatpush1.bf16.msra.mxu0 %v1703
      %1833 = vmatprep.subr.bf16.mxu0 %v1706
      %1834 = vmatpush1.bf16.msra.mxu0 %v1705
      %1835 = vmatprep.subr.bf16.mxu0 %v1708
      %1836 = vmatpush1.bf16.msra.mxu0 %v1707
      %1837 = vmatprep.subr.bf16.mxu0 %v1710
      %1838 = vmatpush1.bf16.msra.mxu0 %v1709
      %1839 = vmatprep.subr.bf16.mxu0 %v1712
      %1840 = vmatpush1.bf16.msra.mxu0 %v1711
      %1841 = vmatprep.subr.bf16.mxu0 %v1714
      %1842 = vmatpush1.bf16.msra.mxu0 %v1713
      %1843 = vmatprep.subr.bf16.mxu0 %v1716
      %1844 = vmatpush1.bf16.msra.mxu0 %v1715
      %1845 = vmatprep.subr.bf16.mxu0 %v1718
      %1846 = vmatpush1.bf16.msra.mxu0 %v1717
      %1847 = vmatprep.mubr.bf16.mxu0 %v1452
      %1848 = vmatmul.mubr.bf16.gmra.mrb[0].mxu0 %v1435
      %v1849 = vpop.f32.mrb[0].mxu0
      %v1850 = vadd.f32 0.0, %v1849
      %v1851 = vpop.f32.mrb[0].mxu0
      %v1852 = vadd.f32 0.0, %v1851
      %v1853 = vpop.f32.mrb[0].mxu0
      %v1854 = vadd.f32 0.0, %v1853
      %v1855 = vpop.f32.mrb[0].mxu0
      %v1856 = vadd.f32 0.0, %v1855
      %1857 = vmatprep.mubr.bf16.mxu0 %v1451
      %1858 = vmatmul.mubr.bf16.gmra.mrb[0].mxu0 %v1434
      %v1859 = vpop.f32.mrb[0].mxu0
      %v1860 = vadd.f32 0.0, %v1859
      %v1861 = vpop.f32.mrb[0].mxu0
      %v1862 = vadd.f32 0.0, %v1861
      %v1863 = vpop.f32.mrb[0].mxu0
      %v1864 = vpop.f32.mrb[0].mxu0
      %1865 = vdwg.mxu0
      %1866 = vmatprep.subr.bf16.mxu0 %v1720
      %1867 = vmatpush1.bf16.msra.mxu0 %v1719
      %1868 = vmatprep.subr.bf16.mxu0 %v1722
      %1869 = vmatpush1.bf16.msra.mxu0 %v1721
      %1870 = vmatprep.subr.bf16.mxu0 %v1724
      %1871 = vmatpush1.bf16.msra.mxu0 %v1723
      %1872 = vmatprep.subr.bf16.mxu0 %v1726
      %1873 = vmatpush1.bf16.msra.mxu0 %v1725
      %1874 = vmatprep.subr.bf16.mxu0 %v1728
      %1875 = vmatpush1.bf16.msra.mxu0 %v1727
      %1876 = vmatprep.subr.bf16.mxu0 %v1730
      %1877 = vmatpush1.bf16.msra.mxu0 %v1729
      %1878 = vmatprep.subr.bf16.mxu0 %v1732
      %1879 = vmatpush1.bf16.msra.mxu0 %v1731
      %1880 = vmatprep.subr.bf16.mxu0 %v1734
      %1881 = vmatpush1.bf16.msra.mxu0 %v1733
      %1882 = vmatprep.subr.bf16.mxu0 %v1736
      %1883 = vmatpush1.bf16.msra.mxu0 %v1735
      %1884 = vmatprep.subr.bf16.mxu0 %v1738
      %1885 = vmatpush1.bf16.msra.mxu0 %v1737
      %1886 = vmatprep.subr.bf16.mxu0 %v1740
      %1887 = vmatpush1.bf16.msra.mxu0 %v1739
      %1888 = vmatprep.subr.bf16.mxu0 %v1742
      %1889 = vmatpush1.bf16.msra.mxu0 %v1741
      %1890 = vmatprep.subr.bf16.mxu0 %v1744
      %1891 = vmatpush1.bf16.msra.mxu0 %v1743
      %1892 = vmatprep.subr.bf16.mxu0 %v1746
      %1893 = vmatpush1.bf16.msra.mxu0 %v1745
      %1894 = vmatprep.subr.bf16.mxu0 %v1748
      %1895 = vmatpush1.bf16.msra.mxu0 %v1747
      %1896 = vmatprep.subr.bf16.mxu0 %v1750
      %1897 = vmatpush1.bf16.msra.mxu0 %v1749
      %1898 = vmatprep.mubr.bf16.mxu0 %v1486
      %1899 = vmatmul.mubr.bf16.gmra.mrb[0].mxu0 %v1469
      %v1900 = vpop.f32.mrb[0].mxu0
      %v1901 = vadd.f32 %v1850, %v1900
      %v1902 = vpop.f32.mrb[0].mxu0
      %v1903 = vadd.f32 %v1852, %v1902
      %v1904 = vpop.f32.mrb[0].mxu0
      %v1905 = vadd.f32 %v1854, %v1904
      %v1906 = vpop.f32.mrb[0].mxu0
      %v1907 = vadd.f32 %v1856, %v1906
      %1908 = vmatprep.mubr.bf16.mxu0 %v1485
      %1909 = vmatmul.mubr.bf16.gmra.mrb[0].mxu0 %v1468
      %v1910 = vpop.f32.mrb[0].mxu0
      %v1911 = vadd.f32 %v1860, %v1910
      %v1912 = vpop.f32.mrb[0].mxu0
      %v1913 = vadd.f32 %v1862, %v1912
      %v1914 = vpop.f32.mrb[0].mxu0
      %v1915 = vpop.f32.mrb[0].mxu0
      %1916 = vdwg.mxu0
      %v1917 = vadd.f32 %v1297, %v1901
      %v1918 = vadd.f32 %v1299, %v1903
      %v1919 = vadd.f32 %v1301, %v1905
      %v1920 = vadd.f32 %v1303, %v1907
      %v1921 = vadd.f32 %v1307, %v1911
      %v1922 = vadd.f32 %v1309, %v1913
      %v1923 = vld [vmem:[%s205] sm:$0x88]
      %v1924 = vld [vmem:[%s205 + $0x8] sm:$0x88]
      %s1925 = scalar_lea.vmem %s1, 1536
      %v1926 = vld [vmem:[%s1925] sm:$0xff]
      %v1927 = vld [vmem:[%s1925 + $0x8] sm:$0xff]
      %v1928 = vld [vmem:[%s1925 + $0x10] sm:$0xff]
      %v1929 = vld [vmem:[%s1925 + $0x18] sm:$0xff]
      %v1930 = vld [vmem:[%s1925 + $0x20] sm:$0xff]
      %v1931 = vld [vmem:[%s1925 + $0x28] sm:$0xff]
      %v1932 = vld [vmem:[%s1925 + $0x30] sm:$0xff]
      %v1933 = vld [vmem:[%s1925 + $0x38] sm:$0xff]
      %v1934 = vld [vmem:[%s1925 + $0x40] sm:$0xff]
      %v1935 = vld [vmem:[%s1925 + $0x48] sm:$0xff]
      %v1936 = vld [vmem:[%s1925 + $0x50] sm:$0xff]
      %v1937 = vld [vmem:[%s1925 + $0x58] sm:$0xff]
      %v1938 = vld [vmem:[%s1925 + $0x60] sm:$0xff]
      %v1939 = vld [vmem:[%s1925 + $0x68] sm:$0xff]
      %v1940 = vld [vmem:[%s1925 + $0x70] sm:$0xff]
      %v1941 = vld [vmem:[%s1925 + $0x78] sm:$0xff]
      %v1942 = vld [vmem:[%s1925 + $0x80] sm:$0xff]
      %v1943 = vld [vmem:[%s1925 + $0x88] sm:$0xff]
      %v1944 = vld [vmem:[%s1925 + $0x90] sm:$0xff]
      %v1945 = vld [vmem:[%s1925 + $0x98] sm:$0xff]
      %v1946 = vld [vmem:[%s1925 + $0xa0] sm:$0xff]
      %v1947 = vld [vmem:[%s1925 + $0xa8] sm:$0xff]
      %v1948 = vld [vmem:[%s1925 + $0xb0] sm:$0xff]
      %v1949 = vld [vmem:[%s1925 + $0xb8] sm:$0xff]
      %v1950 = vld [vmem:[%s1925 + $0xc0] sm:$0xff]
      %v1951 = vld [vmem:[%s1925 + $0xc8] sm:$0xff]
      %v1952 = vld [vmem:[%s1925 + $0xd0] sm:$0xff]
      %v1953 = vld [vmem:[%s1925 + $0xd8] sm:$0xff]
      %v1954 = vld [vmem:[%s1925 + $0xe0] sm:$0xff]
      %v1955 = vld [vmem:[%s1925 + $0xe8] sm:$0xff]
      %v1956 = vld [vmem:[%s1925 + $0xf0] sm:$0xff]
      %v1957 = vld [vmem:[%s1925 + $0xf8] sm:$0xff]
      %v1958 = vld [vmem:[%s1925 + $0x100] sm:$0xff]
      %v1959 = vld [vmem:[%s1925 + $0x108] sm:$0xff]
      %v1960 = vld [vmem:[%s1925 + $0x110] sm:$0xff]
      %v1961 = vld [vmem:[%s1925 + $0x118] sm:$0xff]
      %v1962 = vld [vmem:[%s1925 + $0x120] sm:$0xff]
      %v1963 = vld [vmem:[%s1925 + $0x128] sm:$0xff]
      %v1964 = vld [vmem:[%s1925 + $0x130] sm:$0xff]
      %v1965 = vld [vmem:[%s1925 + $0x138] sm:$0xff]
      %v1966 = vld [vmem:[%s1925 + $0x140] sm:$0xff]
      %v1967 = vld [vmem:[%s1925 + $0x148] sm:$0xff]
      %v1968 = vld [vmem:[%s1925 + $0x150] sm:$0xff]
      %v1969 = vld [vmem:[%s1925 + $0x158] sm:$0xff]
      %v1970 = vld [vmem:[%s1925 + $0x160] sm:$0xff]
      %v1971 = vld [vmem:[%s1925 + $0x168] sm:$0xff]
      %v1972 = vld [vmem:[%s1925 + $0x170] sm:$0xff]
      %v1973 = vld [vmem:[%s1925 + $0x178] sm:$0xff]
      %v1974 = vld [vmem:[%s1925 + $0x180] sm:$0xff]
      %v1975 = vld [vmem:[%s1925 + $0x188] sm:$0xff]
      %v1976 = vld [vmem:[%s1925 + $0x190] sm:$0xff]
      %v1977 = vld [vmem:[%s1925 + $0x198] sm:$0xff]
      %v1978 = vld [vmem:[%s1925 + $0x1a0] sm:$0xff]
      %v1979 = vld [vmem:[%s1925 + $0x1a8] sm:$0xff]
      %v1980 = vld [vmem:[%s1925 + $0x1b0] sm:$0xff]
      %v1981 = vld [vmem:[%s1925 + $0x1b8] sm:$0xff]
      %v1982 = vld [vmem:[%s1925 + $0x1c0] sm:$0xff]
      %v1983 = vld [vmem:[%s1925 + $0x1c8] sm:$0xff]
      %v1984 = vld [vmem:[%s1925 + $0x1d0] sm:$0xff]
      %v1985 = vld [vmem:[%s1925 + $0x1d8] sm:$0xff]
      %v1986 = vld [vmem:[%s1925 + $0x1e0] sm:$0xff]
      %v1987 = vld [vmem:[%s1925 + $0x1e8] sm:$0xff]
      %v1988 = vld [vmem:[%s1925 + $0x1f0] sm:$0xff]
      %v1989 = vld [vmem:[%s1925 + $0x1f8] sm:$0xff]
      %v1992 = vunpack.c.l.b16 %v1923
      %v1993 = vunpack.c.h.b16 %v1923
      %v1994 = vunpack.c.l.b16 %v1924
      %v1995 = vunpack.c.h.b16 %v1924
      %v1996 = vpack.c.b16 %v1398, %v1992
      %v1997 = vpack.c.b16 %v1399, %v1993
      %v1998 = vpack.c.b16 %v1400, %v1994
      %v1999 = vpack.c.b16 %v1401, %v1995
      %vm2000 = vcmask 1044480
      %v2001 = vrot.slane %v1996, 3
      %v2002 = vrot.slane %v1414, 3
      %v2003 = vsel %vm2000, %v2001, %v2002
      %v2004 = vrot.slane %v1997, 3
      %v2005 = vrot.slane %v1415, 3
      %v2006 = vsel %vm2000, %v2004, %v2005
      %v2007 = vrot.slane %v1998, 3
      %v2008 = vrot.slane %v1416, 3
      %v2009 = vsel %vm2000, %v2007, %v2008
      %v2010 = vrot.slane %v1999, 3
      %v2011 = vrot.slane %v1417, 3
      %v2012 = vsel %vm2000, %v2010, %v2011
      %v2085 = vunpack.c.l.b16 %v1926
      %v2086 = vunpack.c.h.b16 %v1926
      %v2087 = vunpack.c.l.b16 %v1927
      %v2088 = vunpack.c.h.b16 %v1927
      %v2089 = vunpack.c.l.b16 %v1928
      %v2090 = vunpack.c.h.b16 %v1928
      %v2091 = vunpack.c.l.b16 %v1929
      %v2092 = vunpack.c.h.b16 %v1929
      %v2093 = vunpack.c.l.b16 %v1930
      %v2094 = vunpack.c.h.b16 %v1930
      %v2095 = vunpack.c.l.b16 %v1931
      %v2096 = vunpack.c.h.b16 %v1931
      %v2097 = vunpack.c.l.b16 %v1932
      %v2098 = vunpack.c.h.b16 %v1932
      %v2099 = vunpack.c.l.b16 %v1933
      %v2100 = vunpack.c.h.b16 %v1933
      %v2101 = vunpack.c.l.b16 %v1934
      %v2102 = vunpack.c.h.b16 %v1934
      %v2103 = vunpack.c.l.b16 %v1935
      %v2104 = vunpack.c.h.b16 %v1935
      %v2105 = vunpack.c.l.b16 %v1936
      %v2106 = vunpack.c.h.b16 %v1936
      %v2107 = vunpack.c.l.b16 %v1937
      %v2108 = vunpack.c.h.b16 %v1937
      %v2109 = vunpack.c.l.b16 %v1938
      %v2110 = vunpack.c.h.b16 %v1938
      %v2111 = vunpack.c.l.b16 %v1939
      %v2112 = vunpack.c.h.b16 %v1939
      %v2113 = vunpack.c.l.b16 %v1940
      %v2114 = vunpack.c.h.b16 %v1940
      %v2115 = vunpack.c.l.b16 %v1941
      %v2116 = vunpack.c.h.b16 %v1941
      %v2117 = vunpack.c.l.b16 %v1942
      %v2118 = vunpack.c.h.b16 %v1942
      %v2119 = vunpack.c.l.b16 %v1943
      %v2120 = vunpack.c.h.b16 %v1943
      %v2121 = vunpack.c.l.b16 %v1944
      %v2122 = vunpack.c.h.b16 %v1944
      %v2123 = vunpack.c.l.b16 %v1945
      %v2124 = vunpack.c.h.b16 %v1945
      %v2125 = vunpack.c.l.b16 %v1946
      %v2126 = vunpack.c.h.b16 %v1946
      %v2127 = vunpack.c.l.b16 %v1947
      %v2128 = vunpack.c.h.b16 %v1947
      %v2129 = vunpack.c.l.b16 %v1948
      %v2130 = vunpack.c.h.b16 %v1948
      %v2131 = vunpack.c.l.b16 %v1949
      %v2132 = vunpack.c.h.b16 %v1949
      %v2133 = vunpack.c.l.b16 %v1950
      %v2134 = vunpack.c.h.b16 %v1950
      %v2135 = vunpack.c.l.b16 %v1951
      %v2136 = vunpack.c.h.b16 %v1951
      %v2137 = vunpack.c.l.b16 %v1952
      %v2138 = vunpack.c.h.b16 %v1952
      %v2139 = vunpack.c.l.b16 %v1953
      %v2140 = vunpack.c.h.b16 %v1953
      %v2141 = vunpack.c.l.b16 %v1954
      %v2142 = vunpack.c.h.b16 %v1954
      %v2143 = vunpack.c.l.b16 %v1955
      %v2144 = vunpack.c.h.b16 %v1955
      %v2145 = vunpack.c.l.b16 %v1956
      %v2146 = vunpack.c.h.b16 %v1956
      %v2147 = vunpack.c.l.b16 %v1957
      %v2148 = vunpack.c.h.b16 %v1957
      %v2149 = vunpack.c.l.b16 %v1958
      %v2150 = vunpack.c.h.b16 %v1958
      %v2151 = vunpack.c.l.b16 %v1959
      %v2152 = vunpack.c.h.b16 %v1959
      %v2153 = vunpack.c.l.b16 %v1960
      %v2154 = vunpack.c.h.b16 %v1960
      %v2155 = vunpack.c.l.b16 %v1961
      %v2156 = vunpack.c.h.b16 %v1961
      %v2157 = vunpack.c.l.b16 %v1962
      %v2158 = vunpack.c.h.b16 %v1962
      %v2159 = vunpack.c.l.b16 %v1963
      %v2160 = vunpack.c.h.b16 %v1963
      %v2161 = vunpack.c.l.b16 %v1964
      %v2162 = vunpack.c.h.b16 %v1964
      %v2163 = vunpack.c.l.b16 %v1965
      %v2164 = vunpack.c.h.b16 %v1965
      %v2165 = vunpack.c.l.b16 %v1966
      %v2166 = vunpack.c.h.b16 %v1966
      %v2167 = vunpack.c.l.b16 %v1967
      %v2168 = vunpack.c.h.b16 %v1967
      %v2169 = vunpack.c.l.b16 %v1968
      %v2170 = vunpack.c.h.b16 %v1968
      %v2171 = vunpack.c.l.b16 %v1969
      %v2172 = vunpack.c.h.b16 %v1969
      %v2173 = vunpack.c.l.b16 %v1970
      %v2174 = vunpack.c.h.b16 %v1970
      %v2175 = vunpack.c.l.b16 %v1971
      %v2176 = vunpack.c.h.b16 %v1971
      %v2177 = vunpack.c.l.b16 %v1972
      %v2178 = vunpack.c.h.b16 %v1972
      %v2179 = vunpack.c.l.b16 %v1973
      %v2180 = vunpack.c.h.b16 %v1973
      %v2181 = vunpack.c.l.b16 %v1974
      %v2182 = vunpack.c.h.b16 %v1974
      %v2183 = vunpack.c.l.b16 %v1975
      %v2184 = vunpack.c.h.b16 %v1975
      %v2185 = vunpack.c.l.b16 %v1976
      %v2186 = vunpack.c.h.b16 %v1976
      %v2187 = vunpack.c.l.b16 %v1977
      %v2188 = vunpack.c.h.b16 %v1977
      %v2189 = vunpack.c.l.b16 %v1978
      %v2190 = vunpack.c.h.b16 %v1978
      %v2191 = vunpack.c.l.b16 %v1979
      %v2192 = vunpack.c.h.b16 %v1979
      %v2193 = vunpack.c.l.b16 %v1980
      %v2194 = vunpack.c.h.b16 %v1980
      %v2195 = vunpack.c.l.b16 %v1981
      %v2196 = vunpack.c.h.b16 %v1981
      %v2197 = vunpack.c.l.b16 %v1982
      %v2198 = vunpack.c.h.b16 %v1982
      %v2199 = vunpack.c.l.b16 %v1983
      %v2200 = vunpack.c.h.b16 %v1983
      %v2201 = vunpack.c.l.b16 %v1984
      %v2202 = vunpack.c.h.b16 %v1984
      %v2203 = vunpack.c.l.b16 %v1985
      %v2204 = vunpack.c.h.b16 %v1985
      %v2205 = vunpack.c.l.b16 %v1986
      %v2206 = vunpack.c.h.b16 %v1986
      %v2207 = vunpack.c.l.b16 %v1987
      %v2208 = vunpack.c.h.b16 %v1987
      %v2209 = vunpack.c.l.b16 %v1988
      %v2210 = vunpack.c.h.b16 %v1988
      %v2211 = vunpack.c.l.b16 %v1989
      %v2212 = vunpack.c.h.b16 %v1989
      %v2213 = vpack.c.b16 %v2087, %v2085
      %v2214 = vpack.c.b16 %v2088, %v2086
      %v2215 = vpack.c.b16 %v2091, %v2089
      %v2216 = vpack.c.b16 %v2092, %v2090
      %v2217 = vpack.c.b16 %v2095, %v2093
      %v2218 = vpack.c.b16 %v2096, %v2094
      %v2219 = vpack.c.b16 %v2099, %v2097
      %v2220 = vpack.c.b16 %v2100, %v2098
      %v2221 = vpack.c.b16 %v2103, %v2101
      %v2222 = vpack.c.b16 %v2104, %v2102
      %v2223 = vpack.c.b16 %v2107, %v2105
      %v2224 = vpack.c.b16 %v2108, %v2106
      %v2225 = vpack.c.b16 %v2111, %v2109
      %v2226 = vpack.c.b16 %v2112, %v2110
      %v2227 = vpack.c.b16 %v2115, %v2113
      %v2228 = vpack.c.b16 %v2116, %v2114
      %v2229 = vpack.c.b16 %v2119, %v2117
      %v2230 = vpack.c.b16 %v2120, %v2118
      %v2231 = vpack.c.b16 %v2123, %v2121
      %v2232 = vpack.c.b16 %v2124, %v2122
      %v2233 = vpack.c.b16 %v2127, %v2125
      %v2234 = vpack.c.b16 %v2128, %v2126
      %v2235 = vpack.c.b16 %v2131, %v2129
      %v2236 = vpack.c.b16 %v2132, %v2130
      %v2237 = vpack.c.b16 %v2135, %v2133
      %v2238 = vpack.c.b16 %v2136, %v2134
      %v2239 = vpack.c.b16 %v2139, %v2137
      %v2240 = vpack.c.b16 %v2140, %v2138
      %v2241 = vpack.c.b16 %v2143, %v2141
      %v2242 = vpack.c.b16 %v2144, %v2142
      %v2243 = vpack.c.b16 %v2147, %v2145
      %v2244 = vpack.c.b16 %v2148, %v2146
      %v2245 = vpack.c.b16 %v2151, %v2149
      %v2246 = vpack.c.b16 %v2152, %v2150
      %v2247 = vpack.c.b16 %v2155, %v2153
      %v2248 = vpack.c.b16 %v2156, %v2154
      %v2249 = vpack.c.b16 %v2159, %v2157
      %v2250 = vpack.c.b16 %v2160, %v2158
      %v2251 = vpack.c.b16 %v2163, %v2161
      %v2252 = vpack.c.b16 %v2164, %v2162
      %v2253 = vpack.c.b16 %v2167, %v2165
      %v2254 = vpack.c.b16 %v2168, %v2166
      %v2255 = vpack.c.b16 %v2171, %v2169
      %v2256 = vpack.c.b16 %v2172, %v2170
      %v2257 = vpack.c.b16 %v2175, %v2173
      %v2258 = vpack.c.b16 %v2176, %v2174
      %v2259 = vpack.c.b16 %v2179, %v2177
      %v2260 = vpack.c.b16 %v2180, %v2178
      %v2261 = vpack.c.b16 %v2183, %v2181
      %v2262 = vpack.c.b16 %v2184, %v2182
      %v2263 = vpack.c.b16 %v2187, %v2185
      %v2264 = vpack.c.b16 %v2188, %v2186
      %v2265 = vpack.c.b16 %v2191, %v2189
      %v2266 = vpack.c.b16 %v2192, %v2190
      %v2267 = vpack.c.b16 %v2195, %v2193
      %v2268 = vpack.c.b16 %v2196, %v2194
      %v2269 = vpack.c.b16 %v2199, %v2197
      %v2270 = vpack.c.b16 %v2200, %v2198
      %v2271 = vpack.c.b16 %v2203, %v2201
      %v2272 = vpack.c.b16 %v2204, %v2202
      %v2273 = vpack.c.b16 %v2207, %v2205
      %v2274 = vpack.c.b16 %v2208, %v2206
      %v2275 = vpack.c.b16 %v2211, %v2209
      %v2276 = vpack.c.b16 %v2212, %v2210
      %2341 = vmatprep.subr.bf16.mxu0 %v2214
      %2342 = vmatpush1.bf16.msra.mxu0 %v2213
      %2343 = vmatprep.subr.bf16.mxu0 %v2216
      %2344 = vmatpush1.bf16.msra.mxu0 %v2215
      %2345 = vmatprep.subr.bf16.mxu0 %v2218
      %2346 = vmatpush1.bf16.msra.mxu0 %v2217
      %2347 = vmatprep.subr.bf16.mxu0 %v2220
      %2348 = vmatpush1.bf16.msra.mxu0 %v2219
      %2349 = vmatprep.subr.bf16.mxu0 %v2222
      %2350 = vmatpush1.bf16.msra.mxu0 %v2221
      %2351 = vmatprep.subr.bf16.mxu0 %v2224
      %2352 = vmatpush1.bf16.msra.mxu0 %v2223
      %2353 = vmatprep.subr.bf16.mxu0 %v2226
      %2354 = vmatpush1.bf16.msra.mxu0 %v2225
      %2355 = vmatprep.subr.bf16.mxu0 %v2228
      %2356 = vmatpush1.bf16.msra.mxu0 %v2227
      %2357 = vmatprep.subr.bf16.mxu0 %v2230
      %2358 = vmatpush1.bf16.msra.mxu0 %v2229
      %2359 = vmatprep.subr.bf16.mxu0 %v2232
      %2360 = vmatpush1.bf16.msra.mxu0 %v2231
      %2361 = vmatprep.subr.bf16.mxu0 %v2234
      %2362 = vmatpush1.bf16.msra.mxu0 %v2233
      %2363 = vmatprep.subr.bf16.mxu0 %v2236
      %2364 = vmatpush1.bf16.msra.mxu0 %v2235
      %2365 = vmatprep.subr.bf16.mxu0 %v2238
      %2366 = vmatpush1.bf16.msra.mxu0 %v2237
      %2367 = vmatprep.subr.bf16.mxu0 %v2240
      %2368 = vmatpush1.bf16.msra.mxu0 %v2239
      %2369 = vmatprep.subr.bf16.mxu0 %v2242
      %2370 = vmatpush1.bf16.msra.mxu0 %v2241
      %2371 = vmatprep.subr.bf16.mxu0 %v2244
      %2372 = vmatpush1.bf16.msra.mxu0 %v2243
      %2373 = vmatprep.mubr.bf16.mxu0 %v2006
      %2374 = vmatmul.mubr.bf16.gmra.mrb[0].mxu0 %v2003
      %v2375 = vpop.f32.mrb[0].mxu0
      %v2376 = vadd.f32 0.0, %v2375
      %v2377 = vpop.f32.mrb[0].mxu0
      %v2378 = vadd.f32 0.0, %v2377
      %v2379 = vpop.f32.mrb[0].mxu0
      %v2380 = vadd.f32 0.0, %v2379
      %v2381 = vpop.f32.mrb[0].mxu0
      %v2382 = vadd.f32 0.0, %v2381
      %2383 = vmatprep.mubr.bf16.mxu0 %v2005
      %2384 = vmatmul.mubr.bf16.gmra.mrb[0].mxu0 %v2002
      %v2385 = vpop.f32.mrb[0].mxu0
      %v2386 = vadd.f32 0.0, %v2385
      %v2387 = vpop.f32.mrb[0].mxu0
      %v2388 = vadd.f32 0.0, %v2387
      %v2389 = vpop.f32.mrb[0].mxu0
      %v2390 = vpop.f32.mrb[0].mxu0
      %2391 = vdwg.mxu0
      %2392 = vmatprep.subr.bf16.mxu0 %v2246
      %2393 = vmatpush1.bf16.msra.mxu0 %v2245
      %2394 = vmatprep.subr.bf16.mxu0 %v2248
      %2395 = vmatpush1.bf16.msra.mxu0 %v2247
      %2396 = vmatprep.subr.bf16.mxu0 %v2250
      %2397 = vmatpush1.bf16.msra.mxu0 %v2249
      %2398 = vmatprep.subr.bf16.mxu0 %v2252
      %2399 = vmatpush1.bf16.msra.mxu0 %v2251
      %2400 = vmatprep.subr.bf16.mxu0 %v2254
      %2401 = vmatpush1.bf16.msra.mxu0 %v2253
      %2402 = vmatprep.subr.bf16.mxu0 %v2256
      %2403 = vmatpush1.bf16.msra.mxu0 %v2255
      %2404 = vmatprep.subr.bf16.mxu0 %v2258
      %2405 = vmatpush1.bf16.msra.mxu0 %v2257
      %2406 = vmatprep.subr.bf16.mxu0 %v2260
      %2407 = vmatpush1.bf16.msra.mxu0 %v2259
      %2408 = vmatprep.subr.bf16.mxu0 %v2262
      %2409 = vmatpush1.bf16.msra.mxu0 %v2261
      %2410 = vmatprep.subr.bf16.mxu0 %v2264
      %2411 = vmatpush1.bf16.msra.mxu0 %v2263
      %2412 = vmatprep.subr.bf16.mxu0 %v2266
      %2413 = vmatpush1.bf16.msra.mxu0 %v2265
      %2414 = vmatprep.subr.bf16.mxu0 %v2268
      %2415 = vmatpush1.bf16.msra.mxu0 %v2267
      %2416 = vmatprep.subr.bf16.mxu0 %v2270
      %2417 = vmatpush1.bf16.msra.mxu0 %v2269
      %2418 = vmatprep.subr.bf16.mxu0 %v2272
      %2419 = vmatpush1.bf16.msra.mxu0 %v2271
      %2420 = vmatprep.subr.bf16.mxu0 %v2274
      %2421 = vmatpush1.bf16.msra.mxu0 %v2273
      %2422 = vmatprep.subr.bf16.mxu0 %v2276
      %2423 = vmatpush1.bf16.msra.mxu0 %v2275
      %2424 = vmatprep.mubr.bf16.mxu0 %v2012
      %2425 = vmatmul.mubr.bf16.gmra.mrb[0].mxu0 %v2009
      %v2426 = vpop.f32.mrb[0].mxu0
      %v2427 = vadd.f32 %v2376, %v2426
      %v2428 = vpop.f32.mrb[0].mxu0
      %v2429 = vadd.f32 %v2378, %v2428
      %v2430 = vpop.f32.mrb[0].mxu0
      %v2431 = vadd.f32 %v2380, %v2430
      %v2432 = vpop.f32.mrb[0].mxu0
      %v2433 = vadd.f32 %v2382, %v2432
      %2434 = vmatprep.mubr.bf16.mxu0 %v2011
      %2435 = vmatmul.mubr.bf16.gmra.mrb[0].mxu0 %v2008
      %v2436 = vpop.f32.mrb[0].mxu0
      %v2437 = vadd.f32 %v2386, %v2436
      %v2438 = vpop.f32.mrb[0].mxu0
      %v2439 = vadd.f32 %v2388, %v2438
      %v2440 = vpop.f32.mrb[0].mxu0
      %v2441 = vpop.f32.mrb[0].mxu0
      %2442 = vdwg.mxu0
      %v2443 = vadd.f32 %v1917, %v2427
      %v2444 = vadd.f32 %v1918, %v2429
      %v2445 = vadd.f32 %v1919, %v2431
      %v2446 = vadd.f32 %v1920, %v2433
      %v2447 = vadd.f32 %v1921, %v2437
      %v2448 = vadd.f32 %v1922, %v2439
      %v2449 = vlaneseq
      %v2450 = vshrl.u32 %v2449, 7
      %v2451 = vadd.s32 %v2450, 8
      %v2452 = vadd.s32 %v2450, 16
      %vm2453 = vcmp.lt.s32.totalorder %v2450, 0
      %v2454 = vsub.s32 0, %v2450
      %v2455 = vsel %vm2453, %v2454, %v2450
      %v2456 = vmul.u32.u64.compose %v2455, 3435973837
      %v2457 = vextract.low.u32 %v2456
      %v2458 = vextract.high.u32 %v2456
      %v2459 = vshrl.u32 %v2458, 2
      %v2460 = vmul.u32 %v2459, 5
      %v2461 = vsub.s32 %v2455, %v2460
      %v2462 = vsub.s32 0, %v2461
      %v2463 = vsel %vm2453, %v2462, %v2461
      %vm2464 = vcmp.lt.s32.totalorder %v2451, 0
      %v2465 = vsub.s32 0, %v2451
      %v2466 = vsel %vm2464, %v2465, %v2451
      %v2467 = vmul.u32.u64.compose %v2466, 3435973837
      %v2468 = vextract.low.u32 %v2467
      %v2469 = vextract.high.u32 %v2467
      %v2470 = vshrl.u32 %v2469, 2
      %v2471 = vmul.u32 %v2470, 5
      %v2472 = vsub.s32 %v2466, %v2471
      %v2473 = vsub.s32 0, %v2472
      %v2474 = vsel %vm2464, %v2473, %v2472
      %vm2475 = vcmp.lt.s32.totalorder %v2452, 0
      %v2476 = vsub.s32 0, %v2452
      %v2477 = vsel %vm2475, %v2476, %v2452
      %v2478 = vmul.u32.u64.compose %v2477, 3435973837
      %v2479 = vextract.low.u32 %v2478
      %v2480 = vextract.high.u32 %v2478
      %v2481 = vshrl.u32 %v2480, 2
      %v2482 = vmul.u32 %v2481, 5
      %v2483 = vsub.s32 %v2477, %v2482
      %v2484 = vsub.s32 0, %v2483
      %v2485 = vsel %vm2475, %v2484, %v2483
      %vm2486 = vcmp.ne.s32.totalorder %v2463, 0
      %vm2487 = vcmp.ne.s32.totalorder %v2474, 0
      %vm2488 = vcmp.ne.s32.totalorder %v2485, 0
      %vm2489 = vcmp.lt.s32.totalorder %v2463, 0
      %vm2490 = vcmp.lt.s32.totalorder %v2474, 0
      %vm2491 = vcmp.lt.s32.totalorder %v2485, 0
      %vm2492 = vmand %vm2489, %vm2486
      %vm2493 = vmand %vm2490, %vm2487
      %vm2494 = vmand %vm2491, %vm2488
      %v2495 = vadd.s32 %v2463, 5
      %v2496 = vadd.s32 %v2474, 5
      %v2497 = vadd.s32 %v2485, 5
      %v2498 = vsel %vm2492, %v2495, %v2463
      %v2499 = vsel %vm2493, %v2496, %v2474
      %v2500 = vsel %vm2494, %v2497, %v2485
      %vm2501 = vcmp.ne.s32.totalorder %v2498, 4
      %vm2502 = vcmp.ne.s32.totalorder %v2499, 4
      %vm2503 = vcmp.ne.s32.totalorder %v2500, 4
      %v2504 = vsel %vm2501, 1, 0
      %v2505 = vsel %vm2502, 1, 0
      %v2506 = vsel %vm2503, 1, 0
      %vm2507 = vcmp.eq.s32.totalorder %v2504, 1
      %vm2508 = vcmp.eq.s32.totalorder %v2505, 1
      %vm2509 = vcmp.eq.s32.totalorder %v2506, 1
      %v2510 = vsel %vm2507, %v2443, 0.0
      %v2511 = vsel %vm2507, %v2444, 0.0
      %v2512 = vsel %vm2508, %v2445, 0.0
      %v2513 = vsel %vm2508, %v2446, 0.0
      %v2514 = vsel %vm2509, %v2447, 0.0
      %v2515 = vsel %vm2509, %v2448, 0.0
      %v2516 = vadd.f32 %v2510, %v2512
      %vm2517 = vcmask 1043456
      %v2518 = vsel %vm2517, %v2514, 0.0
      %v2519 = vadd.f32 %v2516, %v2518
      %v2520 = vrot.slane %v2519, 4
      %v2521 = vadd.f32 %v2519, %v2520
      %v2522 = vrot.slane %v2521, 2
      %v2523 = vadd.f32 %v2521, %v2522
      %v2524 = vrot.slane %v2523, 1
      %v2525 = vadd.f32 %v2523, %v2524
      %v2526 = vadd.f32 %v2511, %v2513
      %v2527 = vsel %vm2517, %v2515, 0.0
      %v2528 = vadd.f32 %v2526, %v2527
      %v2529 = vrot.slane %v2528, 4
      %v2530 = vadd.f32 %v2528, %v2529
      %v2531 = vrot.slane %v2530, 2
      %v2532 = vadd.f32 %v2530, %v2531
      %v2533 = vrot.slane %v2532, 1
      %v2534 = vadd.f32 %v2532, %v2533
      %v2537 = vcombine.low %v2525, %v2534
      %v2539 = vunpack.c.l.s4 1966171168
      %v2540 = vunpack.c.0.s8 %v2539
      %v2541 = vlaneseq
      %v2542 = vshrl.u32 %v2541, 7
      %v2543 = vsub.s32 %v2540, %v2542
      %v2544 = vrot.slane %v2537, %v2543
      %v2546 = vunpack.c.l.s4 1966171168
      %v2547 = vunpack.c.0.s8 %v2546
      %v2548 = vlaneseq
      %v2549 = vshrl.u32 %v2548, 7
      %v2550 = vsub.s32 %v2547, %v2549
      %v2551 = vrot.slane %v2544, %v2550
      %v2553 = vlaneseq
      %vm2554 = vcmp.ge.s32.totalorder %v2553, 0
      %vm2555 = vcmp.lt.s32.totalorder %v2553, 256
      %vm2556 = vmand %vm2554, %vm2555
      %2557 = vst.msk [vmem:[%s214] sm:$0x3] %vm2556, %v2551
      %v2558 = vmul.f32 %v2510, %v2510
      %v2559 = vmul.f32 %v2511, %v2511
      %v2560 = vmul.f32 %v2512, %v2512
      %v2561 = vmul.f32 %v2513, %v2513
      %v2562 = vmul.f32 %v2514, %v2514
      %v2563 = vmul.f32 %v2515, %v2515
      %v2564 = vadd.f32 %v2558, %v2560
      %v2565 = vsel %vm2517, %v2562, 0.0
      %v2566 = vadd.f32 %v2564, %v2565
      %v2567 = vrot.slane %v2566, 4
      %v2568 = vadd.f32 %v2566, %v2567
      %v2569 = vrot.slane %v2568, 2
      %v2570 = vadd.f32 %v2568, %v2569
      %v2571 = vrot.slane %v2570, 1
      %v2572 = vadd.f32 %v2570, %v2571
      %v2573 = vadd.f32 %v2559, %v2561
      %v2574 = vsel %vm2517, %v2563, 0.0
      %v2575 = vadd.f32 %v2573, %v2574
      %v2576 = vrot.slane %v2575, 4
      %v2577 = vadd.f32 %v2575, %v2576
      %v2578 = vrot.slane %v2577, 2
      %v2579 = vadd.f32 %v2577, %v2578
      %v2580 = vrot.slane %v2579, 1
      %v2581 = vadd.f32 %v2579, %v2580
      %v2584 = vcombine.low %v2572, %v2581
      %v2586 = vunpack.c.l.s4 1966171168
      %v2587 = vunpack.c.0.s8 %v2586
      %v2588 = vlaneseq
      %v2589 = vshrl.u32 %v2588, 7
      %v2590 = vsub.s32 %v2587, %v2589
      %v2591 = vrot.slane %v2584, %v2590
      %v2593 = vunpack.c.l.s4 1966171168
      %v2594 = vunpack.c.0.s8 %v2593
      %v2595 = vlaneseq
      %v2596 = vshrl.u32 %v2595, 7
      %v2597 = vsub.s32 %v2594, %v2596
      %v2598 = vrot.slane %v2591, %v2597
      %2600 = vst.msk [vmem:[%s218] sm:$0x3] %vm2556, %v2598
      %v2601 = vpack.c.bf16 %v2445, %v2443
      %v2602 = vpack.c.bf16 %v2446, %v2444
      %v2603 = vpack.c.bf16 %v2447, %v2447
      %v2604 = vpack.c.bf16 %v2448, %v2448
      %v2609 = vunpack.c.l.b16 %v2601
      %v2610 = vunpack.c.l.b16 %v2602
      %v2611 = vunpack.c.h.b16 %v2601
      %v2612 = vunpack.c.h.b16 %v2602
      %v2613 = vunpack.c.l.b16 %v2603
      %v2614 = vunpack.c.l.b16 %v2604
      %v2615 = vpack.c.b16 %v2610, %v2609
      %v2616 = vpack.c.b16 %v2612, %v2611
      %v2617 = vpack.c.b16 %v2614, %v2613
      %2621 = vst [vmem:[%s210] sm:$0xff] %v2615
      %2622 = vst [vmem:[%s210 + $0x8] sm:$0xff] %v2616
      %2623 = vst [vmem:[%s210 + $0x10] sm:$0x33] %v2617
      %p2624 = scmp.lt.s32.totalorder %s16, 1
      %s2625 = scalar_select %p2624, %s16, 1
      %s2626 = smul.addr %s2625, 6
      %s2627 = smul.addr %s2626, 4
      %s2628 = scalar_lea.vmem %s2, %s2627
      %p2629 = scmp.lt.s32.totalorder %s16, 1
      %s2630 = scalar_select %p2629, %s16, 1
      %s2631 = smul.addr %s2630, 2
      %s2632 = scalar_lea.vmem %s3, %s2631
      %p2633 = scmp.lt.s32.totalorder %s16, 1
      %s2634 = scalar_select %p2633, %s16, 1
      %s2635 = smul.addr %s2634, 2
      %s2636 = scalar_lea.vmem %s4, %s2635
      // Predicated region
      $region29: #{discriminator_sec_forward.8} parent=27 // pred_check
        %p2637 = pneg %p81
      $region30: #{discriminator_sec_forward.8} parent=27 // pred_check_branch
        %2639 = sbr.rel (%p2637) target = $region32
      $region31: #{discriminator_sec_forward.8} parent=27 // pred_region
        _
      $region32: #{discriminator_sec_forward.8} parent=27 // pred_fallthru
        _
      // Predicated region
      $region33: #{discriminator_sec_forward.8} parent=27 // pred_check
        %p2640 = pneg %p107
      $region34: #{discriminator_sec_forward.8} parent=27 // pred_check_branch
        %2642 = sbr.rel (%p2640) target = $region36
      $region35: #{discriminator_sec_forward.8} parent=27 // pred_region
        _
      $region36: #{discriminator_sec_forward.8} parent=27 // pred_fallthru
        _
      // Predicated region
      $region37: #{discriminator_sec_forward.8} parent=27 // pred_check
        %p2643 = pneg %p133
      $region38: #{discriminator_sec_forward.8} parent=27 // pred_check_branch
        %2645 = sbr.rel (%p2643) target = $region40
      $region39: #{discriminator_sec_forward.8} parent=27 // pred_region
        _
      $region40: #{discriminator_sec_forward.8} parent=27 // pred_fallthru
        _
    $region28: #{discriminator_sec_forward.8} parent=5 // pred_fallthru
      _
    %p2646 = scmp.le.s32.totalorder 2, %s11
    // Predicated region
    $region41: #{discriminator_sec_forward.8} parent=5 // pred_check
      %p2647 = pneg %p2646
    $region42: #{discriminator_sec_forward.8} parent=5 // pred_check_branch
      %2649 = sbr.rel (%p2647) target = $region44
    $region43: #{discriminator_sec_forward.8} parent=5 // pred_region
      %s2650 = ssub.s32 %s11, 2
      // Predicated region
      $region45: #{discriminator_sec_forward.8} parent=43 // pred_check
        %p2651 = pneg %p87
      $region46: #{discriminator_sec_forward.8} parent=43 // pred_check_branch
        %2653 = sbr.rel (%p2651) target = $region48
      $region47: #{discriminator_sec_forward.8} parent=43 // pred_region
        %p2654 = scmp.lt.s32.totalorder %s17, 1
        %s2655 = scalar_select %p2654, %s17, 1
        %s2656 = smul.addr %s2655, 6
        %s2657 = smul.addr %s2656, 4
        %s2658 = scalar_lea.vmem %s2, %s2657
      $region48: #{discriminator_sec_forward.8} parent=43 // pred_fallthru
        _
      // Predicated region
      $region49: #{discriminator_sec_forward.8} parent=43 // pred_check
        %p2659 = pneg %p113
      $region50: #{discriminator_sec_forward.8} parent=43 // pred_check_branch
        %2661 = sbr.rel (%p2659) target = $region52
      $region51: #{discriminator_sec_forward.8} parent=43 // pred_region
        %p2662 = scmp.lt.s32.totalorder %s17, 1
        %s2663 = scalar_select %p2662, %s17, 1
        %s2664 = smul.addr %s2663, 2
        %s2665 = scalar_lea.vmem %s3, %s2664
      $region52: #{discriminator_sec_forward.8} parent=43 // pred_fallthru
        _
      // Predicated region
      $region53: #{discriminator_sec_forward.8} parent=43 // pred_check
        %p2666 = pneg %p139
      $region54: #{discriminator_sec_forward.8} parent=43 // pred_check_branch
        %2668 = sbr.rel (%p2666) target = $region56
      $region55: #{discriminator_sec_forward.8} parent=43 // pred_region
        %p2669 = scmp.lt.s32.totalorder %s17, 1
        %s2670 = scalar_select %p2669, %s17, 1
        %s2671 = smul.addr %s2670, 2
        %s2672 = scalar_lea.vmem %s4, %s2671
      $region56: #{discriminator_sec_forward.8} parent=43 // pred_fallthru
        _
    $region44: #{discriminator_sec_forward.8} parent=5 // pred_fallthru
      _
  $region6: #{discriminator_sec_forward.8} parent=0 // loop_footer
    %s15 = sadd.s32 1, %s11
  $region7: #{discriminator_sec_forward.8} parent=0 // loop_footer_branch
    %10 = sbr.rel target = $region3
  $region8: #{discriminator_sec_forward.8} parent=0 // loop_exit
    _

</llo_original>
